<compile_context>
chip_gen: v7x
topology: tpu7x:2x2x1
jax: 0.10.0
libtpu: 0.0.40
codegen_flags: <defaults>
</compile_context>

<pallas_src>
import functools

import jax
import jax.numpy as jnp
from jax import lax
from jax.experimental import pallas as pl
from jax.experimental.pallas import tpu as pltpu

EPS = 1e-5
LANES = 128

_CPARAMS = pltpu.CompilerParams(dimension_semantics=("parallel",))


# ----------------------------- Pallas kernels --------------------------------

def _conv1_res_kernel(p_ref, w_ref, o_ref, stat_ref):
    """[conv1 | pool1->covr1] as one bf16 MXU matmul + BN1 partial stats.

    p_ref : (TM, k*k*Ci)    bf16  im2col patches of the input
    w_ref : (k*k*Ci, 2*Cp)  bf16  [W1 | tile(Wr)/k^2]   (Cp = Co padded to 128)
    o_ref : (TM, 2*Cp)      bf16  [conv1 out | residual-path out]
    stat  : (8, 2*Cp)       f32   row0 = sum, row1 = sum of squares
    """
    y = jnp.dot(p_ref[...], w_ref[...], preferred_element_type=jnp.float32)
    o_ref[...] = y.astype(o_ref.dtype)
    w = y.shape[1]
    stat_ref[0:1, :] = jnp.sum(y, axis=0, keepdims=True)
    stat_ref[1:2, :] = jnp.sum(y * y, axis=0, keepdims=True)
    stat_ref[2:8, :] = jnp.zeros((6, w), jnp.float32)


def _bn1_conv2_pool2_kernel(p_ref, s1_ref, b1_ref, w_ref, pr_ref,
                            yr_ref, stat_ref, *, m_real, kk, cp):
    """BN1+ReLU (on patches) -> conv2 matmul; pool2 of residual; BN2 stats.

    p_ref  : (TM, kk*cp) bf16   im2col patches of conv1 pre-BN output
    s1_ref : (1, kk*cp)  f32    folded BN1 scale, tiled per tap
    b1_ref : (1, kk*cp)  f32    folded BN1 bias,  tiled per tap
    w_ref  : (kk*cp, cp) bf16   conv2 weights (channel-padded)
    pr_ref : (TM, kk*cp) bf16   im2col patches of the residual path
    yr_ref : (TM, 2*cp)  f32    [conv2 output (pre-BN2) | pool2(residual)]
    stat   : (8, cp)     f32    row0 = sum, row1 = sum of squares of y
    """
    tm = p_ref.shape[0]
    # BN1 apply + ReLU in f32 (elementwise commutes with im2col duplication).
    h = jnp.maximum(p_ref[...].astype(jnp.float32) * s1_ref[...] + b1_ref[...],
                    0.0)
    y = jnp.dot(h.astype(jnp.bfloat16), w_ref[...],
                preferred_element_type=jnp.float32)
    # Zero the pure-padding rows so the GLOBAL BN2 statistics stay exact.
    rows = pl.program_id(0) * tm + lax.broadcasted_iota(jnp.int32, (tm, 1), 0)
    y = jnp.where(rows < m_real, y, 0.0)
    yr_ref[:, 0:cp] = y

    # pool2: mean over the k*k taps via lane-aligned 128-wide slices (VPU adds,
    # runs in the VALU slot while the MXU matmul above is in flight).
    acc = pr_ref[:, 0:cp].astype(jnp.float32)
    for t in range(1, kk):
        acc = acc + pr_ref[:, t * cp:(t + 1) * cp].astype(jnp.float32)
    yr_ref[:, cp:] = acc * (1.0 / kk)

    stat_ref[0:1, :] = jnp.sum(y, axis=0, keepdims=True)
    stat_ref[1:2, :] = jnp.sum(y * y, axis=0, keepdims=True)
    stat_ref[2:8, :] = jnp.zeros((6, cp), jnp.float32)


def _bn2_add_relu_kernel(yr_ref, s2_ref, b2_ref, o_ref):
    """out = relu(scale2 * y + bias2 + residual)  -- one fused FMA + add."""
    cp = s2_ref.shape[1]
    y = yr_ref[:, 0:cp]
    r = yr_ref[:, cp:]
    o_ref[...] = jnp.maximum(y * s2_ref[...] + b2_ref[...] + r, 0.0)


# ------------------------------ spec helpers ----------------------------------

def _cdiv(a, b):
    return -(-a // b)


def _round_up(x, m):
    return _cdiv(x, m) * m


def _pick_tile(m):
    for t in (512, 256, 128):
        if m >= t:
            return t
    return 128


def _row_spec(tile, width):
    return pl.BlockSpec((tile, width), lambda i: (i, 0))


def _full_spec(shape):
    zeros = (0,) * len(shape)
    return pl.BlockSpec(shape, lambda i: zeros)


# ------------------------------- JAX glue --------------------------------------

def _extract_patches(x_nhwc, k, s):
    """(N,H,W,C) -> (N,Ho,Wo,k*k,C) patches (kh outer, kw inner), VALID, stride s."""
    N, H, W, C = x_nhwc.shape
    Ho = (H - k) // s + 1
    Wo = (W - k) // s + 1
    taps = []
    for kh in range(k):
        for kw in range(k):
            taps.append(x_nhwc[:, kh:kh + s * (Ho - 1) + 1:s,
                               kw:kw + s * (Wo - 1) + 1:s, :])
    return jnp.stack(taps, axis=3)               # (N, Ho, Wo, k*k, C)


def _w_oihw_to_mat(w):
    """(Co,Ci,kh,kw) -> (kh*kw*Ci, Co), matching patch flattening order."""
    co, ci, kh, kw = w.shape
    return jnp.transpose(w, (2, 3, 1, 0)).reshape(kh * kw * ci, co)


def _pad_rows(x, rows):
    return jnp.pad(x, ((0, rows - x.shape[0]), (0, 0)))


def _pad_cols(x, cols):
    return jnp.pad(x, ((0, 0), (0, cols - x.shape[1])))


def _bn_fold(stats, m, gamma, beta, co, cp):
    """Global batch stats from per-tile partials, folded into scale/bias."""
    st = stats.reshape(-1, 8, stats.shape[-1])
    ssum = jnp.sum(st[:, 0, :cp], axis=0)
    ssq = jnp.sum(st[:, 1, :cp], axis=0)
    mu = ssum / m
    var = jnp.maximum(ssq / m - mu * mu, 0.0)
    g = jnp.zeros((cp,), jnp.float32).at[:co].set(gamma.reshape(-1))
    b = jnp.zeros((cp,), jnp.float32).at[:co].set(beta.reshape(-1))
    scale = g * lax.rsqrt(var + EPS)
    bias = b - mu * scale
    return scale.reshape(1, cp), bias.reshape(1, cp)


@functools.partial(jax.jit, static_argnums=(2, 3))
def residual_block_forward(x_nchw, params, k, s):
    x = jnp.transpose(x_nchw, (0, 2, 3, 1)).astype(jnp.float32)   # NHWC
    N, H, W, Ci = x.shape
    Co = params["w1"].shape[0]
    kk = k * k
    Cp = _round_up(Co, LANES)                                     # lane-dense
    Ho1, Wo1 = (H - k) // s + 1, (W - k) // s + 1
    Ho2, Wo2 = (Ho1 - k) // s + 1, (Wo1 - k) // s + 1
    M1, M2 = N * Ho1 * Wo1, N * Ho2 * Wo2

    # -------- stage A: conv1 + (pool1 -> covr1) folded, + BN1 partial stats --
    t1 = _pick_tile(M1)
    n1 = _cdiv(M1, t1)
    m1p = n1 * t1
    k1 = kk * Ci

    p1 = _extract_patches(x, k, s).reshape(M1, k1)
    p1 = _pad_rows(p1, m1p).astype(jnp.bfloat16)

    w1_mat = _pad_cols(_w_oihw_to_mat(params["w1"]), Cp)                 # (k1,Cp)
    wr_mat = _pad_cols(jnp.tile(_w_oihw_to_mat(params["wr"]), (kk, 1)) / kk, Cp)
    w_cat = jnp.concatenate([w1_mat, wr_mat], axis=1).astype(jnp.bfloat16)

    y1r1, stats1 = pl.pallas_call(
        _conv1_res_kernel,
        out_shape=(jax.ShapeDtypeStruct((m1p, 2 * Cp), jnp.bfloat16),
                   jax.ShapeDtypeStruct((n1 * 8, 2 * Cp), jnp.float32)),
        grid=(n1,),
        in_specs=[_row_spec(t1, k1), _full_spec(w_cat.shape)],
        out_specs=(_row_spec(t1, 2 * Cp), _row_spec(8, 2 * Cp)),
        compiler_params=_CPARAMS,
    )(p1, w_cat)

    scale1, bias1 = _bn_fold(stats1, M1, params["g1"], params["b1"], Co, Cp)
    scale1_t = jnp.tile(scale1, (1, kk))                          # (1, kk*Cp)
    bias1_t = jnp.tile(bias1, (1, kk))

    # -------- stage B: BN1+ReLU -> conv2 ; pool2 ; BN2 partial stats ---------
    t2 = _pick_tile(M2)
    n2 = _cdiv(M2, t2)
    m2p = n2 * t2
    k2 = kk * Cp

    y1 = y1r1[:M1, :Cp].reshape(N, Ho1, Wo1, Cp)      # conv1 pre-BN output
    r1 = y1r1[:M1, Cp:].reshape(N, Ho1, Wo1, Cp)      # covr1(pool1(x))
    p2 = _pad_rows(_extract_patches(y1, k, s).reshape(M2, k2), m2p)
    pr2 = _pad_rows(_extract_patches(r1, k, s).reshape(M2, k2), m2p)

    w2_img = jnp.transpose(params["w2"], (2, 3, 1, 0)).reshape(kk, Co, Co)
    w2_pad = jnp.zeros((kk, Cp, Cp), jnp.float32).at[:, :Co, :Co].set(w2_img)
    w2_mat = w2_pad.reshape(k2, Cp).astype(jnp.bfloat16)

    kernel_b = functools.partial(_bn1_conv2_pool2_kernel,
                                 m_real=M2, kk=kk, cp=Cp)
    yr2, stats2 = pl.pallas_call(
        kernel_b,
        out_shape=(jax.ShapeDtypeStruct((m2p, 2 * Cp), jnp.float32),
                   jax.ShapeDtypeStruct((n2 * 8, Cp), jnp.float32)),
        grid=(n2,),
        in_specs=[_row_spec(t2, k2), _full_spec((1, k2)), _full_spec((1, k2)),
                  _full_spec((k2, Cp)), _row_spec(t2, k2)],
        out_specs=(_row_spec(t2, 2 * Cp), _row_spec(8, Cp)),
        compiler_params=_CPARAMS,
    )(p2, scale1_t, bias1_t, w2_mat, pr2)

    scale2, bias2 = _bn_fold(stats2, M2, params["g2"], params["b2"], Co, Cp)

    # -------- stage C: BN2 apply + residual add + ReLU -----------------------
    out = pl.pallas_call(
        _bn2_add_relu_kernel,
        out_shape=jax.ShapeDtypeStruct((m2p, Cp), jnp.float32),
        grid=(n2,),
        in_specs=[_row_spec(t2, 2 * Cp),
                  _full_spec((1, Cp)), _full_spec((1, Cp))],
        out_specs=_row_spec(t2, Cp),
        compiler_params=_CPARAMS,
    )(yr2, scale2, bias2)

    out = out[:M2, :Co].reshape(N, Ho2, Wo2, Co)
    return jnp.transpose(out, (0, 3, 1, 2))                       # back to NCHW


# ------------------------ deterministic parameter init ------------------------

def init_params(key, in_feature, out_feature, k):
    ks = jax.random.split(key, 7)
    return dict(
        w1=jax.random.normal(ks[0], (out_feature, in_feature, k, k), jnp.float32) * 0.1,
        wr=jax.random.normal(ks[1], (out_feature, in_feature, 1, 1), jnp.float32) * 0.1,
        w2=jax.random.normal(ks[2], (out_feature, out_feature, k, k), jnp.float32) * 0.1,
        g1=jax.random.uniform(ks[3], (1, out_feature), jnp.float32, 0.5, 1.5),
        b1=jax.random.normal(ks[4], (1, out_feature), jnp.float32) * 0.1,
        g2=jax.random.uniform(ks[5], (1, out_feature), jnp.float32, 0.5, 1.5),
        b2=jax.random.normal(ks[6], (1, out_feature), jnp.float32) * 0.1,
    )


# ------------------------- pure-JAX reference (check) -------------------------

def _bn_train_nchw(y, g, b):
    mu = jnp.mean(y, axis=(0, 2, 3), keepdims=True)
    var = jnp.mean(jnp.square(y - mu), axis=(0, 2, 3), keepdims=True)
    return (y - mu) * lax.rsqrt(var + EPS) * g.reshape(1, -1, 1, 1) + b.reshape(1, -1, 1, 1)


def _avgpool_nchw(x, k, s):
    return lax.reduce_window(x, 0.0, lax.add,
                             (1, 1, k, k), (1, 1, s, s), "VALID") / float(k * k)


def reference_forward(x, params, k, s):
    dn = ("NCHW", "OIHW", "NCHW")

    def conv(a, w, st):
        return lax.conv_general_dilated(a, w, (st, st), "VALID",
                                        dimension_numbers=dn,
                                        precision=lax.Precision.HIGHEST)

    X = jax.nn.relu(_bn_train_nchw(conv(x, params["w1"], s), params["g1"], params["b1"]))
    R = conv(_avgpool_nchw(x, k, s), params["wr"], 1)
    X = _bn_train_nchw(conv(X, params["w2"], s), params["g2"], params["b2"])
    R = _avgpool_nchw(R, k, s)
    return jax.nn.relu(X + R)


# ----------------------------------- main --------------------------------------

if __name__ == "__main__":
    N, Cin, H, W = 2, 4, 16, 16
    Cout, K, S = 8, 3, 1

    key = jax.random.PRNGKey(0)
    kx, kp = jax.random.split(key)
    x = jax.random.normal(kx, (N, Cin, H, W), jnp.float32)
    params = init_params(kp, Cin, Cout, K)

    out = jax.block_until_ready(residual_block_forward(x, params, K, S))
    ref = jax.block_until_ready(reference_forward(x, params, K, S))

    assert out.shape == ref.shape, (out.shape, ref.shape)
    max_err = float(jnp.max(jnp.abs(out - ref)))
    # bf16 MXU inputs with f32 accumulation vs. f32 HIGHEST reference.
    assert jnp.allclose(out, ref, rtol=3e-2, atol=3e-2), max_err

    print("KERNEL_OK")
</pallas_src>

<mosaic_0001>
module attributes {stable_mosaic.version = 11 : i64} {
  func.func @_conv1_res_kernel(%arg0: i32, %arg1: memref<256x36xbf16, #tpu.memory_space<vmem>>, %arg2: memref<36x256xbf16, #tpu.memory_space<vmem>>, %arg3: memref<256x256xbf16, #tpu.memory_space<vmem>>, %arg4: memref<8x256xf32, #tpu.memory_space<vmem>>) attributes {dimension_semantics = [#tpu.dimension_semantics<parallel>], iteration_bounds = array<i64: 2>, scalar_prefetch = 0 : i64, scratch_operands = 0 : i64, tpu.core_type = #tpu.core_type<tc>, window_params = [{transform_indices = @transform_0, window_bounds = array<i64: 256, 36>}, {pipeline_mode = #tpu.pipeline_mode<synchronous>, transform_indices = @transform_1, window_bounds = array<i64: 36, 256>}, {transform_indices = @transform_2, window_bounds = array<i64: 256, 256>}, {transform_indices = @transform_3, window_bounds = array<i64: 8, 256>}]} {
    %c0 = arith.constant 0 : index
    %c0_0 = arith.constant 0 : index
    %0 = vector.load %arg1[%c0, %c0_0] : memref<256x36xbf16, #tpu.memory_space<vmem>>, vector<256x36xbf16>
    %c0_1 = arith.constant 0 : index
    %c0_2 = arith.constant 0 : index
    %1 = vector.load %arg2[%c0_1, %c0_2] : memref<36x256xbf16, #tpu.memory_space<vmem>>, vector<36x256xbf16>
    %cst = arith.constant dense<0.000000e+00> : vector<256x256xf32>
    %2 = tpu.matmul %0, %1, %cst {dimension_numbers = #tpu.dot_dimension_numbers<[1], [0], [0], [1], [0, 0, 1, 1], [], []>} : vector<256x36xbf16>, vector<36x256xbf16>, vector<256x256xf32> -> vector<256x256xf32>
    %3 = arith.truncf %2 : vector<256x256xf32> to vector<256x256xbf16>
    %c0_3 = arith.constant 0 : index
    %c0_4 = arith.constant 0 : index
    %4 = vector.load %arg3[%c0_3, %c0_4] : memref<256x256xbf16, #tpu.memory_space<vmem>>, vector<256x256xbf16>
    tpu.vector_store %arg3[%c0_3, %c0_4], %3 {strides = array<i32>} : memref<256x256xbf16, #tpu.memory_space<vmem>>, vector<256x256xbf16>,
    %cst_5 = arith.constant dense<0.000000e+00> : vector<256xf32>
    %5 = vector.multi_reduction <add>, %2, %cst_5 [0] : vector<256x256xf32> to vector<256xf32>
    %6 = vector.shape_cast %5 : vector<256xf32> to vector<1x256xf32>
    %c0_6 = arith.constant 0 : index
    %c0_7 = arith.constant 0 : index
    %7 = vector.load %arg4[%c0_6, %c0_7] : memref<8x256xf32, #tpu.memory_space<vmem>>, vector<1x256xf32>
    tpu.vector_store %arg4[%c0_6, %c0_7], %6 {strides = array<i32>} : memref<8x256xf32, #tpu.memory_space<vmem>>, vector<1x256xf32>,
    %8 = arith.mulf %2, %2 : vector<256x256xf32>
    %cst_8 = arith.constant dense<0.000000e+00> : vector<256xf32>
    %9 = vector.multi_reduction <add>, %8, %cst_8 [0] : vector<256x256xf32> to vector<256xf32>
    %10 = vector.shape_cast %9 : vector<256xf32> to vector<1x256xf32>
    %c1 = arith.constant 1 : index
    %c0_9 = arith.constant 0 : index
    %11 = vector.load %arg4[%c1, %c0_9] : memref<8x256xf32, #tpu.memory_space<vmem>>, vector<1x256xf32>
    tpu.vector_store %arg4[%c1, %c0_9], %10 {strides = array<i32>} : memref<8x256xf32, #tpu.memory_space<vmem>>, vector<1x256xf32>,
    %cst_10 = arith.constant 0.000000e+00 : f32
    %12 = vector.broadcast %cst_10 : f32 to vector<6x256xf32>
    %c2 = arith.constant 2 : index
    %c0_11 = arith.constant 0 : index
    %13 = vector.load %arg4[%c2, %c0_11] : memref<8x256xf32, #tpu.memory_space<vmem>>, vector<6x256xf32>
    tpu.vector_store %arg4[%c2, %c0_11], %12 {strides = array<i32>} : memref<8x256xf32, #tpu.memory_space<vmem>>, vector<6x256xf32>,
    return
  }
  func.func @transform_0(%arg0: i32) -> (i32, i32) {
    %c0_i32 = arith.constant 0 : i32
    %c0_i32_0 = arith.constant 0 : i32
    return %arg0, %c0_i32 : i32, i32
  }
  func.func @transform_1(%arg0: i32) -> (i32, i32) {
    %c0_i32 = arith.constant 0 : i32
    %c0_i32_0 = arith.constant 0 : i32
    %c0_i32_1 = arith.constant 0 : i32
    return %c0_i32, %c0_i32_0 : i32, i32
  }
  func.func @transform_2(%arg0: i32) -> (i32, i32) {
    %c0_i32 = arith.constant 0 : i32
    %c0_i32_0 = arith.constant 0 : i32
    return %arg0, %c0_i32 : i32, i32
  }
  func.func @transform_3(%arg0: i32) -> (i32, i32) {
    %c0_i32 = arith.constant 0 : i32
    %c0_i32_0 = arith.constant 0 : i32
    return %arg0, %c0_i32 : i32, i32
  }
}

module attributes {stable_mosaic.version = 11 : i64} {
  func.func @_bn1_conv2_pool2_kernel(%arg0: i32, %arg1: memref<256x1152xbf16, #tpu.memory_space<vmem>>, %arg2: memref<1x1152xf32, #tpu.memory_space<vmem>>, %arg3: memref<1x1152xf32, #tpu.memory_space<vmem>>, %arg4: memref<1152x128xbf16, #tpu.memory_space<vmem>>, %arg5: memref<256x1152xbf16, #tpu.memory_space<vmem>>, %arg6: memref<256x256xf32, #tpu.memory_space<vmem>>, %arg7: memref<8x128xf32, #tpu.memory_space<vmem>>) attributes {dimension_semantics = [#tpu.dimension_semantics<parallel>], iteration_bounds = array<i64: 2>, scalar_prefetch = 0 : i64, scratch_operands = 0 : i64, tpu.core_type = #tpu.core_type<tc>, window_params = [{transform_indices = @transform_0, window_bounds = array<i64: 256, 1152>}, {pipeline_mode = #tpu.pipeline_mode<synchronous>, transform_indices = @transform_1, window_bounds = array<i64: 1, 1152>}, {pipeline_mode = #tpu.pipeline_mode<synchronous>, transform_indices = @transform_2, window_bounds = array<i64: 1, 1152>}, {pipeline_mode = #tpu.pipeline_mode<synchronous>, transform_indices = @transform_3, window_bounds = array<i64: 1152, 128>}, {transform_indices = @transform_4, window_bounds = array<i64: 256, 1152>}, {transform_indices = @transform_5, window_bounds = array<i64: 256, 256>}, {transform_indices = @transform_6, window_bounds = array<i64: 8, 128>}]} {
    %c0 = arith.constant 0 : index
    %c0_0 = arith.constant 0 : index
    %0 = vector.load %arg1[%c0, %c0_0] : memref<256x1152xbf16, #tpu.memory_space<vmem>>, vector<256x1152xbf16>
    %1 = arith.extf %0 : vector<256x1152xbf16> to vector<256x1152xf32>
    %c0_1 = arith.constant 0 : index
    %c0_2 = arith.constant 0 : index
    %2 = vector.load %arg2[%c0_1, %c0_2] : memref<1x1152xf32, #tpu.memory_space<vmem>>, vector<1x1152xf32>
    %3 = vector.broadcast %2 : vector<1x1152xf32> to vector<256x1152xf32>
    %4 = arith.mulf %1, %3 : vector<256x1152xf32>
    %c0_3 = arith.constant 0 : index
    %c0_4 = arith.constant 0 : index
    %5 = vector.load %arg3[%c0_3, %c0_4] : memref<1x1152xf32, #tpu.memory_space<vmem>>, vector<1x1152xf32>
    %6 = vector.broadcast %5 : vector<1x1152xf32> to vector<256x1152xf32>
    %7 = arith.addf %4, %6 : vector<256x1152xf32>
    %cst = arith.constant 0.000000e+00 : f32
    %8 = vector.broadcast %cst : f32 to vector<256x1152xf32>
    %9 = arith.maximumf %7, %8 : vector<256x1152xf32>
    %10 = arith.truncf %9 : vector<256x1152xf32> to vector<256x1152xbf16>
    %c0_5 = arith.constant 0 : index
    %c0_6 = arith.constant 0 : index
    %11 = vector.load %arg4[%c0_5, %c0_6] : memref<1152x128xbf16, #tpu.memory_space<vmem>>, vector<1152x128xbf16>
    %cst_7 = arith.constant dense<0.000000e+00> : vector<256x128xf32>
    %12 = tpu.matmul %10, %11, %cst_7 {dimension_numbers = #tpu.dot_dimension_numbers<[1], [0], [0], [1], [0, 0, 1, 1], [], []>} : vector<256x1152xbf16>, vector<1152x128xbf16>, vector<256x128xf32> -> vector<256x128xf32>
    %c256_i32 = arith.constant 256 : i32
    %13 = arith.muli %arg0, %c256_i32 : i32
    %14 = tpu.iota {dimensions = array<i32: 0>} : vector<256x1xi32>
    %15 = vector.broadcast %13 : i32 to vector<256x1xi32>
    %16 = arith.addi %15, %14 : vector<256x1xi32>
    %c288_i32 = arith.constant 288 : i32
    %17 = vector.broadcast %c288_i32 : i32 to vector<256x1xi32>
    %18 = arith.cmpi slt, %16, %17 : vector<256x1xi32>
    %cst_8 = arith.constant 0.000000e+00 : f32
    %19 = vector.shape_cast %18 : vector<256x1xi1> to vector<256x1xi1>
    %20 = vector.broadcast %19 : vector<256x1xi1> to vector<256x128xi1>
    %21 = vector.broadcast %cst_8 : f32 to vector<256x128xf32>
    %22 = arith.select %20, %12, %21 : vector<256x128xi1>, vector<256x128xf32>
    %c0_9 = arith.constant 0 : index
    %c0_10 = arith.constant 0 : index
    %23 = vector.load %arg6[%c0_9, %c0_10] : memref<256x256xf32, #tpu.memory_space<vmem>>, vector<256x128xf32>
    tpu.vector_store %arg6[%c0_9, %c0_10], %22 {strides = array<i32>} : memref<256x256xf32, #tpu.memory_space<vmem>>, vector<256x128xf32>,
    %c0_11 = arith.constant 0 : index
    %c0_12 = arith.constant 0 : index
    %24 = vector.load %arg5[%c0_11, %c0_12] : memref<256x1152xbf16, #tpu.memory_space<vmem>>, vector<256x128xbf16>
    %25 = arith.extf %24 : vector<256x128xbf16> to vector<256x128xf32>
    %c0_13 = arith.constant 0 : index
    %c128 = arith.constant 128 : index
    %26 = vector.load %arg5[%c0_13, %c128] : memref<256x1152xbf16, #tpu.memory_space<vmem>>, vector<256x128xbf16>
    %27 = arith.extf %26 : vector<256x128xbf16> to vector<256x128xf32>
    %28 = arith.addf %25, %27 : vector<256x128xf32>
    %c0_14 = arith.constant 0 : index
    %c256 = arith.constant 256 : index
    %29 = vector.load %arg5[%c0_14, %c256] : memref<256x1152xbf16, #tpu.memory_space<vmem>>, vector<256x128xbf16>
    %30 = arith.extf %29 : vector<256x128xbf16> to vector<256x128xf32>
    %31 = arith.addf %28, %30 : vector<256x128xf32>
    %c0_15 = arith.constant 0 : index
    %c384 = arith.constant 384 : index
    %32 = vector.load %arg5[%c0_15, %c384] : memref<256x1152xbf16, #tpu.memory_space<vmem>>, vector<256x128xbf16>
    %33 = arith.extf %32 : vector<256x128xbf16> to vector<256x128xf32>
    %34 = arith.addf %31, %33 : vector<256x128xf32>
    %c0_16 = arith.constant 0 : index
    %c512 = arith.constant 512 : index
    %35 = vector.load %arg5[%c0_16, %c512] : memref<256x1152xbf16, #tpu.memory_space<vmem>>, vector<256x128xbf16>
    %36 = arith.extf %35 : vector<256x128xbf16> to vector<256x128xf32>
    %37 = arith.addf %34, %36 : vector<256x128xf32>
    %c0_17 = arith.constant 0 : index
    %c640 = arith.constant 640 : index
    %38 = vector.load %arg5[%c0_17, %c640] : memref<256x1152xbf16, #tpu.memory_space<vmem>>, vector<256x128xbf16>
    %39 = arith.extf %38 : vector<256x128xbf16> to vector<256x128xf32>
    %40 = arith.addf %37, %39 : vector<256x128xf32>
    %c0_18 = arith.constant 0 : index
    %c768 = arith.constant 768 : index
    %41 = vector.load %arg5[%c0_18, %c768] : memref<256x1152xbf16, #tpu.memory_space<vmem>>, vector<256x128xbf16>
    %42 = arith.extf %41 : vector<256x128xbf16> to vector<256x128xf32>
    %43 = arith.addf %40, %42 : vector<256x128xf32>
    %c0_19 = arith.constant 0 : index
    %c896 = arith.constant 896 : index
    %44 = vector.load %arg5[%c0_19, %c896] : memref<256x1152xbf16, #tpu.memory_space<vmem>>, vector<256x128xbf16>
    %45 = arith.extf %44 : vector<256x128xbf16> to vector<256x128xf32>
    %46 = arith.addf %43, %45 : vector<256x128xf32>
    %c0_20 = arith.constant 0 : index
    %c1024 = arith.constant 1024 : index
    %47 = vector.load %arg5[%c0_20, %c1024] : memref<256x1152xbf16, #tpu.memory_space<vmem>>, vector<256x128xbf16>
    %48 = arith.extf %47 : vector<256x128xbf16> to vector<256x128xf32>
    %49 = arith.addf %46, %48 : vector<256x128xf32>
    %cst_21 = arith.constant 0.111111112 : f32
    %50 = vector.broadcast %cst_21 : f32 to vector<256x128xf32>
    %51 = arith.mulf %49, %50 : vector<256x128xf32>
    %c0_22 = arith.constant 0 : index
    %c128_23 = arith.constant 128 : index
    %52 = vector.load %arg6[%c0_22, %c128_23] : memref<256x256xf32, #tpu.memory_space<vmem>>, vector<256x128xf32>
    tpu.vector_store %arg6[%c0_22, %c128_23], %51 {strides = array<i32>} : memref<256x256xf32, #tpu.memory_space<vmem>>, vector<256x128xf32>,
    %cst_24 = arith.constant dense<0.000000e+00> : vector<128xf32>
    %53 = vector.multi_reduction <add>, %22, %cst_24 [0] : vector<256x128xf32> to vector<128xf32>
    %54 = vector.shape_cast %53 : vector<128xf32> to vector<1x128xf32>
    %c0_25 = arith.constant 0 : index
    %c0_26 = arith.constant 0 : index
    %55 = vector.load %arg7[%c0_25, %c0_26] : memref<8x128xf32, #tpu.memory_space<vmem>>, vector<1x128xf32>
    tpu.vector_store %arg7[%c0_25, %c0_26], %54 {strides = array<i32>} : memref<8x128xf32, #tpu.memory_space<vmem>>, vector<1x128xf32>,
    %56 = arith.mulf %22, %22 : vector<256x128xf32>
    %cst_27 = arith.constant dense<0.000000e+00> : vector<128xf32>
    %57 = vector.multi_reduction <add>, %56, %cst_27 [0] : vector<256x128xf32> to vector<128xf32>
    %58 = vector.shape_cast %57 : vector<128xf32> to vector<1x128xf32>
    %c1 = arith.constant 1 : index
    %c0_28 = arith.constant 0 : index
    %59 = vector.load %arg7[%c1, %c0_28] : memref<8x128xf32, #tpu.memory_space<vmem>>, vector<1x128xf32>
    tpu.vector_store %arg7[%c1, %c0_28], %58 {strides = array<i32>} : memref<8x128xf32, #tpu.memory_space<vmem>>, vector<1x128xf32>,
    %cst_29 = arith.constant 0.000000e+00 : f32
    %60 = vector.broadcast %cst_29 : f32 to vector<6x128xf32>
    %c2 = arith.constant 2 : index
    %c0_30 = arith.constant 0 : index
    %61 = vector.load %arg7[%c2, %c0_30] : memref<8x128xf32, #tpu.memory_space<vmem>>, vector<6x128xf32>
    tpu.vector_store %arg7[%c2, %c0_30], %60 {strides = array<i32>} : memref<8x128xf32, #tpu.memory_space<vmem>>, vector<6x128xf32>,
    return
  }
  func.func @transform_0(%arg0: i32) -> (i32, i32) {
    %c0_i32 = arith.constant 0 : i32
    %c0_i32_0 = arith.constant 0 : i32
    return %arg0, %c0_i32 : i32, i32
  }
  func.func @transform_1(%arg0: i32) -> (i32, i32) {
    %c0_i32 = arith.constant 0 : i32
    %c0_i32_0 = arith.constant 0 : i32
    %c0_i32_1 = arith.constant 0 : i32
    return %c0_i32, %c0_i32_0 : i32, i32
  }
  func.func @transform_2(%arg0: i32) -> (i32, i32) {
    %c0_i32 = arith.constant 0 : i32
    %c0_i32_0 = arith.constant 0 : i32
    %c0_i32_1 = arith.constant 0 : i32
    return %c0_i32, %c0_i32_0 : i32, i32
  }
  func.func @transform_3(%arg0: i32) -> (i32, i32) {
    %c0_i32 = arith.constant 0 : i32
    %c0_i32_0 = arith.constant 0 : i32
    %c0_i32_1 = arith.constant 0 : i32
    return %c0_i32, %c0_i32_0 : i32, i32
  }
  func.func @transform_4(%arg0: i32) -> (i32, i32) {
    %c0_i32 = arith.constant 0 : i32
    %c0_i32_0 = arith.constant 0 : i32
    return %arg0, %c0_i32 : i32, i32
  }
  func.func @transform_5(%arg0: i32) -> (i32, i32) {
    %c0_i32 = arith.constant 0 : i32
    %c0_i32_0 = arith.constant 0 : i32
    return %arg0, %c0_i32 : i32, i32
  }
  func.func @transform_6(%arg0: i32) -> (i32, i32) {
    %c0_i32 = arith.constant 0 : i32
    %c0_i32_0 = arith.constant 0 : i32
    return %arg0, %c0_i32 : i32, i32
  }
}

module attributes {stable_mosaic.version = 11 : i64} {
  func.func @_bn2_add_relu_kernel(%arg0: i32, %arg1: memref<256x256xf32, #tpu.memory_space<vmem>>, %arg2: memref<1x128xf32, #tpu.memory_space<vmem>>, %arg3: memref<1x128xf32, #tpu.memory_space<vmem>>, %arg4: memref<256x128xf32, #tpu.memory_space<vmem>>) attributes {dimension_semantics = [#tpu.dimension_semantics<parallel>], iteration_bounds = array<i64: 2>, scalar_prefetch = 0 : i64, scratch_operands = 0 : i64, tpu.core_type = #tpu.core_type<tc>, window_params = [{transform_indices = @transform_0, window_bounds = array<i64: 256, 256>}, {pipeline_mode = #tpu.pipeline_mode<synchronous>, transform_indices = @transform_1, window_bounds = array<i64: 1, 128>}, {pipeline_mode = #tpu.pipeline_mode<synchronous>, transform_indices = @transform_2, window_bounds = array<i64: 1, 128>}, {transform_indices = @transform_3, window_bounds = array<i64: 256, 128>}]} {
    %c0 = arith.constant 0 : index
    %c0_0 = arith.constant 0 : index
    %0 = vector.load %arg1[%c0, %c0_0] : memref<256x256xf32, #tpu.memory_space<vmem>>, vector<256x128xf32>
    %c0_1 = arith.constant 0 : index
    %c128 = arith.constant 128 : index
    %1 = vector.load %arg1[%c0_1, %c128] : memref<256x256xf32, #tpu.memory_space<vmem>>, vector<256x128xf32>
    %c0_2 = arith.constant 0 : index
    %c0_3 = arith.constant 0 : index
    %2 = vector.load %arg2[%c0_2, %c0_3] : memref<1x128xf32, #tpu.memory_space<vmem>>, vector<1x128xf32>
    %3 = vector.broadcast %2 : vector<1x128xf32> to vector<256x128xf32>
    %4 = arith.mulf %0, %3 : vector<256x128xf32>
    %c0_4 = arith.constant 0 : index
    %c0_5 = arith.constant 0 : index
    %5 = vector.load %arg3[%c0_4, %c0_5] : memref<1x128xf32, #tpu.memory_space<vmem>>, vector<1x128xf32>
    %6 = vector.broadcast %5 : vector<1x128xf32> to vector<256x128xf32>
    %7 = arith.addf %4, %6 : vector<256x128xf32>
    %8 = arith.addf %7, %1 : vector<256x128xf32>
    %cst = arith.constant 0.000000e+00 : f32
    %9 = vector.broadcast %cst : f32 to vector<256x128xf32>
    %10 = arith.maximumf %8, %9 : vector<256x128xf32>
    %c0_6 = arith.constant 0 : index
    %c0_7 = arith.constant 0 : index
    %11 = vector.load %arg4[%c0_6, %c0_7] : memref<256x128xf32, #tpu.memory_space<vmem>>, vector<256x128xf32>
    tpu.vector_store %arg4[%c0_6, %c0_7], %10 {strides = array<i32>} : memref<256x128xf32, #tpu.memory_space<vmem>>, vector<256x128xf32>,
    return
  }
  func.func @transform_0(%arg0: i32) -> (i32, i32) {
    %c0_i32 = arith.constant 0 : i32
    %c0_i32_0 = arith.constant 0 : i32
    return %arg0, %c0_i32 : i32, i32
  }
  func.func @transform_1(%arg0: i32) -> (i32, i32) {
    %c0_i32 = arith.constant 0 : i32
    %c0_i32_0 = arith.constant 0 : i32
    %c0_i32_1 = arith.constant 0 : i32
    return %c0_i32, %c0_i32_0 : i32, i32
  }
  func.func @transform_2(%arg0: i32) -> (i32, i32) {
    %c0_i32 = arith.constant 0 : i32
    %c0_i32_0 = arith.constant 0 : i32
    %c0_i32_1 = arith.constant 0 : i32
    return %c0_i32, %c0_i32_0 : i32, i32
  }
  func.func @transform_3(%arg0: i32) -> (i32, i32) {
    %c0_i32 = arith.constant 0 : i32
    %c0_i32_0 = arith.constant 0 : i32
    return %arg0, %c0_i32 : i32, i32
  }
}

</mosaic_0001>

<llo_original>
// kernel: residual_block_forward.3
$region0: #{residual_block_forward.3}
  #allocation0 [shape = 'u32[]', space=smem, size = 0x4, offset = 0x4, fixed_abs, tag = 'smem constant byte address 0x4 - core index']
  #allocation1 [shape = 'u32[144,128]{1,0:T(1,128)}', space=vmem, size = 0x12000, scoped, tag = 'internal scratch']
  %s0 = inlined_call_operand.vmem [shape: bf16[512,36], index: 0, kind: input, shape index: {}]
  %s1 = inlined_call_operand.vmem [shape: bf16[36,256], index: 1, kind: input, shape index: {}]
  %s2 = inlined_call_operand.vmem [shape: bf16[512,256], index: 2, kind: output, shape index: {0}]
  %s3 = inlined_call_operand.vmem [shape: f32[16,256], index: 3, kind: output, shape index: {1}]
  %4 = xla_tuple %s2, %s3
  %s5 = sld [smem:[#allocation0]]
  $region49: #{residual_block_forward.3} parent=0
    _
  %s7 = ssub.s32 1, %s5
  %s8 = scalar_select 0, %s7, %s5
  loop: start=0, step=1, limit=4
  $region2: #{residual_block_forward.3} parent=0 // loop_pre_header
    _
  $region3: #{residual_block_forward.3} parent=0 // loop_header
    %s10 = sphi 0, %s14
    %p11 = scmp.ge.s32.totalorder %s10, 4
    %s20 = sphi 0, %s22
    %s23 = sphi 0, %s20
    %s24 = sphi 0, %s23
    %s40 = sphi 0, %s24
    %s44 = sphi 0, %s44
    %s46 = sphi 0, %s44
    %s47 = sphi 0, %s46
    %s61 = sphi 0, %s47
    %s67 = sphi 0, %s69
    %s70 = sphi 0, %s67
    %s71 = sphi 0, %s70
    %s87 = sphi 0, %s71
    %s93 = sphi 0, %s95
    %s96 = sphi 0, %s93
    %s97 = sphi 0, %s96
    %s113 = sphi 0, %s97
  $region4: #{residual_block_forward.3} parent=0 // loop_header_branch
    %13 = sbr.rel (%p11) target = $region8
  $region5: #{residual_block_forward.3} parent=0 // loop_body
    %s15 = ssub.s32 %s10, 1
    %s16 = ssub.s32 %s10, 2
    %s17 = sadd.s32 %s10, 1
    %s18 = ssub.s32 %s10, %s17
    %p19 = scmp.eq.s32.totalorder %s18, 0
    %s21 = sadd.s32 %s20, 1
    %s22 = scalar_select %p19, %s20, %s21
    %p25 = pneg %p19
    %p26 = scmp.eq.s32.totalorder %s10, 1
    %p27 = por %p25, %p26
    %p28 = scmp.ne.s32.totalorder %s20, %s23
    %p29 = scmp.eq.s32.totalorder %s10, 0
    %p30 = por %p28, %p29
    %p31 = scmp.ne.s32.totalorder %s20, %s23
    %p32 = scmp.eq.s32.totalorder %s15, 1
    %p33 = por %p31, %p32
    %p34 = scmp.ne.s32.totalorder %s23, %s24
    %p35 = scmp.eq.s32.totalorder %s15, 0
    %p36 = por %p34, %p35
    %p37 = scmp.ne.s32.totalorder %s23, %s24
    %p38 = scmp.eq.s32.totalorder %s16, 1
    %p39 = por %p37, %p38
    %p41 = scmp.ne.s32.totalorder %s24, %s40
    %p42 = scmp.eq.s32.totalorder %s16, 0
    %p43 = por %p41, %p42
    %s45 = sadd.s32 %s44, 1
    %p48 = scmp.eq.s32.totalorder %s10, 1
    %p49 = scmp.ne.s32.totalorder %s44, %s46
    %p50 = scmp.eq.s32.totalorder %s10, 0
    %p51 = por %p49, %p50
    %p52 = scmp.ne.s32.totalorder %s44, %s46
    %p53 = scmp.eq.s32.totalorder %s15, 1
    %p54 = por %p52, %p53
    %p55 = scmp.ne.s32.totalorder %s46, %s47
    %p56 = scmp.eq.s32.totalorder %s15, 0
    %p57 = por %p55, %p56
    %p58 = scmp.ne.s32.totalorder %s46, %s47
    %p59 = scmp.eq.s32.totalorder %s16, 1
    %p60 = por %p58, %p59
    %p62 = scmp.ne.s32.totalorder %s47, %s61
    %p63 = scmp.eq.s32.totalorder %s16, 0
    %p64 = por %p62, %p63
    %s65 = ssub.s32 %s10, %s17
    %p66 = scmp.eq.s32.totalorder %s65, 0
    %s68 = sadd.s32 %s67, 1
    %s69 = scalar_select %p66, %s67, %s68
    %p72 = pneg %p66
    %p73 = scmp.eq.s32.totalorder %s10, 1
    %p74 = por %p72, %p73
    %p75 = scmp.ne.s32.totalorder %s67, %s70
    %p76 = scmp.eq.s32.totalorder %s10, 0
    %p77 = por %p75, %p76
    %p78 = scmp.ne.s32.totalorder %s67, %s70
    %p79 = scmp.eq.s32.totalorder %s15, 1
    %p80 = por %p78, %p79
    %p81 = scmp.ne.s32.totalorder %s70, %s71
    %p82 = scmp.eq.s32.totalorder %s15, 0
    %p83 = por %p81, %p82
    %p84 = scmp.ne.s32.totalorder %s70, %s71
    %p85 = scmp.eq.s32.totalorder %s16, 1
    %p86 = por %p84, %p85
    %p88 = scmp.ne.s32.totalorder %s71, %s87
    %p89 = scmp.eq.s32.totalorder %s16, 0
    %p90 = por %p88, %p89
    %s91 = ssub.s32 %s10, %s17
    %p92 = scmp.eq.s32.totalorder %s91, 0
    %s94 = sadd.s32 %s93, 1
    %s95 = scalar_select %p92, %s93, %s94
    %p98 = pneg %p92
    %p99 = scmp.eq.s32.totalorder %s10, 1
    %p100 = por %p98, %p99
    %p101 = scmp.ne.s32.totalorder %s93, %s96
    %p102 = scmp.eq.s32.totalorder %s10, 0
    %p103 = por %p101, %p102
    %p104 = scmp.ne.s32.totalorder %s93, %s96
    %p105 = scmp.eq.s32.totalorder %s15, 1
    %p106 = por %p104, %p105
    %p107 = scmp.ne.s32.totalorder %s96, %s97
    %p108 = scmp.eq.s32.totalorder %s15, 0
    %p109 = por %p107, %p108
    %p110 = scmp.ne.s32.totalorder %s96, %s97
    %p111 = scmp.eq.s32.totalorder %s16, 1
    %p112 = por %p110, %p111
    %p114 = scmp.ne.s32.totalorder %s97, %s113
    %p115 = scmp.eq.s32.totalorder %s16, 0
    %p116 = por %p114, %p115
    %p117 = scmp.le.s32.totalorder 1, %s10
    %p118 = scmp.lt.s32.totalorder %s10, 3
    %p119 = pnand %p117, %p118
    %p120 = pneg %p119
    // Predicated region
    $region9: #{residual_block_forward.3} parent=5 // pred_check
      _
    $region10: #{residual_block_forward.3} parent=5 // pred_check_branch
      %122 = sbr.rel (%p119) target = $region12
    $region11: #{residual_block_forward.3} parent=5 // pred_region
      %s123 = ssub.s32 %s10, 1
      // Predicated region
      $region13: #{residual_block_forward.3} parent=11 // pred_check
        %p124 = pneg %p57
      $region14: #{residual_block_forward.3} parent=11 // pred_check_branch
        %126 = sbr.rel (%p124) target = $region16
      $region15: #{residual_block_forward.3} parent=11 // pred_region
        _
      $region16: #{residual_block_forward.3} parent=11 // pred_fallthru
        _
    $region12: #{residual_block_forward.3} parent=5 // pred_fallthru
      _
    %p127 = scmp.lt.s32.totalorder %s10, 2
    // Predicated region
    $region17: #{residual_block_forward.3} parent=5 // pred_check
      %p128 = pneg %p127
    $region18: #{residual_block_forward.3} parent=5 // pred_check_branch
      %130 = sbr.rel (%p128) target = $region20
    $region19: #{residual_block_forward.3} parent=5 // pred_region
      // Predicated region
      $region21: #{residual_block_forward.3} parent=19 // pred_check
        %p131 = pneg %p30
      $region22: #{residual_block_forward.3} parent=19 // pred_check_branch
        %133 = sbr.rel (%p131) target = $region24
      $region23: #{residual_block_forward.3} parent=19 // pred_region
        %s134 = smul.u32 32, %s10
        %p135 = scmp.lt.s32.totalorder %s134, 63
        %s136 = scalar_select %p135, %s134, 63
        %s137 = smul.addr %s136, 4
        %s138 = scalar_lea.vmem %s0, %s137
        %s139 = smul.u32 32, %s10
      $region24: #{residual_block_forward.3} parent=19 // pred_fallthru
        _
    $region20: #{residual_block_forward.3} parent=5 // pred_fallthru
      _
    %p140 = scmp.le.s32.totalorder 1, %s10
    %p141 = scmp.lt.s32.totalorder %s10, 3
    %p142 = pnand %p140, %p141
    %p143 = pneg %p142
    // Predicated region
    $region25: #{residual_block_forward.3} parent=5 // pred_check
      _
    $region26: #{residual_block_forward.3} parent=5 // pred_check_branch
      %145 = sbr.rel (%p142) target = $region28
    $region27: #{residual_block_forward.3} parent=5 // pred_region
      %s146 = ssub.s32 %s10, 1
      %s147 = smul.u32 32, %s15
      %p148 = scmp.lt.s32.totalorder %s147, 63
      %s149 = scalar_select %p148, %s147, 63
      %s150 = smul.addr %s149, 4
      %s151 = scalar_lea.vmem %s0, %s150
      %p152 = pneg %p36
      %p153 = pneg %p33
      %p154 = pneg %p57
      %p155 = pneg %p54
      %p156 = pneg %p83
      %p157 = pneg %p80
      %s158 = smul.u32 32, %s15
      %p159 = scmp.lt.s32.totalorder %s158, 63
      %s160 = scalar_select %p159, %s158, 63
      %s161 = smul.addr %s160, 2
      %s162 = smul.addr %s161, 4
      %s163 = scalar_lea.vmem %s2, %s162
      %p164 = pneg %p109
      %p165 = pneg %p106
      %p166 = scmp.lt.s32.totalorder %s15, 1
      %s167 = scalar_select %p166, %s15, 1
      %s168 = smul.addr %s167, 2
      %s169 = smul.addr %s168, 8
      %s170 = scalar_lea.vmem %s3, %s169
      %s171 = smul.u32 32, %s15
      %p172 = scmp.lt.s32.totalorder %s171, 63
      %s173 = scalar_select %p172, %s171, 63
      %s174 = smul.addr %s173, 4
      %s175 = scalar_lea.vmem %s0, %s174
      %s176 = smul.u32 32, %s15
      %s177 = smul.u32 32, %s15
      %p178 = scmp.lt.s32.totalorder %s177, 63
      %s179 = scalar_select %p178, %s177, 63
      %s180 = smul.addr %s179, 2
      %s181 = smul.addr %s180, 4
      %s182 = scalar_lea.vmem %s2, %s181
      %s183 = smul.u32 32, %s15
      %p184 = scmp.lt.s32.totalorder %s15, 1
      %s185 = scalar_select %p184, %s15, 1
      %s186 = smul.addr %s185, 2
      %s187 = smul.addr %s186, 8
      %s188 = scalar_lea.vmem %s3, %s187
      %v190 = vld [vmem:[%s175] sm:$0xf]
      %v191 = vld [vmem:[%s175 + $0x4] sm:$0xf]
      %v192 = vld [vmem:[%s175 + $0x8] sm:$0xf]
      %v193 = vld [vmem:[%s175 + $0xc] sm:$0xf]
      %v194 = vld [vmem:[%s175 + $0x10] sm:$0xf]
      %v195 = vld [vmem:[%s175 + $0x14] sm:$0xf]
      %v196 = vld [vmem:[%s175 + $0x18] sm:$0xf]
      %v197 = vld [vmem:[%s175 + $0x1c] sm:$0xf]
      %v198 = vld [vmem:[%s175 + $0x20] sm:$0xf]
      %v199 = vld [vmem:[%s175 + $0x24] sm:$0xf]
      %v200 = vld [vmem:[%s175 + $0x28] sm:$0xf]
      %v201 = vld [vmem:[%s175 + $0x2c] sm:$0xf]
      %v202 = vld [vmem:[%s175 + $0x30] sm:$0xf]
      %v203 = vld [vmem:[%s175 + $0x34] sm:$0xf]
      %v204 = vld [vmem:[%s175 + $0x38] sm:$0xf]
      %v205 = vld [vmem:[%s175 + $0x3c] sm:$0xf]
      %v206 = vld [vmem:[%s175 + $0x40] sm:$0xf]
      %v207 = vld [vmem:[%s175 + $0x44] sm:$0xf]
      %v208 = vld [vmem:[%s175 + $0x48] sm:$0xf]
      %v209 = vld [vmem:[%s175 + $0x4c] sm:$0xf]
      %v210 = vld [vmem:[%s175 + $0x50] sm:$0xf]
      %v211 = vld [vmem:[%s175 + $0x54] sm:$0xf]
      %v212 = vld [vmem:[%s175 + $0x58] sm:$0xf]
      %v213 = vld [vmem:[%s175 + $0x5c] sm:$0xf]
      %v214 = vld [vmem:[%s175 + $0x60] sm:$0xf]
      %v215 = vld [vmem:[%s175 + $0x64] sm:$0xf]
      %v216 = vld [vmem:[%s175 + $0x68] sm:$0xf]
      %v217 = vld [vmem:[%s175 + $0x6c] sm:$0xf]
      %v218 = vld [vmem:[%s175 + $0x70] sm:$0xf]
      %v219 = vld [vmem:[%s175 + $0x74] sm:$0xf]
      %v220 = vld [vmem:[%s175 + $0x78] sm:$0xf]
      %v221 = vld [vmem:[%s175 + $0x7c] sm:$0xf]
      %v222 = vld [vmem:[%s1] sm:$0xff]
      %v223 = vld [vmem:[%s1 + $0x8] sm:$0xff]
      %v224 = vld [vmem:[%s1 + $0x10] sm:$0xff]
      %v225 = vld [vmem:[%s1 + $0x18] sm:$0xff]
      %v226 = vld [vmem:[%s1 + $0x20] sm:$0x33]
      %v259 = vunpack.c.l.b16 %v190
      %v260 = vunpack.c.l.b16 %v191
      %v261 = vunpack.c.l.b16 %v192
      %v262 = vunpack.c.l.b16 %v193
      %v263 = vunpack.c.l.b16 %v194
      %v264 = vunpack.c.l.b16 %v195
      %v265 = vunpack.c.l.b16 %v196
      %v266 = vunpack.c.l.b16 %v197
      %v267 = vunpack.c.l.b16 %v198
      %v268 = vunpack.c.l.b16 %v199
      %v269 = vunpack.c.l.b16 %v200
      %v270 = vunpack.c.l.b16 %v201
      %v271 = vunpack.c.l.b16 %v202
      %v272 = vunpack.c.l.b16 %v203
      %v273 = vunpack.c.l.b16 %v204
      %v274 = vunpack.c.l.b16 %v205
      %v275 = vunpack.c.l.b16 %v206
      %v276 = vunpack.c.l.b16 %v207
      %v277 = vunpack.c.l.b16 %v208
      %v278 = vunpack.c.l.b16 %v209
      %v279 = vunpack.c.l.b16 %v210
      %v280 = vunpack.c.l.b16 %v211
      %v281 = vunpack.c.l.b16 %v212
      %v282 = vunpack.c.l.b16 %v213
      %v283 = vunpack.c.l.b16 %v214
      %v284 = vunpack.c.l.b16 %v215
      %v285 = vunpack.c.l.b16 %v216
      %v286 = vunpack.c.l.b16 %v217
      %v287 = vunpack.c.l.b16 %v218
      %v288 = vunpack.c.l.b16 %v219
      %v289 = vunpack.c.l.b16 %v220
      %v290 = vunpack.c.l.b16 %v221
      %v291 = vpack.c.b16 %v260, %v259
      %v292 = vpack.c.b16 %v262, %v261
      %v293 = vpack.c.b16 %v264, %v263
      %v294 = vpack.c.b16 %v266, %v265
      %v295 = vpack.c.b16 %v268, %v267
      %v296 = vpack.c.b16 %v270, %v269
      %v297 = vpack.c.b16 %v272, %v271
      %v298 = vpack.c.b16 %v274, %v273
      %v299 = vpack.c.b16 %v276, %v275
      %v300 = vpack.c.b16 %v278, %v277
      %v301 = vpack.c.b16 %v280, %v279
      %v302 = vpack.c.b16 %v282, %v281
      %v303 = vpack.c.b16 %v284, %v283
      %v304 = vpack.c.b16 %v286, %v285
      %v305 = vpack.c.b16 %v288, %v287
      %v306 = vpack.c.b16 %v290, %v289
      %v312 = vunpack.c.l.b16 %v222
      %v313 = vunpack.c.h.b16 %v222
      %v314 = vunpack.c.l.b16 %v223
      %v315 = vunpack.c.h.b16 %v223
      %v316 = vunpack.c.l.b16 %v224
      %v317 = vunpack.c.h.b16 %v224
      %v318 = vunpack.c.l.b16 %v225
      %v319 = vunpack.c.h.b16 %v225
      %v320 = vunpack.c.l.b16 %v226
      %v321 = vunpack.c.h.b16 %v226
      %v322 = vpack.c.b16 %v314, %v312
      %v323 = vpack.c.b16 %v315, %v313
      %v324 = vpack.c.b16 %v318, %v316
      %v325 = vpack.c.b16 %v319, %v317
      %v326 = vpack.c.b16 %v320, %v320
      %v327 = vpack.c.b16 %v321, %v321
      %vm332 = vcmask 293888
      %v334 = vsel %vm332, %v291, 0
      %v337 = vsel %vm332, %v292, 0
      %v340 = vsel %vm332, %v293, 0
      %v343 = vsel %vm332, %v294, 0
      %v346 = vsel %vm332, %v295, 0
      %v349 = vsel %vm332, %v296, 0
      %v352 = vsel %vm332, %v297, 0
      %v355 = vsel %vm332, %v298, 0
      %v358 = vsel %vm332, %v299, 0
      %v361 = vsel %vm332, %v300, 0
      %v364 = vsel %vm332, %v301, 0
      %v367 = vsel %vm332, %v302, 0
      %v370 = vsel %vm332, %v303, 0
      %v373 = vsel %vm332, %v304, 0
      %v376 = vsel %vm332, %v305, 0
      %v379 = vsel %vm332, %v306, 0
      %vm381 = vcmask 1041408
      %v383 = vsel %vm381, %v326, 0
      %v386 = vsel %vm381, %v327, 0
      %388 = vmatprep.subr.bf16.mxu0 %v323
      %389 = vmatpush1.bf16.msra.mxu0 %v322
      %390 = vmatprep.subr.bf16.mxu0 %v325
      %391 = vmatpush1.bf16.msra.mxu0 %v324
      %392 = vmatprep.subr.bf16.mxu0 %v386
      %393 = vmatpush1.bf16.msra.mxu0 %v383
      %394 = vmatprep.subr.bf16.mxu0 0
      %395 = vmatpush1.bf16.msra.mxu0 0
      %396 = vmatprep.subr.bf16.mxu0 0
      %397 = vmatpush1.bf16.msra.mxu0 0
      %398 = vmatprep.subr.bf16.mxu0 0
      %399 = vmatpush1.bf16.msra.mxu0 0
      %400 = vmatprep.subr.bf16.mxu0 0
      %401 = vmatpush1.bf16.msra.mxu0 0
      %402 = vmatprep.subr.bf16.mxu0 0
      %403 = vmatpush1.bf16.msra.mxu0 0
      %404 = vmatprep.subr.bf16.mxu0 0
      %405 = vmatpush1.bf16.msra.mxu0 0
      %406 = vmatprep.subr.bf16.mxu0 0
      %407 = vmatpush1.bf16.msra.mxu0 0
      %408 = vmatprep.subr.bf16.mxu0 0
      %409 = vmatpush1.bf16.msra.mxu0 0
      %410 = vmatprep.subr.bf16.mxu0 0
      %411 = vmatpush1.bf16.msra.mxu0 0
      %412 = vmatprep.subr.bf16.mxu0 0
      %413 = vmatpush1.bf16.msra.mxu0 0
      %414 = vmatprep.subr.bf16.mxu0 0
      %415 = vmatpush1.bf16.msra.mxu0 0
      %416 = vmatprep.subr.bf16.mxu0 0
      %417 = vmatpush1.bf16.msra.mxu0 0
      %418 = vmatprep.subr.bf16.mxu0 0
      %419 = vmatpush1.bf16.msra.mxu0 0
      %420 = vmatprep.mubr.bf16.mxu0 0
      %421 = vmatmul.mubr.bf16.gmra.mrb[0].mxu0 %v334
      %v422 = vpop.f32.mrb[0].mxu0
      %v423 = vadd.f32 0.0, %v422
      %v424 = vpop.f32.mrb[0].mxu0
      %v425 = vadd.f32 0.0, %v424
      %v426 = vpop.f32.mrb[0].mxu0
      %v427 = vadd.f32 0.0, %v426
      %v428 = vpop.f32.mrb[0].mxu0
      %v429 = vadd.f32 0.0, %v428
      %430 = vmatprep.mubr.bf16.mxu0 0
      %431 = vmatmul.mubr.bf16.gmra.mrb[0].mxu0 %v337
      %v432 = vpop.f32.mrb[0].mxu0
      %v433 = vadd.f32 0.0, %v432
      %v434 = vpop.f32.mrb[0].mxu0
      %v435 = vadd.f32 0.0, %v434
      %v436 = vpop.f32.mrb[0].mxu0
      %v437 = vadd.f32 0.0, %v436
      %v438 = vpop.f32.mrb[0].mxu0
      %v439 = vadd.f32 0.0, %v438
      %440 = vmatprep.mubr.bf16.mxu0 0
      %441 = vmatmul.mubr.bf16.gmra.mrb[0].mxu0 %v340
      %v442 = vpop.f32.mrb[0].mxu0
      %v443 = vadd.f32 0.0, %v442
      %v444 = vpop.f32.mrb[0].mxu0
      %v445 = vadd.f32 0.0, %v444
      %v446 = vpop.f32.mrb[0].mxu0
      %v447 = vadd.f32 0.0, %v446
      %v448 = vpop.f32.mrb[0].mxu0
      %v449 = vadd.f32 0.0, %v448
      %450 = vmatprep.mubr.bf16.mxu0 0
      %451 = vmatmul.mubr.bf16.gmra.mrb[0].mxu0 %v343
      %v452 = vpop.f32.mrb[0].mxu0
      %v453 = vadd.f32 0.0, %v452
      %v454 = vpop.f32.mrb[0].mxu0
      %v455 = vadd.f32 0.0, %v454
      %v456 = vpop.f32.mrb[0].mxu0
      %v457 = vadd.f32 0.0, %v456
      %v458 = vpop.f32.mrb[0].mxu0
      %v459 = vadd.f32 0.0, %v458
      %460 = vmatprep.mubr.bf16.mxu0 0
      %461 = vmatmul.mubr.bf16.gmra.mrb[0].mxu0 %v346
      %v462 = vpop.f32.mrb[0].mxu0
      %v463 = vadd.f32 0.0, %v462
      %v464 = vpop.f32.mrb[0].mxu0
      %v465 = vadd.f32 0.0, %v464
      %v466 = vpop.f32.mrb[0].mxu0
      %v467 = vadd.f32 0.0, %v466
      %v468 = vpop.f32.mrb[0].mxu0
      %v469 = vadd.f32 0.0, %v468
      %470 = vmatprep.mubr.bf16.mxu0 0
      %471 = vmatmul.mubr.bf16.gmra.mrb[0].mxu0 %v349
      %v472 = vpop.f32.mrb[0].mxu0
      %v473 = vadd.f32 0.0, %v472
      %v474 = vpop.f32.mrb[0].mxu0
      %v475 = vadd.f32 0.0, %v474
      %v476 = vpop.f32.mrb[0].mxu0
      %v477 = vadd.f32 0.0, %v476
      %v478 = vpop.f32.mrb[0].mxu0
      %v479 = vadd.f32 0.0, %v478
      %480 = vmatprep.mubr.bf16.mxu0 0
      %481 = vmatmul.mubr.bf16.gmra.mrb[0].mxu0 %v352
      %v482 = vpop.f32.mrb[0].mxu0
      %v483 = vadd.f32 0.0, %v482
      %v484 = vpop.f32.mrb[0].mxu0
      %v485 = vadd.f32 0.0, %v484
      %v486 = vpop.f32.mrb[0].mxu0
      %v487 = vadd.f32 0.0, %v486
      %v488 = vpop.f32.mrb[0].mxu0
      %v489 = vadd.f32 0.0, %v488
      %490 = vmatprep.mubr.bf16.mxu0 0
      %491 = vmatmul.mubr.bf16.gmra.mrb[0].mxu0 %v355
      %v492 = vpop.f32.mrb[0].mxu0
      %v493 = vadd.f32 0.0, %v492
      %v494 = vpop.f32.mrb[0].mxu0
      %v495 = vadd.f32 0.0, %v494
      %v496 = vpop.f32.mrb[0].mxu0
      %v497 = vadd.f32 0.0, %v496
      %v498 = vpop.f32.mrb[0].mxu0
      %v499 = vadd.f32 0.0, %v498
      %500 = vmatprep.mubr.bf16.mxu0 0
      %501 = vmatmul.mubr.bf16.gmra.mrb[0].mxu0 %v358
      %v502 = vpop.f32.mrb[0].mxu0
      %v503 = vadd.f32 0.0, %v502
      %v504 = vpop.f32.mrb[0].mxu0
      %v505 = vadd.f32 0.0, %v504
      %v506 = vpop.f32.mrb[0].mxu0
      %v507 = vadd.f32 0.0, %v506
      %v508 = vpop.f32.mrb[0].mxu0
      %v509 = vadd.f32 0.0, %v508
      %510 = vmatprep.mubr.bf16.mxu0 0
      %511 = vmatmul.mubr.bf16.gmra.mrb[0].mxu0 %v361
      %v512 = vpop.f32.mrb[0].mxu0
      %v513 = vadd.f32 0.0, %v512
      %v514 = vpop.f32.mrb[0].mxu0
      %v515 = vadd.f32 0.0, %v514
      %v516 = vpop.f32.mrb[0].mxu0
      %v517 = vadd.f32 0.0, %v516
      %v518 = vpop.f32.mrb[0].mxu0
      %v519 = vadd.f32 0.0, %v518
      %520 = vmatprep.mubr.bf16.mxu0 0
      %521 = vmatmul.mubr.bf16.gmra.mrb[0].mxu0 %v364
      %v522 = vpop.f32.mrb[0].mxu0
      %v523 = vadd.f32 0.0, %v522
      %v524 = vpop.f32.mrb[0].mxu0
      %v525 = vadd.f32 0.0, %v524
      %v526 = vpop.f32.mrb[0].mxu0
      %v527 = vadd.f32 0.0, %v526
      %v528 = vpop.f32.mrb[0].mxu0
      %v529 = vadd.f32 0.0, %v528
      %530 = vmatprep.mubr.bf16.mxu0 0
      %531 = vmatmul.mubr.bf16.gmra.mrb[0].mxu0 %v367
      %v532 = vpop.f32.mrb[0].mxu0
      %v533 = vadd.f32 0.0, %v532
      %v534 = vpop.f32.mrb[0].mxu0
      %v535 = vadd.f32 0.0, %v534
      %v536 = vpop.f32.mrb[0].mxu0
      %v537 = vadd.f32 0.0, %v536
      %v538 = vpop.f32.mrb[0].mxu0
      %v539 = vadd.f32 0.0, %v538
      %540 = vmatprep.mubr.bf16.mxu0 0
      %541 = vmatmul.mubr.bf16.gmra.mrb[0].mxu0 %v370
      %v542 = vpop.f32.mrb[0].mxu0
      %v543 = vadd.f32 0.0, %v542
      %v544 = vpop.f32.mrb[0].mxu0
      %v545 = vadd.f32 0.0, %v544
      %v546 = vpop.f32.mrb[0].mxu0
      %v547 = vadd.f32 0.0, %v546
      %v548 = vpop.f32.mrb[0].mxu0
      %v549 = vadd.f32 0.0, %v548
      %550 = vmatprep.mubr.bf16.mxu0 0
      %551 = vmatmul.mubr.bf16.gmra.mrb[0].mxu0 %v373
      %v552 = vpop.f32.mrb[0].mxu0
      %v553 = vadd.f32 0.0, %v552
      %v554 = vpop.f32.mrb[0].mxu0
      %v555 = vadd.f32 0.0, %v554
      %v556 = vpop.f32.mrb[0].mxu0
      %v557 = vadd.f32 0.0, %v556
      %v558 = vpop.f32.mrb[0].mxu0
      %v559 = vadd.f32 0.0, %v558
      %560 = vmatprep.mubr.bf16.mxu0 0
      %561 = vmatmul.mubr.bf16.gmra.mrb[0].mxu0 %v376
      %v562 = vpop.f32.mrb[0].mxu0
      %v563 = vadd.f32 0.0, %v562
      %v564 = vpop.f32.mrb[0].mxu0
      %v565 = vadd.f32 0.0, %v564
      %v566 = vpop.f32.mrb[0].mxu0
      %v567 = vadd.f32 0.0, %v566
      %v568 = vpop.f32.mrb[0].mxu0
      %v569 = vadd.f32 0.0, %v568
      %570 = vmatprep.mubr.bf16.mxu0 0
      %571 = vmatmul.mubr.bf16.gmra.mrb[0].mxu0 %v379
      %v572 = vpop.f32.mrb[0].mxu0
      %v573 = vadd.f32 0.0, %v572
      %v574 = vpop.f32.mrb[0].mxu0
      %v575 = vadd.f32 0.0, %v574
      %v576 = vpop.f32.mrb[0].mxu0
      %v577 = vadd.f32 0.0, %v576
      %v578 = vpop.f32.mrb[0].mxu0
      %v579 = vadd.f32 0.0, %v578
      %580 = vdwg.mxu0
      %v581 = vpack.c.bf16 %v427, %v423
      %v582 = vpack.c.bf16 %v429, %v425
      %v583 = vpack.c.bf16 %v437, %v433
      %v584 = vpack.c.bf16 %v439, %v435
      %v585 = vpack.c.bf16 %v447, %v443
      %v586 = vpack.c.bf16 %v449, %v445
      %v587 = vpack.c.bf16 %v457, %v453
      %v588 = vpack.c.bf16 %v459, %v455
      %v589 = vpack.c.bf16 %v467, %v463
      %v590 = vpack.c.bf16 %v469, %v465
      %v591 = vpack.c.bf16 %v477, %v473
      %v592 = vpack.c.bf16 %v479, %v475
      %v593 = vpack.c.bf16 %v487, %v483
      %v594 = vpack.c.bf16 %v489, %v485
      %v595 = vpack.c.bf16 %v497, %v493
      %v596 = vpack.c.bf16 %v499, %v495
      %v597 = vpack.c.bf16 %v507, %v503
      %v598 = vpack.c.bf16 %v509, %v505
      %v599 = vpack.c.bf16 %v517, %v513
      %v600 = vpack.c.bf16 %v519, %v515
      %v601 = vpack.c.bf16 %v527, %v523
      %v602 = vpack.c.bf16 %v529, %v525
      %v603 = vpack.c.bf16 %v537, %v533
      %v604 = vpack.c.bf16 %v539, %v535
      %v605 = vpack.c.bf16 %v547, %v543
      %v606 = vpack.c.bf16 %v549, %v545
      %v607 = vpack.c.bf16 %v557, %v553
      %v608 = vpack.c.bf16 %v559, %v555
      %v609 = vpack.c.bf16 %v567, %v563
      %v610 = vpack.c.bf16 %v569, %v565
      %v611 = vpack.c.bf16 %v577, %v573
      %v612 = vpack.c.bf16 %v579, %v575
      %v645 = vunpack.c.l.b16 %v581
      %v646 = vunpack.c.l.b16 %v582
      %v647 = vunpack.c.h.b16 %v581
      %v648 = vunpack.c.h.b16 %v582
      %v649 = vunpack.c.l.b16 %v583
      %v650 = vunpack.c.l.b16 %v584
      %v651 = vunpack.c.h.b16 %v583
      %v652 = vunpack.c.h.b16 %v584
      %v653 = vunpack.c.l.b16 %v585
      %v654 = vunpack.c.l.b16 %v586
      %v655 = vunpack.c.h.b16 %v585
      %v656 = vunpack.c.h.b16 %v586
      %v657 = vunpack.c.l.b16 %v587
      %v658 = vunpack.c.l.b16 %v588
      %v659 = vunpack.c.h.b16 %v587
      %v660 = vunpack.c.h.b16 %v588
      %v661 = vunpack.c.l.b16 %v589
      %v662 = vunpack.c.l.b16 %v590
      %v663 = vunpack.c.h.b16 %v589
      %v664 = vunpack.c.h.b16 %v590
      %v665 = vunpack.c.l.b16 %v591
      %v666 = vunpack.c.l.b16 %v592
      %v667 = vunpack.c.h.b16 %v591
      %v668 = vunpack.c.h.b16 %v592
      %v669 = vunpack.c.l.b16 %v593
      %v670 = vunpack.c.l.b16 %v594
      %v671 = vunpack.c.h.b16 %v593
      %v672 = vunpack.c.h.b16 %v594
      %v673 = vunpack.c.l.b16 %v595
      %v674 = vunpack.c.l.b16 %v596
      %v675 = vunpack.c.h.b16 %v595
      %v676 = vunpack.c.h.b16 %v596
      %v677 = vunpack.c.l.b16 %v597
      %v678 = vunpack.c.l.b16 %v598
      %v679 = vunpack.c.h.b16 %v597
      %v680 = vunpack.c.h.b16 %v598
      %v681 = vunpack.c.l.b16 %v599
      %v682 = vunpack.c.l.b16 %v600
      %v683 = vunpack.c.h.b16 %v599
      %v684 = vunpack.c.h.b16 %v600
      %v685 = vunpack.c.l.b16 %v601
      %v686 = vunpack.c.l.b16 %v602
      %v687 = vunpack.c.h.b16 %v601
      %v688 = vunpack.c.h.b16 %v602
      %v689 = vunpack.c.l.b16 %v603
      %v690 = vunpack.c.l.b16 %v604
      %v691 = vunpack.c.h.b16 %v603
      %v692 = vunpack.c.h.b16 %v604
      %v693 = vunpack.c.l.b16 %v605
      %v694 = vunpack.c.l.b16 %v606
      %v695 = vunpack.c.h.b16 %v605
      %v696 = vunpack.c.h.b16 %v606
      %v697 = vunpack.c.l.b16 %v607
      %v698 = vunpack.c.l.b16 %v608
      %v699 = vunpack.c.h.b16 %v607
      %v700 = vunpack.c.h.b16 %v608
      %v701 = vunpack.c.l.b16 %v609
      %v702 = vunpack.c.l.b16 %v610
      %v703 = vunpack.c.h.b16 %v609
      %v704 = vunpack.c.h.b16 %v610
      %v705 = vunpack.c.l.b16 %v611
      %v706 = vunpack.c.l.b16 %v612
      %v707 = vunpack.c.h.b16 %v611
      %v708 = vunpack.c.h.b16 %v612
      %v709 = vpack.c.b16 %v646, %v645
      %v710 = vpack.c.b16 %v648, %v647
      %v711 = vpack.c.b16 %v650, %v649
      %v712 = vpack.c.b16 %v652, %v651
      %v713 = vpack.c.b16 %v654, %v653
      %v714 = vpack.c.b16 %v656, %v655
      %v715 = vpack.c.b16 %v658, %v657
      %v716 = vpack.c.b16 %v660, %v659
      %v717 = vpack.c.b16 %v662, %v661
      %v718 = vpack.c.b16 %v664, %v663
      %v719 = vpack.c.b16 %v666, %v665
      %v720 = vpack.c.b16 %v668, %v667
      %v721 = vpack.c.b16 %v670, %v669
      %v722 = vpack.c.b16 %v672, %v671
      %v723 = vpack.c.b16 %v674, %v673
      %v724 = vpack.c.b16 %v676, %v675
      %v725 = vpack.c.b16 %v678, %v677
      %v726 = vpack.c.b16 %v680, %v679
      %v727 = vpack.c.b16 %v682, %v681
      %v728 = vpack.c.b16 %v684, %v683
      %v729 = vpack.c.b16 %v686, %v685
      %v730 = vpack.c.b16 %v688, %v687
      %v731 = vpack.c.b16 %v690, %v689
      %v732 = vpack.c.b16 %v692, %v691
      %v733 = vpack.c.b16 %v694, %v693
      %v734 = vpack.c.b16 %v696, %v695
      %v735 = vpack.c.b16 %v698, %v697
      %v736 = vpack.c.b16 %v700, %v699
      %v737 = vpack.c.b16 %v702, %v701
      %v738 = vpack.c.b16 %v704, %v703
      %v739 = vpack.c.b16 %v706, %v705
      %v740 = vpack.c.b16 %v708, %v707
      %773 = vst [vmem:[%s182] sm:$0xff] %v709
      %774 = vst [vmem:[%s182 + $0x8] sm:$0xff] %v710
      %775 = vst [vmem:[%s182 + $0x10] sm:$0xff] %v711
      %776 = vst [vmem:[%s182 + $0x18] sm:$0xff] %v712
      %777 = vst [vmem:[%s182 + $0x20] sm:$0xff] %v713
      %778 = vst [vmem:[%s182 + $0x28] sm:$0xff] %v714
      %779 = vst [vmem:[%s182 + $0x30] sm:$0xff] %v715
      %780 = vst [vmem:[%s182 + $0x38] sm:$0xff] %v716
      %781 = vst [vmem:[%s182 + $0x40] sm:$0xff] %v717
      %782 = vst [vmem:[%s182 + $0x48] sm:$0xff] %v718
      %783 = vst [vmem:[%s182 + $0x50] sm:$0xff] %v719
      %784 = vst [vmem:[%s182 + $0x58] sm:$0xff] %v720
      %785 = vst [vmem:[%s182 + $0x60] sm:$0xff] %v721
      %786 = vst [vmem:[%s182 + $0x68] sm:$0xff] %v722
      %787 = vst [vmem:[%s182 + $0x70] sm:$0xff] %v723
      %788 = vst [vmem:[%s182 + $0x78] sm:$0xff] %v724
      %789 = vst [vmem:[%s182 + $0x80] sm:$0xff] %v725
      %790 = vst [vmem:[%s182 + $0x88] sm:$0xff] %v726
      %791 = vst [vmem:[%s182 + $0x90] sm:$0xff] %v727
      %792 = vst [vmem:[%s182 + $0x98] sm:$0xff] %v728
      %793 = vst [vmem:[%s182 + $0xa0] sm:$0xff] %v729
      %794 = vst [vmem:[%s182 + $0xa8] sm:$0xff] %v730
      %795 = vst [vmem:[%s182 + $0xb0] sm:$0xff] %v731
      %796 = vst [vmem:[%s182 + $0xb8] sm:$0xff] %v732
      %797 = vst [vmem:[%s182 + $0xc0] sm:$0xff] %v733
      %798 = vst [vmem:[%s182 + $0xc8] sm:$0xff] %v734
      %799 = vst [vmem:[%s182 + $0xd0] sm:$0xff] %v735
      %800 = vst [vmem:[%s182 + $0xd8] sm:$0xff] %v736
      %801 = vst [vmem:[%s182 + $0xe0] sm:$0xff] %v737
      %802 = vst [vmem:[%s182 + $0xe8] sm:$0xff] %v738
      %803 = vst [vmem:[%s182 + $0xf0] sm:$0xff] %v739
      %804 = vst [vmem:[%s182 + $0xf8] sm:$0xff] %v740
      %v805 = vadd.f32 %v423, %v427
      %v806 = vadd.f32 %v805, %v433
      %v807 = vadd.f32 %v806, %v437
      %v808 = vadd.f32 %v807, %v443
      %v809 = vadd.f32 %v808, %v447
      %v810 = vadd.f32 %v809, %v453
      %v811 = vadd.f32 %v810, %v457
      %v812 = vadd.f32 %v811, %v463
      %v813 = vadd.f32 %v812, %v467
      %v814 = vadd.f32 %v813, %v473
      %v815 = vadd.f32 %v814, %v477
      %v816 = vadd.f32 %v815, %v483
      %v817 = vadd.f32 %v816, %v487
      %v818 = vadd.f32 %v817, %v493
      %v819 = vadd.f32 %v818, %v497
      %v820 = vadd.f32 %v819, %v503
      %v821 = vadd.f32 %v820, %v507
      %v822 = vadd.f32 %v821, %v513
      %v823 = vadd.f32 %v822, %v517
      %v824 = vadd.f32 %v823, %v523
      %v825 = vadd.f32 %v824, %v527
      %v826 = vadd.f32 %v825, %v533
      %v827 = vadd.f32 %v826, %v537
      %v828 = vadd.f32 %v827, %v543
      %v829 = vadd.f32 %v828, %v547
      %v830 = vadd.f32 %v829, %v553
      %v831 = vadd.f32 %v830, %v557
      %v832 = vadd.f32 %v831, %v563
      %v833 = vadd.f32 %v832, %v567
      %v834 = vadd.f32 %v833, %v573
      %v835 = vadd.f32 %v834, %v577
      %v836 = vrot.slane %v835, 4
      %v837 = vadd.f32 %v835, %v836
      %v838 = vrot.slane %v837, 2
      %v839 = vadd.f32 %v837, %v838
      %v840 = vrot.slane %v839, 1
      %v841 = vadd.f32 %v839, %v840
      %v842 = vadd.f32 %v425, %v429
      %v843 = vadd.f32 %v842, %v435
      %v844 = vadd.f32 %v843, %v439
      %v845 = vadd.f32 %v844, %v445
      %v846 = vadd.f32 %v845, %v449
      %v847 = vadd.f32 %v846, %v455
      %v848 = vadd.f32 %v847, %v459
      %v849 = vadd.f32 %v848, %v465
      %v850 = vadd.f32 %v849, %v469
      %v851 = vadd.f32 %v850, %v475
      %v852 = vadd.f32 %v851, %v479
      %v853 = vadd.f32 %v852, %v485
      %v854 = vadd.f32 %v853, %v489
      %v855 = vadd.f32 %v854, %v495
      %v856 = vadd.f32 %v855, %v499
      %v857 = vadd.f32 %v856, %v505
      %v858 = vadd.f32 %v857, %v509
      %v859 = vadd.f32 %v858, %v515
      %v860 = vadd.f32 %v859, %v519
      %v861 = vadd.f32 %v860, %v525
      %v862 = vadd.f32 %v861, %v529
      %v863 = vadd.f32 %v862, %v535
      %v864 = vadd.f32 %v863, %v539
      %v865 = vadd.f32 %v864, %v545
      %v866 = vadd.f32 %v865, %v549
      %v867 = vadd.f32 %v866, %v555
      %v868 = vadd.f32 %v867, %v559
      %v869 = vadd.f32 %v868, %v565
      %v870 = vadd.f32 %v869, %v569
      %v871 = vadd.f32 %v870, %v575
      %v872 = vadd.f32 %v871, %v579
      %v873 = vrot.slane %v872, 4
      %v874 = vadd.f32 %v872, %v873
      %v875 = vrot.slane %v874, 2
      %v876 = vadd.f32 %v874, %v875
      %v877 = vrot.slane %v876, 1
      %v878 = vadd.f32 %v876, %v877
      %v881 = vcombine.low %v841, %v878
      %v883 = vunpack.c.l.s4 1966171168
      %v884 = vunpack.c.0.s8 %v883
      %v885 = vlaneseq
      %v886 = vshrl.u32 %v885, 7
      %v887 = vsub.s32 %v884, %v886
      %v888 = vrot.slane %v881, %v887
      %v890 = vunpack.c.l.s4 1966171168
      %v891 = vunpack.c.0.s8 %v890
      %v892 = vlaneseq
      %v893 = vshrl.u32 %v892, 7
      %v894 = vsub.s32 %v891, %v893
      %v895 = vrot.slane %v888, %v894
      %v897 = vlaneseq
      %vm898 = vcmp.ge.s32.totalorder %v897, 0
      %vm899 = vcmp.lt.s32.totalorder %v897, 256
      %vm900 = vmand %vm898, %vm899
      %901 = vst.msk [vmem:[%s188] ss:$8 sm:$0x3] %vm900, %v895
      %902 = vst.msk [vmem:[%s188] ss:$8 sm:$0x0] %vm900, %v895
      %v903 = vmul.f32 %v423, %v423
      %v904 = vmul.f32 %v425, %v425
      %v905 = vmul.f32 %v427, %v427
      %v906 = vmul.f32 %v429, %v429
      %v907 = vmul.f32 %v433, %v433
      %v908 = vmul.f32 %v435, %v435
      %v909 = vmul.f32 %v437, %v437
      %v910 = vmul.f32 %v439, %v439
      %v911 = vmul.f32 %v443, %v443
      %v912 = vmul.f32 %v445, %v445
      %v913 = vmul.f32 %v447, %v447
      %v914 = vmul.f32 %v449, %v449
      %v915 = vmul.f32 %v453, %v453
      %v916 = vmul.f32 %v455, %v455
      %v917 = vmul.f32 %v457, %v457
      %v918 = vmul.f32 %v459, %v459
      %v919 = vmul.f32 %v463, %v463
      %v920 = vmul.f32 %v465, %v465
      %v921 = vmul.f32 %v467, %v467
      %v922 = vmul.f32 %v469, %v469
      %v923 = vmul.f32 %v473, %v473
      %v924 = vmul.f32 %v475, %v475
      %v925 = vmul.f32 %v477, %v477
      %v926 = vmul.f32 %v479, %v479
      %v927 = vmul.f32 %v483, %v483
      %v928 = vmul.f32 %v485, %v485
      %v929 = vmul.f32 %v487, %v487
      %v930 = vmul.f32 %v489, %v489
      %v931 = vmul.f32 %v493, %v493
      %v932 = vmul.f32 %v495, %v495
      %v933 = vmul.f32 %v497, %v497
      %v934 = vmul.f32 %v499, %v499
      %v935 = vmul.f32 %v503, %v503
      %v936 = vmul.f32 %v505, %v505
      %v937 = vmul.f32 %v507, %v507
      %v938 = vmul.f32 %v509, %v509
      %v939 = vmul.f32 %v513, %v513
      %v940 = vmul.f32 %v515, %v515
      %v941 = vmul.f32 %v517, %v517
      %v942 = vmul.f32 %v519, %v519
      %v943 = vmul.f32 %v523, %v523
      %v944 = vmul.f32 %v525, %v525
      %v945 = vmul.f32 %v527, %v527
      %v946 = vmul.f32 %v529, %v529
      %v947 = vmul.f32 %v533, %v533
      %v948 = vmul.f32 %v535, %v535
      %v949 = vmul.f32 %v537, %v537
      %v950 = vmul.f32 %v539, %v539
      %v951 = vmul.f32 %v543, %v543
      %v952 = vmul.f32 %v545, %v545
      %v953 = vmul.f32 %v547, %v547
      %v954 = vmul.f32 %v549, %v549
      %v955 = vmul.f32 %v553, %v553
      %v956 = vmul.f32 %v555, %v555
      %v957 = vmul.f32 %v557, %v557
      %v958 = vmul.f32 %v559, %v559
      %v959 = vmul.f32 %v563, %v563
      %v960 = vmul.f32 %v565, %v565
      %v961 = vmul.f32 %v567, %v567
      %v962 = vmul.f32 %v569, %v569
      %v963 = vmul.f32 %v573, %v573
      %v964 = vmul.f32 %v575, %v575
      %v965 = vmul.f32 %v577, %v577
      %v966 = vmul.f32 %v579, %v579
      %v967 = vadd.f32 %v903, %v905
      %v968 = vadd.f32 %v967, %v907
      %v969 = vadd.f32 %v968, %v909
      %v970 = vadd.f32 %v969, %v911
      %v971 = vadd.f32 %v970, %v913
      %v972 = vadd.f32 %v971, %v915
      %v973 = vadd.f32 %v972, %v917
      %v974 = vadd.f32 %v973, %v919
      %v975 = vadd.f32 %v974, %v921
      %v976 = vadd.f32 %v975, %v923
      %v977 = vadd.f32 %v976, %v925
      %v978 = vadd.f32 %v977, %v927
      %v979 = vadd.f32 %v978, %v929
      %v980 = vadd.f32 %v979, %v931
      %v981 = vadd.f32 %v980, %v933
      %v982 = vadd.f32 %v981, %v935
      %v983 = vadd.f32 %v982, %v937
      %v984 = vadd.f32 %v983, %v939
      %v985 = vadd.f32 %v984, %v941
      %v986 = vadd.f32 %v985, %v943
      %v987 = vadd.f32 %v986, %v945
      %v988 = vadd.f32 %v987, %v947
      %v989 = vadd.f32 %v988, %v949
      %v990 = vadd.f32 %v989, %v951
      %v991 = vadd.f32 %v990, %v953
      %v992 = vadd.f32 %v991, %v955
      %v993 = vadd.f32 %v992, %v957
      %v994 = vadd.f32 %v993, %v959
      %v995 = vadd.f32 %v994, %v961
      %v996 = vadd.f32 %v995, %v963
      %v997 = vadd.f32 %v996, %v965
      %v998 = vrot.slane %v997, 4
      %v999 = vadd.f32 %v997, %v998
      %v1000 = vrot.slane %v999, 2
      %v1001 = vadd.f32 %v999, %v1000
      %v1002 = vrot.slane %v1001, 1
      %v1003 = vadd.f32 %v1001, %v1002
      %v1004 = vadd.f32 %v904, %v906
      %v1005 = vadd.f32 %v1004, %v908
      %v1006 = vadd.f32 %v1005, %v910
      %v1007 = vadd.f32 %v1006, %v912
      %v1008 = vadd.f32 %v1007, %v914
      %v1009 = vadd.f32 %v1008, %v916
      %v1010 = vadd.f32 %v1009, %v918
      %v1011 = vadd.f32 %v1010, %v920
      %v1012 = vadd.f32 %v1011, %v922
      %v1013 = vadd.f32 %v1012, %v924
      %v1014 = vadd.f32 %v1013, %v926
      %v1015 = vadd.f32 %v1014, %v928
      %v1016 = vadd.f32 %v1015, %v930
      %v1017 = vadd.f32 %v1016, %v932
      %v1018 = vadd.f32 %v1017, %v934
      %v1019 = vadd.f32 %v1018, %v936
      %v1020 = vadd.f32 %v1019, %v938
      %v1021 = vadd.f32 %v1020, %v940
      %v1022 = vadd.f32 %v1021, %v942
      %v1023 = vadd.f32 %v1022, %v944
      %v1024 = vadd.f32 %v1023, %v946
      %v1025 = vadd.f32 %v1024, %v948
      %v1026 = vadd.f32 %v1025, %v950
      %v1027 = vadd.f32 %v1026, %v952
      %v1028 = vadd.f32 %v1027, %v954
      %v1029 = vadd.f32 %v1028, %v956
      %v1030 = vadd.f32 %v1029, %v958
      %v1031 = vadd.f32 %v1030, %v960
      %v1032 = vadd.f32 %v1031, %v962
      %v1033 = vadd.f32 %v1032, %v964
      %v1034 = vadd.f32 %v1033, %v966
      %v1035 = vrot.slane %v1034, 4
      %v1036 = vadd.f32 %v1034, %v1035
      %v1037 = vrot.slane %v1036, 2
      %v1038 = vadd.f32 %v1036, %v1037
      %v1039 = vrot.slane %v1038, 1
      %v1040 = vadd.f32 %v1038, %v1039
      %v1043 = vcombine.low %v1003, %v1040
      %v1045 = vunpack.c.l.s4 1966171168
      %v1046 = vunpack.c.0.s8 %v1045
      %v1047 = vlaneseq
      %v1048 = vshrl.u32 %v1047, 7
      %v1049 = vsub.s32 %v1046, %v1048
      %v1050 = vrot.slane %v1043, %v1049
      %v1052 = vunpack.c.l.s4 1966171168
      %v1053 = vunpack.c.0.s8 %v1052
      %v1054 = vlaneseq
      %v1055 = vshrl.u32 %v1054, 7
      %v1056 = vsub.s32 %v1053, %v1055
      %v1057 = vrot.slane %v1050, %v1056
      %s1059 = scalar_lea.vmem %s188, 1
      %1060 = vst.msk [vmem:[%s1059] ss:$8 sm:$0x3] %vm900, %v1057
      %1061 = vst.msk [vmem:[%s1059] ss:$8 sm:$0x0] %vm900, %v1057
      %1062 = vst [vmem:[%s188] sm:$0xfc] 0.0
      %1063 = vst [vmem:[%s188 + $0x8] sm:$0xfc] 0.0
      %s1064 = smul.u32 32, %s15
      %p1065 = scmp.lt.s32.totalorder %s1064, 63
      %s1066 = scalar_select %p1065, %s1064, 63
      %s1067 = smul.addr %s1066, 2
      %s1068 = smul.addr %s1067, 4
      %s1069 = scalar_lea.vmem %s2, %s1068
      %p1070 = scmp.lt.s32.totalorder %s15, 1
      %s1071 = scalar_select %p1070, %s15, 1
      %s1072 = smul.addr %s1071, 2
      %s1073 = smul.addr %s1072, 8
      %s1074 = scalar_lea.vmem %s3, %s1073
      // Predicated region
      $region29: #{residual_block_forward.3} parent=27 // pred_check
        %p1075 = pneg %p80
      $region30: #{residual_block_forward.3} parent=27 // pred_check_branch
        %1077 = sbr.rel (%p1075) target = $region32
      $region31: #{residual_block_forward.3} parent=27 // pred_region
        %s1078 = smul.u32 32, %s15
      $region32: #{residual_block_forward.3} parent=27 // pred_fallthru
        _
      // Predicated region
      $region33: #{residual_block_forward.3} parent=27 // pred_check
        %p1079 = pneg %p106
      $region34: #{residual_block_forward.3} parent=27 // pred_check_branch
        %1081 = sbr.rel (%p1079) target = $region36
      $region35: #{residual_block_forward.3} parent=27 // pred_region
        _
      $region36: #{residual_block_forward.3} parent=27 // pred_fallthru
        _
    $region28: #{residual_block_forward.3} parent=5 // pred_fallthru
      _
    %p1082 = scmp.le.s32.totalorder 2, %s10
    // Predicated region
    $region37: #{residual_block_forward.3} parent=5 // pred_check
      %p1083 = pneg %p1082
    $region38: #{residual_block_forward.3} parent=5 // pred_check_branch
      %1085 = sbr.rel (%p1083) target = $region40
    $region39: #{residual_block_forward.3} parent=5 // pred_region
      %s1086 = ssub.s32 %s10, 2
      // Predicated region
      $region41: #{residual_block_forward.3} parent=39 // pred_check
        %p1087 = pneg %p86
      $region42: #{residual_block_forward.3} parent=39 // pred_check_branch
        %1089 = sbr.rel (%p1087) target = $region44
      $region43: #{residual_block_forward.3} parent=39 // pred_region
        %s1090 = smul.u32 32, %s16
        %p1091 = scmp.lt.s32.totalorder %s1090, 63
        %s1092 = scalar_select %p1091, %s1090, 63
        %s1093 = smul.addr %s1092, 2
        %s1094 = smul.addr %s1093, 4
        %s1095 = scalar_lea.vmem %s2, %s1094
      $region44: #{residual_block_forward.3} parent=39 // pred_fallthru
        _
      // Predicated region
      $region45: #{residual_block_forward.3} parent=39 // pred_check
        %p1096 = pneg %p112
      $region46: #{residual_block_forward.3} parent=39 // pred_check_branch
        %1098 = sbr.rel (%p1096) target = $region48
      $region47: #{residual_block_forward.3} parent=39 // pred_region
        %p1099 = scmp.lt.s32.totalorder %s16, 1
        %s1100 = scalar_select %p1099, %s16, 1
        %s1101 = smul.addr %s1100, 2
        %s1102 = smul.addr %s1101, 8
        %s1103 = scalar_lea.vmem %s3, %s1102
      $region48: #{residual_block_forward.3} parent=39 // pred_fallthru
        _
    $region40: #{residual_block_forward.3} parent=5 // pred_fallthru
      _
  $region6: #{residual_block_forward.3} parent=0 // loop_footer
    %s14 = sadd.s32 1, %s10
  $region7: #{residual_block_forward.3} parent=0 // loop_footer_branch
    %9 = sbr.rel target = $region3
  $region8: #{residual_block_forward.3} parent=0 // loop_exit
    _

// kernel: residual_block_forward.5
$region0: #{residual_block_forward.5}
  #allocation0 [shape = 'u32[]', space=smem, size = 0x4, offset = 0x4, fixed_abs, tag = 'smem constant byte address 0x4 - core index']
  #allocation1 [shape = 'u32[144,128]{1,0:T(1,128)}', space=vmem, size = 0x12000, scoped, tag = 'internal scratch']
  %s0 = inlined_call_operand.vmem [shape: f32[512,256], index: 0, kind: input, shape index: {}]
  %s1 = inlined_call_operand.vmem [shape: f32[1,128], index: 1, kind: input, shape index: {}]
  %s2 = inlined_call_operand.vmem [shape: f32[1,128], index: 2, kind: input, shape index: {}]
  %s3 = inlined_call_operand.vmem [shape: f32[512,128], index: 3, kind: output, shape index: {}]
  %s4 = sld [smem:[#allocation0]]
  $region45: #{residual_block_forward.5} parent=0
    _
  %s6 = ssub.s32 1, %s4
  %s7 = scalar_select 0, %s6, %s4
  loop: start=0, step=1, limit=4
  $region2: #{residual_block_forward.5} parent=0 // loop_pre_header
    _
  $region3: #{residual_block_forward.5} parent=0 // loop_header
    %s9 = sphi 0, %s13
    %p10 = scmp.ge.s32.totalorder %s9, 4
    %s19 = sphi 0, %s21
    %s22 = sphi 0, %s19
    %s23 = sphi 0, %s22
    %s39 = sphi 0, %s23
    %s43 = sphi 0, %s43
    %s45 = sphi 0, %s43
    %s46 = sphi 0, %s45
    %s60 = sphi 0, %s46
    %s64 = sphi 0, %s64
    %s66 = sphi 0, %s64
    %s67 = sphi 0, %s66
    %s81 = sphi 0, %s67
    %s87 = sphi 0, %s89
    %s90 = sphi 0, %s87
    %s91 = sphi 0, %s90
    %s107 = sphi 0, %s91
  $region4: #{residual_block_forward.5} parent=0 // loop_header_branch
    %12 = sbr.rel (%p10) target = $region8
  $region5: #{residual_block_forward.5} parent=0 // loop_body
    %s14 = ssub.s32 %s9, 1
    %s15 = ssub.s32 %s9, 2
    %s16 = sadd.s32 %s9, 1
    %s17 = ssub.s32 %s9, %s16
    %p18 = scmp.eq.s32.totalorder %s17, 0
    %s20 = sadd.s32 %s19, 1
    %s21 = scalar_select %p18, %s19, %s20
    %p24 = pneg %p18
    %p25 = scmp.eq.s32.totalorder %s9, 1
    %p26 = por %p24, %p25
    %p27 = scmp.ne.s32.totalorder %s19, %s22
    %p28 = scmp.eq.s32.totalorder %s9, 0
    %p29 = por %p27, %p28
    %p30 = scmp.ne.s32.totalorder %s19, %s22
    %p31 = scmp.eq.s32.totalorder %s14, 1
    %p32 = por %p30, %p31
    %p33 = scmp.ne.s32.totalorder %s22, %s23
    %p34 = scmp.eq.s32.totalorder %s14, 0
    %p35 = por %p33, %p34
    %p36 = scmp.ne.s32.totalorder %s22, %s23
    %p37 = scmp.eq.s32.totalorder %s15, 1
    %p38 = por %p36, %p37
    %p40 = scmp.ne.s32.totalorder %s23, %s39
    %p41 = scmp.eq.s32.totalorder %s15, 0
    %p42 = por %p40, %p41
    %s44 = sadd.s32 %s43, 1
    %p47 = scmp.eq.s32.totalorder %s9, 1
    %p48 = scmp.ne.s32.totalorder %s43, %s45
    %p49 = scmp.eq.s32.totalorder %s9, 0
    %p50 = por %p48, %p49
    %p51 = scmp.ne.s32.totalorder %s43, %s45
    %p52 = scmp.eq.s32.totalorder %s14, 1
    %p53 = por %p51, %p52
    %p54 = scmp.ne.s32.totalorder %s45, %s46
    %p55 = scmp.eq.s32.totalorder %s14, 0
    %p56 = por %p54, %p55
    %p57 = scmp.ne.s32.totalorder %s45, %s46
    %p58 = scmp.eq.s32.totalorder %s15, 1
    %p59 = por %p57, %p58
    %p61 = scmp.ne.s32.totalorder %s46, %s60
    %p62 = scmp.eq.s32.totalorder %s15, 0
    %p63 = por %p61, %p62
    %s65 = sadd.s32 %s64, 1
    %p68 = scmp.eq.s32.totalorder %s9, 1
    %p69 = scmp.ne.s32.totalorder %s64, %s66
    %p70 = scmp.eq.s32.totalorder %s9, 0
    %p71 = por %p69, %p70
    %p72 = scmp.ne.s32.totalorder %s64, %s66
    %p73 = scmp.eq.s32.totalorder %s14, 1
    %p74 = por %p72, %p73
    %p75 = scmp.ne.s32.totalorder %s66, %s67
    %p76 = scmp.eq.s32.totalorder %s14, 0
    %p77 = por %p75, %p76
    %p78 = scmp.ne.s32.totalorder %s66, %s67
    %p79 = scmp.eq.s32.totalorder %s15, 1
    %p80 = por %p78, %p79
    %p82 = scmp.ne.s32.totalorder %s67, %s81
    %p83 = scmp.eq.s32.totalorder %s15, 0
    %p84 = por %p82, %p83
    %s85 = ssub.s32 %s9, %s16
    %p86 = scmp.eq.s32.totalorder %s85, 0
    %s88 = sadd.s32 %s87, 1
    %s89 = scalar_select %p86, %s87, %s88
    %p92 = pneg %p86
    %p93 = scmp.eq.s32.totalorder %s9, 1
    %p94 = por %p92, %p93
    %p95 = scmp.ne.s32.totalorder %s87, %s90
    %p96 = scmp.eq.s32.totalorder %s9, 0
    %p97 = por %p95, %p96
    %p98 = scmp.ne.s32.totalorder %s87, %s90
    %p99 = scmp.eq.s32.totalorder %s14, 1
    %p100 = por %p98, %p99
    %p101 = scmp.ne.s32.totalorder %s90, %s91
    %p102 = scmp.eq.s32.totalorder %s14, 0
    %p103 = por %p101, %p102
    %p104 = scmp.ne.s32.totalorder %s90, %s91
    %p105 = scmp.eq.s32.totalorder %s15, 1
    %p106 = por %p104, %p105
    %p108 = scmp.ne.s32.totalorder %s91, %s107
    %p109 = scmp.eq.s32.totalorder %s15, 0
    %p110 = por %p108, %p109
    %p111 = scmp.le.s32.totalorder 1, %s9
    %p112 = scmp.lt.s32.totalorder %s9, 3
    %p113 = pnand %p111, %p112
    %p114 = pneg %p113
    // Predicated region
    $region9: #{residual_block_forward.5} parent=5 // pred_check
      _
    $region10: #{residual_block_forward.5} parent=5 // pred_check_branch
      %116 = sbr.rel (%p113) target = $region12
    $region11: #{residual_block_forward.5} parent=5 // pred_region
      %s117 = ssub.s32 %s9, 1
      // Predicated region
      $region13: #{residual_block_forward.5} parent=11 // pred_check
        %p118 = pneg %p56
      $region14: #{residual_block_forward.5} parent=11 // pred_check_branch
        %120 = sbr.rel (%p118) target = $region16
      $region15: #{residual_block_forward.5} parent=11 // pred_region
        _
      $region16: #{residual_block_forward.5} parent=11 // pred_fallthru
        _
      // Predicated region
      $region17: #{residual_block_forward.5} parent=11 // pred_check
        %p121 = pneg %p77
      $region18: #{residual_block_forward.5} parent=11 // pred_check_branch
        %123 = sbr.rel (%p121) target = $region20
      $region19: #{residual_block_forward.5} parent=11 // pred_region
        _
      $region20: #{residual_block_forward.5} parent=11 // pred_fallthru
        _
    $region12: #{residual_block_forward.5} parent=5 // pred_fallthru
      _
    %p124 = scmp.lt.s32.totalorder %s9, 2
    // Predicated region
    $region21: #{residual_block_forward.5} parent=5 // pred_check
      %p125 = pneg %p124
    $region22: #{residual_block_forward.5} parent=5 // pred_check_branch
      %127 = sbr.rel (%p125) target = $region24
    $region23: #{residual_block_forward.5} parent=5 // pred_region
      // Predicated region
      $region25: #{residual_block_forward.5} parent=23 // pred_check
        %p128 = pneg %p29
      $region26: #{residual_block_forward.5} parent=23 // pred_check_branch
        %130 = sbr.rel (%p128) target = $region28
      $region27: #{residual_block_forward.5} parent=23 // pred_region
        %s131 = smul.u32 32, %s9
        %p132 = scmp.lt.s32.totalorder %s131, 63
        %s133 = scalar_select %p132, %s131, 63
        %s134 = smul.addr %s133, 2
        %s135 = smul.addr %s134, 8
        %s136 = scalar_lea.vmem %s0, %s135
        %s137 = smul.u32 32, %s9
      $region28: #{residual_block_forward.5} parent=23 // pred_fallthru
        _
    $region24: #{residual_block_forward.5} parent=5 // pred_fallthru
      _
    %p138 = scmp.le.s32.totalorder 1, %s9
    %p139 = scmp.lt.s32.totalorder %s9, 3
    %p140 = pnand %p138, %p139
    %p141 = pneg %p140
    // Predicated region
    $region29: #{residual_block_forward.5} parent=5 // pred_check
      _
    $region30: #{residual_block_forward.5} parent=5 // pred_check_branch
      %143 = sbr.rel (%p140) target = $region32
    $region31: #{residual_block_forward.5} parent=5 // pred_region
      %s144 = ssub.s32 %s9, 1
      %s145 = smul.u32 32, %s14
      %p146 = scmp.lt.s32.totalorder %s145, 63
      %s147 = scalar_select %p146, %s145, 63
      %s148 = smul.addr %s147, 2
      %s149 = smul.addr %s148, 8
      %s150 = scalar_lea.vmem %s0, %s149
      %p151 = pneg %p35
      %p152 = pneg %p32
      %p153 = pneg %p56
      %p154 = pneg %p53
      %p155 = pneg %p77
      %p156 = pneg %p74
      %p157 = pneg %p103
      %p158 = pneg %p100
      %s159 = smul.u32 32, %s14
      %p160 = scmp.lt.s32.totalorder %s159, 63
      %s161 = scalar_select %p160, %s159, 63
      %s162 = smul.addr %s161, 8
      %s163 = scalar_lea.vmem %s3, %s162
      %s164 = smul.u32 32, %s14
      %p165 = scmp.lt.s32.totalorder %s164, 63
      %s166 = scalar_select %p165, %s164, 63
      %s167 = smul.addr %s166, 2
      %s168 = smul.addr %s167, 8
      %s169 = scalar_lea.vmem %s0, %s168
      %s170 = smul.u32 32, %s14
      %s171 = smul.u32 32, %s14
      %p172 = scmp.lt.s32.totalorder %s171, 63
      %s173 = scalar_select %p172, %s171, 63
      %s174 = smul.addr %s173, 8
      %s175 = scalar_lea.vmem %s3, %s174
      %s176 = smul.u32 32, %s14
      %v177 = vld [vmem:[%s169] sm:$0xff]
      %v178 = vld [vmem:[%s169 + $0x10] sm:$0xff]
      %v179 = vld [vmem:[%s169 + $0x20] sm:$0xff]
      %v180 = vld [vmem:[%s169 + $0x30] sm:$0xff]
      %v181 = vld [vmem:[%s169 + $0x40] sm:$0xff]
      %v182 = vld [vmem:[%s169 + $0x50] sm:$0xff]
      %v183 = vld [vmem:[%s169 + $0x60] sm:$0xff]
      %v184 = vld [vmem:[%s169 + $0x70] sm:$0xff]
      %v185 = vld [vmem:[%s169 + $0x80] sm:$0xff]
      %v186 = vld [vmem:[%s169 + $0x90] sm:$0xff]
      %v187 = vld [vmem:[%s169 + $0xa0] sm:$0xff]
      %v188 = vld [vmem:[%s169 + $0xb0] sm:$0xff]
      %v189 = vld [vmem:[%s169 + $0xc0] sm:$0xff]
      %v190 = vld [vmem:[%s169 + $0xd0] sm:$0xff]
      %v191 = vld [vmem:[%s169 + $0xe0] sm:$0xff]
      %v192 = vld [vmem:[%s169 + $0xf0] sm:$0xff]
      %v193 = vld [vmem:[%s169 + $0x100] sm:$0xff]
      %v194 = vld [vmem:[%s169 + $0x110] sm:$0xff]
      %v195 = vld [vmem:[%s169 + $0x120] sm:$0xff]
      %v196 = vld [vmem:[%s169 + $0x130] sm:$0xff]
      %v197 = vld [vmem:[%s169 + $0x140] sm:$0xff]
      %v198 = vld [vmem:[%s169 + $0x150] sm:$0xff]
      %v199 = vld [vmem:[%s169 + $0x160] sm:$0xff]
      %v200 = vld [vmem:[%s169 + $0x170] sm:$0xff]
      %v201 = vld [vmem:[%s169 + $0x180] sm:$0xff]
      %v202 = vld [vmem:[%s169 + $0x190] sm:$0xff]
      %v203 = vld [vmem:[%s169 + $0x1a0] sm:$0xff]
      %v204 = vld [vmem:[%s169 + $0x1b0] sm:$0xff]
      %v205 = vld [vmem:[%s169 + $0x1c0] sm:$0xff]
      %v206 = vld [vmem:[%s169 + $0x1d0] sm:$0xff]
      %v207 = vld [vmem:[%s169 + $0x1e0] sm:$0xff]
      %v208 = vld [vmem:[%s169 + $0x1f0] sm:$0xff]
      %v209 = vld [vmem:[%s169 + $0x8] sm:$0xff]
      %v210 = vld [vmem:[%s169 + $0x18] sm:$0xff]
      %v211 = vld [vmem:[%s169 + $0x28] sm:$0xff]
      %v212 = vld [vmem:[%s169 + $0x38] sm:$0xff]
      %v213 = vld [vmem:[%s169 + $0x48] sm:$0xff]
      %v214 = vld [vmem:[%s169 + $0x58] sm:$0xff]
      %v215 = vld [vmem:[%s169 + $0x68] sm:$0xff]
      %v216 = vld [vmem:[%s169 + $0x78] sm:$0xff]
      %v217 = vld [vmem:[%s169 + $0x88] sm:$0xff]
      %v218 = vld [vmem:[%s169 + $0x98] sm:$0xff]
      %v219 = vld [vmem:[%s169 + $0xa8] sm:$0xff]
      %v220 = vld [vmem:[%s169 + $0xb8] sm:$0xff]
      %v221 = vld [vmem:[%s169 + $0xc8] sm:$0xff]
      %v222 = vld [vmem:[%s169 + $0xd8] sm:$0xff]
      %v223 = vld [vmem:[%s169 + $0xe8] sm:$0xff]
      %v224 = vld [vmem:[%s169 + $0xf8] sm:$0xff]
      %v225 = vld [vmem:[%s169 + $0x108] sm:$0xff]
      %v226 = vld [vmem:[%s169 + $0x118] sm:$0xff]
      %v227 = vld [vmem:[%s169 + $0x128] sm:$0xff]
      %v228 = vld [vmem:[%s169 + $0x138] sm:$0xff]
      %v229 = vld [vmem:[%s169 + $0x148] sm:$0xff]
      %v230 = vld [vmem:[%s169 + $0x158] sm:$0xff]
      %v231 = vld [vmem:[%s169 + $0x168] sm:$0xff]
      %v232 = vld [vmem:[%s169 + $0x178] sm:$0xff]
      %v233 = vld [vmem:[%s169 + $0x188] sm:$0xff]
      %v234 = vld [vmem:[%s169 + $0x198] sm:$0xff]
      %v235 = vld [vmem:[%s169 + $0x1a8] sm:$0xff]
      %v236 = vld [vmem:[%s169 + $0x1b8] sm:$0xff]
      %v237 = vld [vmem:[%s169 + $0x1c8] sm:$0xff]
      %v238 = vld [vmem:[%s169 + $0x1d8] sm:$0xff]
      %v239 = vld [vmem:[%s169 + $0x1e8] sm:$0xff]
      %v240 = vld [vmem:[%s169 + $0x1f8] sm:$0xff]
      %v241 = vld [vmem:[%s1] sm:$0x1]
      %v243 = vlaneseq
      %v244 = vshrl.u32 %v243, 7
      %v245 = vsub.s32 0, %v244
      %v246 = vrot.slane %v241, %v245
      %v248 = vmul.f32 %v177, %v246
      %v249 = vmul.f32 %v178, %v246
      %v250 = vmul.f32 %v179, %v246
      %v251 = vmul.f32 %v180, %v246
      %v252 = vmul.f32 %v181, %v246
      %v253 = vmul.f32 %v182, %v246
      %v254 = vmul.f32 %v183, %v246
      %v255 = vmul.f32 %v184, %v246
      %v256 = vmul.f32 %v185, %v246
      %v257 = vmul.f32 %v186, %v246
      %v258 = vmul.f32 %v187, %v246
      %v259 = vmul.f32 %v188, %v246
      %v260 = vmul.f32 %v189, %v246
      %v261 = vmul.f32 %v190, %v246
      %v262 = vmul.f32 %v191, %v246
      %v263 = vmul.f32 %v192, %v246
      %v264 = vmul.f32 %v193, %v246
      %v265 = vmul.f32 %v194, %v246
      %v266 = vmul.f32 %v195, %v246
      %v267 = vmul.f32 %v196, %v246
      %v268 = vmul.f32 %v197, %v246
      %v269 = vmul.f32 %v198, %v246
      %v270 = vmul.f32 %v199, %v246
      %v271 = vmul.f32 %v200, %v246
      %v272 = vmul.f32 %v201, %v246
      %v273 = vmul.f32 %v202, %v246
      %v274 = vmul.f32 %v203, %v246
      %v275 = vmul.f32 %v204, %v246
      %v276 = vmul.f32 %v205, %v246
      %v277 = vmul.f32 %v206, %v246
      %v278 = vmul.f32 %v207, %v246
      %v279 = vmul.f32 %v208, %v246
      %v280 = vld [vmem:[%s2] sm:$0x1]
      %v282 = vlaneseq
      %v283 = vshrl.u32 %v282, 7
      %v284 = vsub.s32 0, %v283
      %v285 = vrot.slane %v280, %v284
      %v287 = vadd.f32 %v248, %v285
      %v288 = vadd.f32 %v249, %v285
      %v289 = vadd.f32 %v250, %v285
      %v290 = vadd.f32 %v251, %v285
      %v291 = vadd.f32 %v252, %v285
      %v292 = vadd.f32 %v253, %v285
      %v293 = vadd.f32 %v254, %v285
      %v294 = vadd.f32 %v255, %v285
      %v295 = vadd.f32 %v256, %v285
      %v296 = vadd.f32 %v257, %v285
      %v297 = vadd.f32 %v258, %v285
      %v298 = vadd.f32 %v259, %v285
      %v299 = vadd.f32 %v260, %v285
      %v300 = vadd.f32 %v261, %v285
      %v301 = vadd.f32 %v262, %v285
      %v302 = vadd.f32 %v263, %v285
      %v303 = vadd.f32 %v264, %v285
      %v304 = vadd.f32 %v265, %v285
      %v305 = vadd.f32 %v266, %v285
      %v306 = vadd.f32 %v267, %v285
      %v307 = vadd.f32 %v268, %v285
      %v308 = vadd.f32 %v269, %v285
      %v309 = vadd.f32 %v270, %v285
      %v310 = vadd.f32 %v271, %v285
      %v311 = vadd.f32 %v272, %v285
      %v312 = vadd.f32 %v273, %v285
      %v313 = vadd.f32 %v274, %v285
      %v314 = vadd.f32 %v275, %v285
      %v315 = vadd.f32 %v276, %v285
      %v316 = vadd.f32 %v277, %v285
      %v317 = vadd.f32 %v278, %v285
      %v318 = vadd.f32 %v279, %v285
      %v319 = vadd.f32 %v287, %v209
      %v320 = vadd.f32 %v288, %v210
      %v321 = vadd.f32 %v289, %v211
      %v322 = vadd.f32 %v290, %v212
      %v323 = vadd.f32 %v291, %v213
      %v324 = vadd.f32 %v292, %v214
      %v325 = vadd.f32 %v293, %v215
      %v326 = vadd.f32 %v294, %v216
      %v327 = vadd.f32 %v295, %v217
      %v328 = vadd.f32 %v296, %v218
      %v329 = vadd.f32 %v297, %v219
      %v330 = vadd.f32 %v298, %v220
      %v331 = vadd.f32 %v299, %v221
      %v332 = vadd.f32 %v300, %v222
      %v333 = vadd.f32 %v301, %v223
      %v334 = vadd.f32 %v302, %v224
      %v335 = vadd.f32 %v303, %v225
      %v336 = vadd.f32 %v304, %v226
      %v337 = vadd.f32 %v305, %v227
      %v338 = vadd.f32 %v306, %v228
      %v339 = vadd.f32 %v307, %v229
      %v340 = vadd.f32 %v308, %v230
      %v341 = vadd.f32 %v309, %v231
      %v342 = vadd.f32 %v310, %v232
      %v343 = vadd.f32 %v311, %v233
      %v344 = vadd.f32 %v312, %v234
      %v345 = vadd.f32 %v313, %v235
      %v346 = vadd.f32 %v314, %v236
      %v347 = vadd.f32 %v315, %v237
      %v348 = vadd.f32 %v316, %v238
      %v349 = vadd.f32 %v317, %v239
      %v350 = vadd.f32 %v318, %v240
      %v351 = vmax.f32 %v319, 0.0
      %v352 = vmax.f32 %v320, 0.0
      %v353 = vmax.f32 %v321, 0.0
      %v354 = vmax.f32 %v322, 0.0
      %v355 = vmax.f32 %v323, 0.0
      %v356 = vmax.f32 %v324, 0.0
      %v357 = vmax.f32 %v325, 0.0
      %v358 = vmax.f32 %v326, 0.0
      %v359 = vmax.f32 %v327, 0.0
      %v360 = vmax.f32 %v328, 0.0
      %v361 = vmax.f32 %v329, 0.0
      %v362 = vmax.f32 %v330, 0.0
      %v363 = vmax.f32 %v331, 0.0
      %v364 = vmax.f32 %v332, 0.0
      %v365 = vmax.f32 %v333, 0.0
      %v366 = vmax.f32 %v334, 0.0
      %v367 = vmax.f32 %v335, 0.0
      %v368 = vmax.f32 %v336, 0.0
      %v369 = vmax.f32 %v337, 0.0
      %v370 = vmax.f32 %v338, 0.0
      %v371 = vmax.f32 %v339, 0.0
      %v372 = vmax.f32 %v340, 0.0
      %v373 = vmax.f32 %v341, 0.0
      %v374 = vmax.f32 %v342, 0.0
      %v375 = vmax.f32 %v343, 0.0
      %v376 = vmax.f32 %v344, 0.0
      %v377 = vmax.f32 %v345, 0.0
      %v378 = vmax.f32 %v346, 0.0
      %v379 = vmax.f32 %v347, 0.0
      %v380 = vmax.f32 %v348, 0.0
      %v381 = vmax.f32 %v349, 0.0
      %v382 = vmax.f32 %v350, 0.0
      %383 = vst [vmem:[%s175] sm:$0xff] %v351
      %384 = vst [vmem:[%s175 + $0x8] sm:$0xff] %v352
      %385 = vst [vmem:[%s175 + $0x10] sm:$0xff] %v353
      %386 = vst [vmem:[%s175 + $0x18] sm:$0xff] %v354
      %387 = vst [vmem:[%s175 + $0x20] sm:$0xff] %v355
      %388 = vst [vmem:[%s175 + $0x28] sm:$0xff] %v356
      %389 = vst [vmem:[%s175 + $0x30] sm:$0xff] %v357
      %390 = vst [vmem:[%s175 + $0x38] sm:$0xff] %v358
      %391 = vst [vmem:[%s175 + $0x40] sm:$0xff] %v359
      %392 = vst [vmem:[%s175 + $0x48] sm:$0xff] %v360
      %393 = vst [vmem:[%s175 + $0x50] sm:$0xff] %v361
      %394 = vst [vmem:[%s175 + $0x58] sm:$0xff] %v362
      %395 = vst [vmem:[%s175 + $0x60] sm:$0xff] %v363
      %396 = vst [vmem:[%s175 + $0x68] sm:$0xff] %v364
      %397 = vst [vmem:[%s175 + $0x70] sm:$0xff] %v365
      %398 = vst [vmem:[%s175 + $0x78] sm:$0xff] %v366
      %399 = vst [vmem:[%s175 + $0x80] sm:$0xff] %v367
      %400 = vst [vmem:[%s175 + $0x88] sm:$0xff] %v368
      %401 = vst [vmem:[%s175 + $0x90] sm:$0xff] %v369
      %402 = vst [vmem:[%s175 + $0x98] sm:$0xff] %v370
      %403 = vst [vmem:[%s175 + $0xa0] sm:$0xff] %v371
      %404 = vst [vmem:[%s175 + $0xa8] sm:$0xff] %v372
      %405 = vst [vmem:[%s175 + $0xb0] sm:$0xff] %v373
      %406 = vst [vmem:[%s175 + $0xb8] sm:$0xff] %v374
      %407 = vst [vmem:[%s175 + $0xc0] sm:$0xff] %v375
      %408 = vst [vmem:[%s175 + $0xc8] sm:$0xff] %v376
      %409 = vst [vmem:[%s175 + $0xd0] sm:$0xff] %v377
      %410 = vst [vmem:[%s175 + $0xd8] sm:$0xff] %v378
      %411 = vst [vmem:[%s175 + $0xe0] sm:$0xff] %v379
      %412 = vst [vmem:[%s175 + $0xe8] sm:$0xff] %v380
      %413 = vst [vmem:[%s175 + $0xf0] sm:$0xff] %v381
      %414 = vst [vmem:[%s175 + $0xf8] sm:$0xff] %v382
      %s415 = smul.u32 32, %s14
      %p416 = scmp.lt.s32.totalorder %s415, 63
      %s417 = scalar_select %p416, %s415, 63
      %s418 = smul.addr %s417, 8
      %s419 = scalar_lea.vmem %s3, %s418
      // Predicated region
      $region33: #{residual_block_forward.5} parent=31 // pred_check
        %p420 = pneg %p100
      $region34: #{residual_block_forward.5} parent=31 // pred_check_branch
        %422 = sbr.rel (%p420) target = $region36
      $region35: #{residual_block_forward.5} parent=31 // pred_region
        %s423 = smul.u32 32, %s14
      $region36: #{residual_block_forward.5} parent=31 // pred_fallthru
        _
    $region32: #{residual_block_forward.5} parent=5 // pred_fallthru
      _
    %p424 = scmp.le.s32.totalorder 2, %s9
    // Predicated region
    $region37: #{residual_block_forward.5} parent=5 // pred_check
      %p425 = pneg %p424
    $region38: #{residual_block_forward.5} parent=5 // pred_check_branch
      %427 = sbr.rel (%p425) target = $region40
    $region39: #{residual_block_forward.5} parent=5 // pred_region
      %s428 = ssub.s32 %s9, 2
      // Predicated region
      $region41: #{residual_block_forward.5} parent=39 // pred_check
        %p429 = pneg %p106
      $region42: #{residual_block_forward.5} parent=39 // pred_check_branch
        %431 = sbr.rel (%p429) target = $region44
      $region43: #{residual_block_forward.5} parent=39 // pred_region
        %s432 = smul.u32 32, %s15
        %p433 = scmp.lt.s32.totalorder %s432, 63
        %s434 = scalar_select %p433, %s432, 63
        %s435 = smul.addr %s434, 8
        %s436 = scalar_lea.vmem %s3, %s435
      $region44: #{residual_block_forward.5} parent=39 // pred_fallthru
        _
    $region40: #{residual_block_forward.5} parent=5 // pred_fallthru
      _
  $region6: #{residual_block_forward.5} parent=0 // loop_footer
    %s13 = sadd.s32 1, %s9
  $region7: #{residual_block_forward.5} parent=0 // loop_footer_branch
    %8 = sbr.rel target = $region3
  $region8: #{residual_block_forward.5} parent=0 // loop_exit
    _

// kernel: residual_block_forward.4
$region0: #{residual_block_forward.4}
  #allocation0 [shape = 'u32[]', space=smem, size = 0x4, offset = 0x4, fixed_abs, tag = 'smem constant byte address 0x4 - core index']
  #allocation1 [shape = 'u32[144,128]{1,0:T(1,128)}', space=vmem, size = 0x12000, scoped, tag = 'internal scratch']
  %s0 = inlined_call_operand.vmem [shape: bf16[512,1152], index: 0, kind: input, shape index: {}]
  %s1 = inlined_call_operand.vmem [shape: f32[1,1152], index: 1, kind: input, shape index: {}]
  %s2 = inlined_call_operand.vmem [shape: f32[1,1152], index: 2, kind: input, shape index: {}]
  %s3 = inlined_call_operand.vmem [shape: bf16[1152,128], index: 3, kind: input, shape index: {}]
  %s4 = inlined_call_operand.vmem [shape: bf16[512,1152], index: 4, kind: input, shape index: {}]
  %s5 = inlined_call_operand.vmem [shape: f32[512,256], index: 5, kind: output, shape index: {0}]
  %s6 = inlined_call_operand.vmem [shape: f32[16,128], index: 6, kind: output, shape index: {1}]
  %7 = xla_tuple %s5, %s6
  %s8 = sld [smem:[#allocation0]]
  $region61: #{residual_block_forward.4} parent=0
    _
  %s10 = ssub.s32 1, %s8
  %s11 = scalar_select 0, %s10, %s8
  loop: start=0, step=1, limit=4
  $region2: #{residual_block_forward.4} parent=0 // loop_pre_header
    _
  $region3: #{residual_block_forward.4} parent=0 // loop_header
    %s13 = sphi 0, %s17
    %p14 = scmp.ge.s32.totalorder %s13, 4
    %s23 = sphi 0, %s25
    %s26 = sphi 0, %s23
    %s27 = sphi 0, %s26
    %s43 = sphi 0, %s27
    %s47 = sphi 0, %s47
    %s49 = sphi 0, %s47
    %s50 = sphi 0, %s49
    %s64 = sphi 0, %s50
    %s68 = sphi 0, %s68
    %s70 = sphi 0, %s68
    %s71 = sphi 0, %s70
    %s85 = sphi 0, %s71
    %s89 = sphi 0, %s89
    %s91 = sphi 0, %s89
    %s92 = sphi 0, %s91
    %s106 = sphi 0, %s92
    %s112 = sphi 0, %s114
    %s115 = sphi 0, %s112
    %s116 = sphi 0, %s115
    %s132 = sphi 0, %s116
    %s138 = sphi 0, %s140
    %s141 = sphi 0, %s138
    %s142 = sphi 0, %s141
    %s158 = sphi 0, %s142
    %s164 = sphi 0, %s166
    %s167 = sphi 0, %s164
    %s168 = sphi 0, %s167
    %s184 = sphi 0, %s168
  $region4: #{residual_block_forward.4} parent=0 // loop_header_branch
    %16 = sbr.rel (%p14) target = $region8
  $region5: #{residual_block_forward.4} parent=0 // loop_body
    %s18 = ssub.s32 %s13, 1
    %s19 = ssub.s32 %s13, 2
    %s20 = sadd.s32 %s13, 1
    %s21 = ssub.s32 %s13, %s20
    %p22 = scmp.eq.s32.totalorder %s21, 0
    %s24 = sadd.s32 %s23, 1
    %s25 = scalar_select %p22, %s23, %s24
    %p28 = pneg %p22
    %p29 = scmp.eq.s32.totalorder %s13, 1
    %p30 = por %p28, %p29
    %p31 = scmp.ne.s32.totalorder %s23, %s26
    %p32 = scmp.eq.s32.totalorder %s13, 0
    %p33 = por %p31, %p32
    %p34 = scmp.ne.s32.totalorder %s23, %s26
    %p35 = scmp.eq.s32.totalorder %s18, 1
    %p36 = por %p34, %p35
    %p37 = scmp.ne.s32.totalorder %s26, %s27
    %p38 = scmp.eq.s32.totalorder %s18, 0
    %p39 = por %p37, %p38
    %p40 = scmp.ne.s32.totalorder %s26, %s27
    %p41 = scmp.eq.s32.totalorder %s19, 1
    %p42 = por %p40, %p41
    %p44 = scmp.ne.s32.totalorder %s27, %s43
    %p45 = scmp.eq.s32.totalorder %s19, 0
    %p46 = por %p44, %p45
    %s48 = sadd.s32 %s47, 1
    %p51 = scmp.eq.s32.totalorder %s13, 1
    %p52 = scmp.ne.s32.totalorder %s47, %s49
    %p53 = scmp.eq.s32.totalorder %s13, 0
    %p54 = por %p52, %p53
    %p55 = scmp.ne.s32.totalorder %s47, %s49
    %p56 = scmp.eq.s32.totalorder %s18, 1
    %p57 = por %p55, %p56
    %p58 = scmp.ne.s32.totalorder %s49, %s50
    %p59 = scmp.eq.s32.totalorder %s18, 0
    %p60 = por %p58, %p59
    %p61 = scmp.ne.s32.totalorder %s49, %s50
    %p62 = scmp.eq.s32.totalorder %s19, 1
    %p63 = por %p61, %p62
    %p65 = scmp.ne.s32.totalorder %s50, %s64
    %p66 = scmp.eq.s32.totalorder %s19, 0
    %p67 = por %p65, %p66
    %s69 = sadd.s32 %s68, 1
    %p72 = scmp.eq.s32.totalorder %s13, 1
    %p73 = scmp.ne.s32.totalorder %s68, %s70
    %p74 = scmp.eq.s32.totalorder %s13, 0
    %p75 = por %p73, %p74
    %p76 = scmp.ne.s32.totalorder %s68, %s70
    %p77 = scmp.eq.s32.totalorder %s18, 1
    %p78 = por %p76, %p77
    %p79 = scmp.ne.s32.totalorder %s70, %s71
    %p80 = scmp.eq.s32.totalorder %s18, 0
    %p81 = por %p79, %p80
    %p82 = scmp.ne.s32.totalorder %s70, %s71
    %p83 = scmp.eq.s32.totalorder %s19, 1
    %p84 = por %p82, %p83
    %p86 = scmp.ne.s32.totalorder %s71, %s85
    %p87 = scmp.eq.s32.totalorder %s19, 0
    %p88 = por %p86, %p87
    %s90 = sadd.s32 %s89, 1
    %p93 = scmp.eq.s32.totalorder %s13, 1
    %p94 = scmp.ne.s32.totalorder %s89, %s91
    %p95 = scmp.eq.s32.totalorder %s13, 0
    %p96 = por %p94, %p95
    %p97 = scmp.ne.s32.totalorder %s89, %s91
    %p98 = scmp.eq.s32.totalorder %s18, 1
    %p99 = por %p97, %p98
    %p100 = scmp.ne.s32.totalorder %s91, %s92
    %p101 = scmp.eq.s32.totalorder %s18, 0
    %p102 = por %p100, %p101
    %p103 = scmp.ne.s32.totalorder %s91, %s92
    %p104 = scmp.eq.s32.totalorder %s19, 1
    %p105 = por %p103, %p104
    %p107 = scmp.ne.s32.totalorder %s92, %s106
    %p108 = scmp.eq.s32.totalorder %s19, 0
    %p109 = por %p107, %p108
    %s110 = ssub.s32 %s13, %s20
    %p111 = scmp.eq.s32.totalorder %s110, 0
    %s113 = sadd.s32 %s112, 1
    %s114 = scalar_select %p111, %s112, %s113
    %p117 = pneg %p111
    %p118 = scmp.eq.s32.totalorder %s13, 1
    %p119 = por %p117, %p118
    %p120 = scmp.ne.s32.totalorder %s112, %s115
    %p121 = scmp.eq.s32.totalorder %s13, 0
    %p122 = por %p120, %p121
    %p123 = scmp.ne.s32.totalorder %s112, %s115
    %p124 = scmp.eq.s32.totalorder %s18, 1
    %p125 = por %p123, %p124
    %p126 = scmp.ne.s32.totalorder %s115, %s116
    %p127 = scmp.eq.s32.totalorder %s18, 0
    %p128 = por %p126, %p127
    %p129 = scmp.ne.s32.totalorder %s115, %s116
    %p130 = scmp.eq.s32.totalorder %s19, 1
    %p131 = por %p129, %p130
    %p133 = scmp.ne.s32.totalorder %s116, %s132
    %p134 = scmp.eq.s32.totalorder %s19, 0
    %p135 = por %p133, %p134
    %s136 = ssub.s32 %s13, %s20
    %p137 = scmp.eq.s32.totalorder %s136, 0
    %s139 = sadd.s32 %s138, 1
    %s140 = scalar_select %p137, %s138, %s139
    %p143 = pneg %p137
    %p144 = scmp.eq.s32.totalorder %s13, 1
    %p145 = por %p143, %p144
    %p146 = scmp.ne.s32.totalorder %s138, %s141
    %p147 = scmp.eq.s32.totalorder %s13, 0
    %p148 = por %p146, %p147
    %p149 = scmp.ne.s32.totalorder %s138, %s141
    %p150 = scmp.eq.s32.totalorder %s18, 1
    %p151 = por %p149, %p150
    %p152 = scmp.ne.s32.totalorder %s141, %s142
    %p153 = scmp.eq.s32.totalorder %s18, 0
    %p154 = por %p152, %p153
    %p155 = scmp.ne.s32.totalorder %s141, %s142
    %p156 = scmp.eq.s32.totalorder %s19, 1
    %p157 = por %p155, %p156
    %p159 = scmp.ne.s32.totalorder %s142, %s158
    %p160 = scmp.eq.s32.totalorder %s19, 0
    %p161 = por %p159, %p160
    %s162 = ssub.s32 %s13, %s20
    %p163 = scmp.eq.s32.totalorder %s162, 0
    %s165 = sadd.s32 %s164, 1
    %s166 = scalar_select %p163, %s164, %s165
    %p169 = pneg %p163
    %p170 = scmp.eq.s32.totalorder %s13, 1
    %p171 = por %p169, %p170
    %p172 = scmp.ne.s32.totalorder %s164, %s167
    %p173 = scmp.eq.s32.totalorder %s13, 0
    %p174 = por %p172, %p173
    %p175 = scmp.ne.s32.totalorder %s164, %s167
    %p176 = scmp.eq.s32.totalorder %s18, 1
    %p177 = por %p175, %p176
    %p178 = scmp.ne.s32.totalorder %s167, %s168
    %p179 = scmp.eq.s32.totalorder %s18, 0
    %p180 = por %p178, %p179
    %p181 = scmp.ne.s32.totalorder %s167, %s168
    %p182 = scmp.eq.s32.totalorder %s19, 1
    %p183 = por %p181, %p182
    %p185 = scmp.ne.s32.totalorder %s168, %s184
    %p186 = scmp.eq.s32.totalorder %s19, 0
    %p187 = por %p185, %p186
    %p188 = scmp.le.s32.totalorder 1, %s13
    %p189 = scmp.lt.s32.totalorder %s13, 3
    %p190 = pnand %p188, %p189
    %p191 = pneg %p190
    // Predicated region
    $region9: #{residual_block_forward.4} parent=5 // pred_check
      _
    $region10: #{residual_block_forward.4} parent=5 // pred_check_branch
      %193 = sbr.rel (%p190) target = $region12
    $region11: #{residual_block_forward.4} parent=5 // pred_region
      %s194 = ssub.s32 %s13, 1
      // Predicated region
      $region13: #{residual_block_forward.4} parent=11 // pred_check
        %p195 = pneg %p60
      $region14: #{residual_block_forward.4} parent=11 // pred_check_branch
        %197 = sbr.rel (%p195) target = $region16
      $region15: #{residual_block_forward.4} parent=11 // pred_region
        _
      $region16: #{residual_block_forward.4} parent=11 // pred_fallthru
        _
      // Predicated region
      $region17: #{residual_block_forward.4} parent=11 // pred_check
        %p198 = pneg %p81
      $region18: #{residual_block_forward.4} parent=11 // pred_check_branch
        %200 = sbr.rel (%p198) target = $region20
      $region19: #{residual_block_forward.4} parent=11 // pred_region
        _
      $region20: #{residual_block_forward.4} parent=11 // pred_fallthru
        _
      // Predicated region
      $region21: #{residual_block_forward.4} parent=11 // pred_check
        %p201 = pneg %p102
      $region22: #{residual_block_forward.4} parent=11 // pred_check_branch
        %203 = sbr.rel (%p201) target = $region24
      $region23: #{residual_block_forward.4} parent=11 // pred_region
        _
      $region24: #{residual_block_forward.4} parent=11 // pred_fallthru
        _
    $region12: #{residual_block_forward.4} parent=5 // pred_fallthru
      _
    %p204 = scmp.lt.s32.totalorder %s13, 2
    // Predicated region
    $region25: #{residual_block_forward.4} parent=5 // pred_check
      %p205 = pneg %p204
    $region26: #{residual_block_forward.4} parent=5 // pred_check_branch
      %207 = sbr.rel (%p205) target = $region28
    $region27: #{residual_block_forward.4} parent=5 // pred_region
      // Predicated region
      $region29: #{residual_block_forward.4} parent=27 // pred_check
        %p208 = pneg %p33
      $region30: #{residual_block_forward.4} parent=27 // pred_check_branch
        %210 = sbr.rel (%p208) target = $region32
      $region31: #{residual_block_forward.4} parent=27 // pred_region
        %s211 = smul.u32 32, %s13
        %p212 = scmp.lt.s32.totalorder %s211, 63
        %s213 = scalar_select %p212, %s211, 63
        %s214 = smul.addr %s213, 9
        %s215 = smul.addr %s214, 4
        %s216 = scalar_lea.vmem %s0, %s215
        %s217 = smul.u32 32, %s13
      $region32: #{residual_block_forward.4} parent=27 // pred_fallthru
        _
      // Predicated region
      $region33: #{residual_block_forward.4} parent=27 // pred_check
        %p218 = pneg %p122
      $region34: #{residual_block_forward.4} parent=27 // pred_check_branch
        %220 = sbr.rel (%p218) target = $region36
      $region35: #{residual_block_forward.4} parent=27 // pred_region
        %s221 = smul.u32 32, %s13
        %p222 = scmp.lt.s32.totalorder %s221, 63
        %s223 = scalar_select %p222, %s221, 63
        %s224 = smul.addr %s223, 9
        %s225 = smul.addr %s224, 4
        %s226 = scalar_lea.vmem %s4, %s225
        %s227 = smul.u32 32, %s13
      $region36: #{residual_block_forward.4} parent=27 // pred_fallthru
        _
    $region28: #{residual_block_forward.4} parent=5 // pred_fallthru
      _
    %p228 = scmp.le.s32.totalorder 1, %s13
    %p229 = scmp.lt.s32.totalorder %s13, 3
    %p230 = pnand %p228, %p229
    %p231 = pneg %p230
    // Predicated region
    $region37: #{residual_block_forward.4} parent=5 // pred_check
      _
    $region38: #{residual_block_forward.4} parent=5 // pred_check_branch
      %233 = sbr.rel (%p230) target = $region40
    $region39: #{residual_block_forward.4} parent=5 // pred_region
      %s234 = ssub.s32 %s13, 1
      %s235 = smul.u32 32, %s18
      %p236 = scmp.lt.s32.totalorder %s235, 63
      %s237 = scalar_select %p236, %s235, 63
      %s238 = smul.addr %s237, 9
      %s239 = smul.addr %s238, 4
      %s240 = scalar_lea.vmem %s0, %s239
      %p241 = pneg %p39
      %p242 = pneg %p36
      %p243 = pneg %p60
      %p244 = pneg %p57
      %p245 = pneg %p81
      %p246 = pneg %p78
      %p247 = pneg %p102
      %p248 = pneg %p99
      %s249 = smul.u32 32, %s18
      %p250 = scmp.lt.s32.totalorder %s249, 63
      %s251 = scalar_select %p250, %s249, 63
      %s252 = smul.addr %s251, 9
      %s253 = smul.addr %s252, 4
      %s254 = scalar_lea.vmem %s4, %s253
      %p255 = pneg %p128
      %p256 = pneg %p125
      %p257 = pneg %p154
      %p258 = pneg %p151
      %s259 = smul.u32 32, %s18
      %p260 = scmp.lt.s32.totalorder %s259, 63
      %s261 = scalar_select %p260, %s259, 63
      %s262 = smul.addr %s261, 2
      %s263 = smul.addr %s262, 8
      %s264 = scalar_lea.vmem %s5, %s263
      %p265 = pneg %p180
      %p266 = pneg %p177
      %p267 = scmp.lt.s32.totalorder %s18, 1
      %s268 = scalar_select %p267, %s18, 1
      %s269 = smul.addr %s268, 8
      %s270 = scalar_lea.vmem %s6, %s269
      %s271 = smul.u32 32, %s18
      %p272 = scmp.lt.s32.totalorder %s271, 63
      %s273 = scalar_select %p272, %s271, 63
      %s274 = smul.addr %s273, 9
      %s275 = smul.addr %s274, 4
      %s276 = scalar_lea.vmem %s0, %s275
      %s277 = smul.u32 32, %s18
      %s278 = smul.u32 32, %s18
      %p279 = scmp.lt.s32.totalorder %s278, 63
      %s280 = scalar_select %p279, %s278, 63
      %s281 = smul.addr %s280, 9
      %s282 = smul.addr %s281, 4
      %s283 = scalar_lea.vmem %s4, %s282
      %s284 = smul.u32 32, %s18
      %s285 = smul.u32 32, %s18
      %p286 = scmp.lt.s32.totalorder %s285, 63
      %s287 = scalar_select %p286, %s285, 63
      %s288 = smul.addr %s287, 2
      %s289 = smul.addr %s288, 8
      %s290 = scalar_lea.vmem %s5, %s289
      %s291 = smul.u32 32, %s18
      %p292 = scmp.lt.s32.totalorder %s18, 1
      %s293 = scalar_select %p292, %s18, 1
      %s294 = smul.addr %s293, 8
      %s295 = scalar_lea.vmem %s6, %s294
      %v297 = vld [vmem:[%s276] sm:$0xff]
      %v298 = vld [vmem:[%s276 + $0x8] sm:$0xff]
      %v299 = vld [vmem:[%s276 + $0x10] sm:$0xff]
      %v300 = vld [vmem:[%s276 + $0x18] sm:$0xff]
      %v301 = vld [vmem:[%s276 + $0x20] sm:$0xf]
      %v302 = vld [vmem:[%s276 + $0x24] sm:$0xff]
      %v303 = vld [vmem:[%s276 + $0x2c] sm:$0xff]
      %v304 = vld [vmem:[%s276 + $0x34] sm:$0xff]
      %v305 = vld [vmem:[%s276 + $0x3c] sm:$0xff]
      %v306 = vld [vmem:[%s276 + $0x44] sm:$0xf]
      %v307 = vld [vmem:[%s276 + $0x48] sm:$0xff]
      %v308 = vld [vmem:[%s276 + $0x50] sm:$0xff]
      %v309 = vld [vmem:[%s276 + $0x58] sm:$0xff]
      %v310 = vld [vmem:[%s276 + $0x60] sm:$0xff]
      %v311 = vld [vmem:[%s276 + $0x68] sm:$0xf]
      %v312 = vld [vmem:[%s276 + $0x6c] sm:$0xff]
      %v313 = vld [vmem:[%s276 + $0x74] sm:$0xff]
      %v314 = vld [vmem:[%s276 + $0x7c] sm:$0xff]
      %v315 = vld [vmem:[%s276 + $0x84] sm:$0xff]
      %v316 = vld [vmem:[%s276 + $0x8c] sm:$0xf]
      %v317 = vld [vmem:[%s276 + $0x90] sm:$0xff]
      %v318 = vld [vmem:[%s276 + $0x98] sm:$0xff]
      %v319 = vld [vmem:[%s276 + $0xa0] sm:$0xff]
      %v320 = vld [vmem:[%s276 + $0xa8] sm:$0xff]
      %v321 = vld [vmem:[%s276 + $0xb0] sm:$0xf]
      %v322 = vld [vmem:[%s276 + $0xb4] sm:$0xff]
      %v323 = vld [vmem:[%s276 + $0xbc] sm:$0xff]
      %v324 = vld [vmem:[%s276 + $0xc4] sm:$0xff]
      %v325 = vld [vmem:[%s276 + $0xcc] sm:$0xff]
      %v326 = vld [vmem:[%s276 + $0xd4] sm:$0xf]
      %v327 = vld [vmem:[%s276 + $0xd8] sm:$0xff]
      %v328 = vld [vmem:[%s276 + $0xe0] sm:$0xff]
      %v329 = vld [vmem:[%s276 + $0xe8] sm:$0xff]
      %v330 = vld [vmem:[%s276 + $0xf0] sm:$0xff]
      %v331 = vld [vmem:[%s276 + $0xf8] sm:$0xf]
      %v332 = vld [vmem:[%s276 + $0xfc] sm:$0xff]
      %v333 = vld [vmem:[%s276 + $0x104] sm:$0xff]
      %v334 = vld [vmem:[%s276 + $0x10c] sm:$0xff]
      %v335 = vld [vmem:[%s276 + $0x114] sm:$0xff]
      %v336 = vld [vmem:[%s276 + $0x11c] sm:$0xf]
      %v337 = vld [vmem:[%s276 + $0x120] sm:$0xff]
      %v338 = vld [vmem:[%s276 + $0x128] sm:$0xff]
      %v339 = vld [vmem:[%s276 + $0x130] sm:$0xff]
      %v340 = vld [vmem:[%s276 + $0x138] sm:$0xff]
      %v341 = vld [vmem:[%s276 + $0x140] sm:$0xf]
      %v342 = vld [vmem:[%s276 + $0x144] sm:$0xff]
      %v343 = vld [vmem:[%s276 + $0x14c] sm:$0xff]
      %v344 = vld [vmem:[%s276 + $0x154] sm:$0xff]
      %v345 = vld [vmem:[%s276 + $0x15c] sm:$0xff]
      %v346 = vld [vmem:[%s276 + $0x164] sm:$0xf]
      %v347 = vld [vmem:[%s276 + $0x168] sm:$0xff]
      %v348 = vld [vmem:[%s276 + $0x170] sm:$0xff]
      %v349 = vld [vmem:[%s276 + $0x178] sm:$0xff]
      %v350 = vld [vmem:[%s276 + $0x180] sm:$0xff]
      %v351 = vld [vmem:[%s276 + $0x188] sm:$0xf]
      %v352 = vld [vmem:[%s276 + $0x18c] sm:$0xff]
      %v353 = vld [vmem:[%s276 + $0x194] sm:$0xff]
      %v354 = vld [vmem:[%s276 + $0x19c] sm:$0xff]
      %v355 = vld [vmem:[%s276 + $0x1a4] sm:$0xff]
      %v356 = vld [vmem:[%s276 + $0x1ac] sm:$0xf]
      %v357 = vld [vmem:[%s276 + $0x1b0] sm:$0xff]
      %v358 = vld [vmem:[%s276 + $0x1b8] sm:$0xff]
      %v359 = vld [vmem:[%s276 + $0x1c0] sm:$0xff]
      %v360 = vld [vmem:[%s276 + $0x1c8] sm:$0xff]
      %v361 = vld [vmem:[%s276 + $0x1d0] sm:$0xf]
      %v362 = vld [vmem:[%s276 + $0x1d4] sm:$0xff]
      %v363 = vld [vmem:[%s276 + $0x1dc] sm:$0xff]
      %v364 = vld [vmem:[%s276 + $0x1e4] sm:$0xff]
      %v365 = vld [vmem:[%s276 + $0x1ec] sm:$0xff]
      %v366 = vld [vmem:[%s276 + $0x1f4] sm:$0xf]
      %v367 = vld [vmem:[%s276 + $0x1f8] sm:$0xff]
      %v368 = vld [vmem:[%s276 + $0x200] sm:$0xff]
      %v369 = vld [vmem:[%s276 + $0x208] sm:$0xff]
      %v370 = vld [vmem:[%s276 + $0x210] sm:$0xff]
      %v371 = vld [vmem:[%s276 + $0x218] sm:$0xf]
      %v372 = vld [vmem:[%s276 + $0x21c] sm:$0xff]
      %v373 = vld [vmem:[%s276 + $0x224] sm:$0xff]
      %v374 = vld [vmem:[%s276 + $0x22c] sm:$0xff]
      %v375 = vld [vmem:[%s276 + $0x234] sm:$0xff]
      %v376 = vld [vmem:[%s276 + $0x23c] sm:$0xf]
      %v377 = vld [vmem:[%s276 + $0x240] sm:$0xff]
      %v378 = vld [vmem:[%s276 + $0x248] sm:$0xff]
      %v379 = vld [vmem:[%s276 + $0x250] sm:$0xff]
      %v380 = vld [vmem:[%s276 + $0x258] sm:$0xff]
      %v381 = vld [vmem:[%s276 + $0x260] sm:$0xf]
      %v382 = vld [vmem:[%s276 + $0x264] sm:$0xff]
      %v383 = vld [vmem:[%s276 + $0x26c] sm:$0xff]
      %v384 = vld [vmem:[%s276 + $0x274] sm:$0xff]
      %v385 = vld [vmem:[%s276 + $0x27c] sm:$0xff]
      %v386 = vld [vmem:[%s276 + $0x284] sm:$0xf]
      %v387 = vld [vmem:[%s276 + $0x288] sm:$0xff]
      %v388 = vld [vmem:[%s276 + $0x290] sm:$0xff]
      %v389 = vld [vmem:[%s276 + $0x298] sm:$0xff]
      %v390 = vld [vmem:[%s276 + $0x2a0] sm:$0xff]
      %v391 = vld [vmem:[%s276 + $0x2a8] sm:$0xf]
      %v392 = vld [vmem:[%s276 + $0x2ac] sm:$0xff]
      %v393 = vld [vmem:[%s276 + $0x2b4] sm:$0xff]
      %v394 = vld [vmem:[%s276 + $0x2bc] sm:$0xff]
      %v395 = vld [vmem:[%s276 + $0x2c4] sm:$0xff]
      %v396 = vld [vmem:[%s276 + $0x2cc] sm:$0xf]
      %v397 = vld [vmem:[%s276 + $0x2d0] sm:$0xff]
      %v398 = vld [vmem:[%s276 + $0x2d8] sm:$0xff]
      %v399 = vld [vmem:[%s276 + $0x2e0] sm:$0xff]
      %v400 = vld [vmem:[%s276 + $0x2e8] sm:$0xff]
      %v401 = vld [vmem:[%s276 + $0x2f0] sm:$0xf]
      %v402 = vld [vmem:[%s276 + $0x2f4] sm:$0xff]
      %v403 = vld [vmem:[%s276 + $0x2fc] sm:$0xff]
      %v404 = vld [vmem:[%s276 + $0x304] sm:$0xff]
      %v405 = vld [vmem:[%s276 + $0x30c] sm:$0xff]
      %v406 = vld [vmem:[%s276 + $0x314] sm:$0xf]
      %v407 = vld [vmem:[%s276 + $0x318] sm:$0xff]
      %v408 = vld [vmem:[%s276 + $0x320] sm:$0xff]
      %v409 = vld [vmem:[%s276 + $0x328] sm:$0xff]
      %v410 = vld [vmem:[%s276 + $0x330] sm:$0xff]
      %v411 = vld [vmem:[%s276 + $0x338] sm:$0xf]
      %v412 = vld [vmem:[%s276 + $0x33c] sm:$0xff]
      %v413 = vld [vmem:[%s276 + $0x344] sm:$0xff]
      %v414 = vld [vmem:[%s276 + $0x34c] sm:$0xff]
      %v415 = vld [vmem:[%s276 + $0x354] sm:$0xff]
      %v416 = vld [vmem:[%s276 + $0x35c] sm:$0xf]
      %v417 = vld [vmem:[%s276 + $0x360] sm:$0xff]
      %v418 = vld [vmem:[%s276 + $0x368] sm:$0xff]
      %v419 = vld [vmem:[%s276 + $0x370] sm:$0xff]
      %v420 = vld [vmem:[%s276 + $0x378] sm:$0xff]
      %v421 = vld [vmem:[%s276 + $0x380] sm:$0xf]
      %v422 = vld [vmem:[%s276 + $0x384] sm:$0xff]
      %v423 = vld [vmem:[%s276 + $0x38c] sm:$0xff]
      %v424 = vld [vmem:[%s276 + $0x394] sm:$0xff]
      %v425 = vld [vmem:[%s276 + $0x39c] sm:$0xff]
      %v426 = vld [vmem:[%s276 + $0x3a4] sm:$0xf]
      %v427 = vld [vmem:[%s276 + $0x3a8] sm:$0xff]
      %v428 = vld [vmem:[%s276 + $0x3b0] sm:$0xff]
      %v429 = vld [vmem:[%s276 + $0x3b8] sm:$0xff]
      %v430 = vld [vmem:[%s276 + $0x3c0] sm:$0xff]
      %v431 = vld [vmem:[%s276 + $0x3c8] sm:$0xf]
      %v432 = vld [vmem:[%s276 + $0x3cc] sm:$0xff]
      %v433 = vld [vmem:[%s276 + $0x3d4] sm:$0xff]
      %v434 = vld [vmem:[%s276 + $0x3dc] sm:$0xff]
      %v435 = vld [vmem:[%s276 + $0x3e4] sm:$0xff]
      %v436 = vld [vmem:[%s276 + $0x3ec] sm:$0xf]
      %v437 = vld [vmem:[%s276 + $0x3f0] sm:$0xff]
      %v438 = vld [vmem:[%s276 + $0x3f8] sm:$0xff]
      %v439 = vld [vmem:[%s276 + $0x400] sm:$0xff]
      %v440 = vld [vmem:[%s276 + $0x408] sm:$0xff]
      %v441 = vld [vmem:[%s276 + $0x410] sm:$0xf]
      %v442 = vld [vmem:[%s276 + $0x414] sm:$0xff]
      %v443 = vld [vmem:[%s276 + $0x41c] sm:$0xff]
      %v444 = vld [vmem:[%s276 + $0x424] sm:$0xff]
      %v445 = vld [vmem:[%s276 + $0x42c] sm:$0xff]
      %v446 = vld [vmem:[%s276 + $0x434] sm:$0xf]
      %v447 = vld [vmem:[%s276 + $0x438] sm:$0xff]
      %v448 = vld [vmem:[%s276 + $0x440] sm:$0xff]
      %v449 = vld [vmem:[%s276 + $0x448] sm:$0xff]
      %v450 = vld [vmem:[%s276 + $0x450] sm:$0xff]
      %v451 = vld [vmem:[%s276 + $0x458] sm:$0xf]
      %v452 = vld [vmem:[%s276 + $0x45c] sm:$0xff]
      %v453 = vld [vmem:[%s276 + $0x464] sm:$0xff]
      %v454 = vld [vmem:[%s276 + $0x46c] sm:$0xff]
      %v455 = vld [vmem:[%s276 + $0x474] sm:$0xff]
      %v456 = vld [vmem:[%s276 + $0x47c] sm:$0xf]
      %v457 = vunpack.c.l.bf16 %v297
      %v458 = vunpack.c.h.bf16 %v297
      %v459 = vunpack.c.l.bf16 %v298
      %v460 = vunpack.c.h.bf16 %v298
      %v461 = vunpack.c.l.bf16 %v299
      %v462 = vunpack.c.h.bf16 %v299
      %v463 = vunpack.c.l.bf16 %v300
      %v464 = vunpack.c.h.bf16 %v300
      %v465 = vunpack.c.l.bf16 %v301
      %v466 = vunpack.c.l.bf16 %v302
      %v467 = vunpack.c.h.bf16 %v302
      %v468 = vunpack.c.l.bf16 %v303
      %v469 = vunpack.c.h.bf16 %v303
      %v470 = vunpack.c.l.bf16 %v304
      %v471 = vunpack.c.h.bf16 %v304
      %v472 = vunpack.c.l.bf16 %v305
      %v473 = vunpack.c.h.bf16 %v305
      %v474 = vunpack.c.l.bf16 %v306
      %v475 = vunpack.c.l.bf16 %v307
      %v476 = vunpack.c.h.bf16 %v307
      %v477 = vunpack.c.l.bf16 %v308
      %v478 = vunpack.c.h.bf16 %v308
      %v479 = vunpack.c.l.bf16 %v309
      %v480 = vunpack.c.h.bf16 %v309
      %v481 = vunpack.c.l.bf16 %v310
      %v482 = vunpack.c.h.bf16 %v310
      %v483 = vunpack.c.l.bf16 %v311
      %v484 = vunpack.c.l.bf16 %v312
      %v485 = vunpack.c.h.bf16 %v312
      %v486 = vunpack.c.l.bf16 %v313
      %v487 = vunpack.c.h.bf16 %v313
      %v488 = vunpack.c.l.bf16 %v314
      %v489 = vunpack.c.h.bf16 %v314
      %v490 = vunpack.c.l.bf16 %v315
      %v491 = vunpack.c.h.bf16 %v315
      %v492 = vunpack.c.l.bf16 %v316
      %v493 = vunpack.c.l.bf16 %v317
      %v494 = vunpack.c.h.bf16 %v317
      %v495 = vunpack.c.l.bf16 %v318
      %v496 = vunpack.c.h.bf16 %v318
      %v497 = vunpack.c.l.bf16 %v319
      %v498 = vunpack.c.h.bf16 %v319
      %v499 = vunpack.c.l.bf16 %v320
      %v500 = vunpack.c.h.bf16 %v320
      %v501 = vunpack.c.l.bf16 %v321
      %v502 = vunpack.c.l.bf16 %v322
      %v503 = vunpack.c.h.bf16 %v322
      %v504 = vunpack.c.l.bf16 %v323
      %v505 = vunpack.c.h.bf16 %v323
      %v506 = vunpack.c.l.bf16 %v324
      %v507 = vunpack.c.h.bf16 %v324
      %v508 = vunpack.c.l.bf16 %v325
      %v509 = vunpack.c.h.bf16 %v325
      %v510 = vunpack.c.l.bf16 %v326
      %v511 = vunpack.c.l.bf16 %v327
      %v512 = vunpack.c.h.bf16 %v327
      %v513 = vunpack.c.l.bf16 %v328
      %v514 = vunpack.c.h.bf16 %v328
      %v515 = vunpack.c.l.bf16 %v329
      %v516 = vunpack.c.h.bf16 %v329
      %v517 = vunpack.c.l.bf16 %v330
      %v518 = vunpack.c.h.bf16 %v330
      %v519 = vunpack.c.l.bf16 %v331
      %v520 = vunpack.c.l.bf16 %v332
      %v521 = vunpack.c.h.bf16 %v332
      %v522 = vunpack.c.l.bf16 %v333
      %v523 = vunpack.c.h.bf16 %v333
      %v524 = vunpack.c.l.bf16 %v334
      %v525 = vunpack.c.h.bf16 %v334
      %v526 = vunpack.c.l.bf16 %v335
      %v527 = vunpack.c.h.bf16 %v335
      %v528 = vunpack.c.l.bf16 %v336
      %v529 = vunpack.c.l.bf16 %v337
      %v530 = vunpack.c.h.bf16 %v337
      %v531 = vunpack.c.l.bf16 %v338
      %v532 = vunpack.c.h.bf16 %v338
      %v533 = vunpack.c.l.bf16 %v339
      %v534 = vunpack.c.h.bf16 %v339
      %v535 = vunpack.c.l.bf16 %v340
      %v536 = vunpack.c.h.bf16 %v340
      %v537 = vunpack.c.l.bf16 %v341
      %v538 = vunpack.c.l.bf16 %v342
      %v539 = vunpack.c.h.bf16 %v342
      %v540 = vunpack.c.l.bf16 %v343
      %v541 = vunpack.c.h.bf16 %v343
      %v542 = vunpack.c.l.bf16 %v344
      %v543 = vunpack.c.h.bf16 %v344
      %v544 = vunpack.c.l.bf16 %v345
      %v545 = vunpack.c.h.bf16 %v345
      %v546 = vunpack.c.l.bf16 %v346
      %v547 = vunpack.c.l.bf16 %v347
      %v548 = vunpack.c.h.bf16 %v347
      %v549 = vunpack.c.l.bf16 %v348
      %v550 = vunpack.c.h.bf16 %v348
      %v551 = vunpack.c.l.bf16 %v349
      %v552 = vunpack.c.h.bf16 %v349
      %v553 = vunpack.c.l.bf16 %v350
      %v554 = vunpack.c.h.bf16 %v350
      %v555 = vunpack.c.l.bf16 %v351
      %v556 = vunpack.c.l.bf16 %v352
      %v557 = vunpack.c.h.bf16 %v352
      %v558 = vunpack.c.l.bf16 %v353
      %v559 = vunpack.c.h.bf16 %v353
      %v560 = vunpack.c.l.bf16 %v354
      %v561 = vunpack.c.h.bf16 %v354
      %v562 = vunpack.c.l.bf16 %v355
      %v563 = vunpack.c.h.bf16 %v355
      %v564 = vunpack.c.l.bf16 %v356
      %v565 = vunpack.c.l.bf16 %v357
      %v566 = vunpack.c.h.bf16 %v357
      %v567 = vunpack.c.l.bf16 %v358
      %v568 = vunpack.c.h.bf16 %v358
      %v569 = vunpack.c.l.bf16 %v359
      %v570 = vunpack.c.h.bf16 %v359
      %v571 = vunpack.c.l.bf16 %v360
      %v572 = vunpack.c.h.bf16 %v360
      %v573 = vunpack.c.l.bf16 %v361
      %v574 = vunpack.c.l.bf16 %v362
      %v575 = vunpack.c.h.bf16 %v362
      %v576 = vunpack.c.l.bf16 %v363
      %v577 = vunpack.c.h.bf16 %v363
      %v578 = vunpack.c.l.bf16 %v364
      %v579 = vunpack.c.h.bf16 %v364
      %v580 = vunpack.c.l.bf16 %v365
      %v581 = vunpack.c.h.bf16 %v365
      %v582 = vunpack.c.l.bf16 %v366
      %v583 = vunpack.c.l.bf16 %v367
      %v584 = vunpack.c.h.bf16 %v367
      %v585 = vunpack.c.l.bf16 %v368
      %v586 = vunpack.c.h.bf16 %v368
      %v587 = vunpack.c.l.bf16 %v369
      %v588 = vunpack.c.h.bf16 %v369
      %v589 = vunpack.c.l.bf16 %v370
      %v590 = vunpack.c.h.bf16 %v370
      %v591 = vunpack.c.l.bf16 %v371
      %v592 = vunpack.c.l.bf16 %v372
      %v593 = vunpack.c.h.bf16 %v372
      %v594 = vunpack.c.l.bf16 %v373
      %v595 = vunpack.c.h.bf16 %v373
      %v596 = vunpack.c.l.bf16 %v374
      %v597 = vunpack.c.h.bf16 %v374
      %v598 = vunpack.c.l.bf16 %v375
      %v599 = vunpack.c.h.bf16 %v375
      %v600 = vunpack.c.l.bf16 %v376
      %v601 = vunpack.c.l.bf16 %v377
      %v602 = vunpack.c.h.bf16 %v377
      %v603 = vunpack.c.l.bf16 %v378
      %v604 = vunpack.c.h.bf16 %v378
      %v605 = vunpack.c.l.bf16 %v379
      %v606 = vunpack.c.h.bf16 %v379
      %v607 = vunpack.c.l.bf16 %v380
      %v608 = vunpack.c.h.bf16 %v380
      %v609 = vunpack.c.l.bf16 %v381
      %v610 = vunpack.c.l.bf16 %v382
      %v611 = vunpack.c.h.bf16 %v382
      %v612 = vunpack.c.l.bf16 %v383
      %v613 = vunpack.c.h.bf16 %v383
      %v614 = vunpack.c.l.bf16 %v384
      %v615 = vunpack.c.h.bf16 %v384
      %v616 = vunpack.c.l.bf16 %v385
      %v617 = vunpack.c.h.bf16 %v385
      %v618 = vunpack.c.l.bf16 %v386
      %v619 = vunpack.c.l.bf16 %v387
      %v620 = vunpack.c.h.bf16 %v387
      %v621 = vunpack.c.l.bf16 %v388
      %v622 = vunpack.c.h.bf16 %v388
      %v623 = vunpack.c.l.bf16 %v389
      %v624 = vunpack.c.h.bf16 %v389
      %v625 = vunpack.c.l.bf16 %v390
      %v626 = vunpack.c.h.bf16 %v390
      %v627 = vunpack.c.l.bf16 %v391
      %v628 = vunpack.c.l.bf16 %v392
      %v629 = vunpack.c.h.bf16 %v392
      %v630 = vunpack.c.l.bf16 %v393
      %v631 = vunpack.c.h.bf16 %v393
      %v632 = vunpack.c.l.bf16 %v394
      %v633 = vunpack.c.h.bf16 %v394
      %v634 = vunpack.c.l.bf16 %v395
      %v635 = vunpack.c.h.bf16 %v395
      %v636 = vunpack.c.l.bf16 %v396
      %v637 = vunpack.c.l.bf16 %v397
      %v638 = vunpack.c.h.bf16 %v397
      %v639 = vunpack.c.l.bf16 %v398
      %v640 = vunpack.c.h.bf16 %v398
      %v641 = vunpack.c.l.bf16 %v399
      %v642 = vunpack.c.h.bf16 %v399
      %v643 = vunpack.c.l.bf16 %v400
      %v644 = vunpack.c.h.bf16 %v400
      %v645 = vunpack.c.l.bf16 %v401
      %v646 = vunpack.c.l.bf16 %v402
      %v647 = vunpack.c.h.bf16 %v402
      %v648 = vunpack.c.l.bf16 %v403
      %v649 = vunpack.c.h.bf16 %v403
      %v650 = vunpack.c.l.bf16 %v404
      %v651 = vunpack.c.h.bf16 %v404
      %v652 = vunpack.c.l.bf16 %v405
      %v653 = vunpack.c.h.bf16 %v405
      %v654 = vunpack.c.l.bf16 %v406
      %v655 = vunpack.c.l.bf16 %v407
      %v656 = vunpack.c.h.bf16 %v407
      %v657 = vunpack.c.l.bf16 %v408
      %v658 = vunpack.c.h.bf16 %v408
      %v659 = vunpack.c.l.bf16 %v409
      %v660 = vunpack.c.h.bf16 %v409
      %v661 = vunpack.c.l.bf16 %v410
      %v662 = vunpack.c.h.bf16 %v410
      %v663 = vunpack.c.l.bf16 %v411
      %v664 = vunpack.c.l.bf16 %v412
      %v665 = vunpack.c.h.bf16 %v412
      %v666 = vunpack.c.l.bf16 %v413
      %v667 = vunpack.c.h.bf16 %v413
      %v668 = vunpack.c.l.bf16 %v414
      %v669 = vunpack.c.h.bf16 %v414
      %v670 = vunpack.c.l.bf16 %v415
      %v671 = vunpack.c.h.bf16 %v415
      %v672 = vunpack.c.l.bf16 %v416
      %v673 = vunpack.c.l.bf16 %v417
      %v674 = vunpack.c.h.bf16 %v417
      %v675 = vunpack.c.l.bf16 %v418
      %v676 = vunpack.c.h.bf16 %v418
      %v677 = vunpack.c.l.bf16 %v419
      %v678 = vunpack.c.h.bf16 %v419
      %v679 = vunpack.c.l.bf16 %v420
      %v680 = vunpack.c.h.bf16 %v420
      %v681 = vunpack.c.l.bf16 %v421
      %v682 = vunpack.c.l.bf16 %v422
      %v683 = vunpack.c.h.bf16 %v422
      %v684 = vunpack.c.l.bf16 %v423
      %v685 = vunpack.c.h.bf16 %v423
      %v686 = vunpack.c.l.bf16 %v424
      %v687 = vunpack.c.h.bf16 %v424
      %v688 = vunpack.c.l.bf16 %v425
      %v689 = vunpack.c.h.bf16 %v425
      %v690 = vunpack.c.l.bf16 %v426
      %v691 = vunpack.c.l.bf16 %v427
      %v692 = vunpack.c.h.bf16 %v427
      %v693 = vunpack.c.l.bf16 %v428
      %v694 = vunpack.c.h.bf16 %v428
      %v695 = vunpack.c.l.bf16 %v429
      %v696 = vunpack.c.h.bf16 %v429
      %v697 = vunpack.c.l.bf16 %v430
      %v698 = vunpack.c.h.bf16 %v430
      %v699 = vunpack.c.l.bf16 %v431
      %v700 = vunpack.c.l.bf16 %v432
      %v701 = vunpack.c.h.bf16 %v432
      %v702 = vunpack.c.l.bf16 %v433
      %v703 = vunpack.c.h.bf16 %v433
      %v704 = vunpack.c.l.bf16 %v434
      %v705 = vunpack.c.h.bf16 %v434
      %v706 = vunpack.c.l.bf16 %v435
      %v707 = vunpack.c.h.bf16 %v435
      %v708 = vunpack.c.l.bf16 %v436
      %v709 = vunpack.c.l.bf16 %v437
      %v710 = vunpack.c.h.bf16 %v437
      %v711 = vunpack.c.l.bf16 %v438
      %v712 = vunpack.c.h.bf16 %v438
      %v713 = vunpack.c.l.bf16 %v439
      %v714 = vunpack.c.h.bf16 %v439
      %v715 = vunpack.c.l.bf16 %v440
      %v716 = vunpack.c.h.bf16 %v440
      %v717 = vunpack.c.l.bf16 %v441
      %v718 = vunpack.c.l.bf16 %v442
      %v719 = vunpack.c.h.bf16 %v442
      %v720 = vunpack.c.l.bf16 %v443
      %v721 = vunpack.c.h.bf16 %v443
      %v722 = vunpack.c.l.bf16 %v444
      %v723 = vunpack.c.h.bf16 %v444
      %v724 = vunpack.c.l.bf16 %v445
      %v725 = vunpack.c.h.bf16 %v445
      %v726 = vunpack.c.l.bf16 %v446
      %v727 = vunpack.c.l.bf16 %v447
      %v728 = vunpack.c.h.bf16 %v447
      %v729 = vunpack.c.l.bf16 %v448
      %v730 = vunpack.c.h.bf16 %v448
      %v731 = vunpack.c.l.bf16 %v449
      %v732 = vunpack.c.h.bf16 %v449
      %v733 = vunpack.c.l.bf16 %v450
      %v734 = vunpack.c.h.bf16 %v450
      %v735 = vunpack.c.l.bf16 %v451
      %v736 = vunpack.c.l.bf16 %v452
      %v737 = vunpack.c.h.bf16 %v452
      %v738 = vunpack.c.l.bf16 %v453
      %v739 = vunpack.c.h.bf16 %v453
      %v740 = vunpack.c.l.bf16 %v454
      %v741 = vunpack.c.h.bf16 %v454
      %v742 = vunpack.c.l.bf16 %v455
      %v743 = vunpack.c.h.bf16 %v455
      %v744 = vunpack.c.l.bf16 %v456
      %v745 = vld [vmem:[%s1] sm:$0xff]
      %v746 = vld [vmem:[%s1 + $0x8] sm:$0x1]
      %v749 = vlaneseq
      %v750 = vshrl.u32 %v749, 7
      %v751 = vsub.s32 0, %v750
      %v752 = vrot.slane %v745, %v751
      %v753 = vlaneseq
      %v754 = vshrl.u32 %v753, 7
      %v755 = vsub.s32 1, %v754
      %v756 = vrot.slane %v745, %v755
      %v757 = vlaneseq
      %v758 = vshrl.u32 %v757, 7
      %v759 = vsub.s32 2, %v758
      %v760 = vrot.slane %v745, %v759
      %v761 = vlaneseq
      %v762 = vshrl.u32 %v761, 7
      %v763 = vsub.s32 3, %v762
      %v764 = vrot.slane %v745, %v763
      %v765 = vlaneseq
      %v766 = vshrl.u32 %v765, 7
      %v767 = vsub.s32 4, %v766
      %v768 = vrot.slane %v745, %v767
      %v769 = vlaneseq
      %v770 = vshrl.u32 %v769, 7
      %v771 = vsub.s32 5, %v770
      %v772 = vrot.slane %v745, %v771
      %v773 = vlaneseq
      %v774 = vshrl.u32 %v773, 7
      %v775 = vsub.s32 6, %v774
      %v776 = vrot.slane %v745, %v775
      %v777 = vlaneseq
      %v778 = vshrl.u32 %v777, 7
      %v779 = vsub.s32 7, %v778
      %v780 = vrot.slane %v745, %v779
      %v781 = vlaneseq
      %v782 = vshrl.u32 %v781, 7
      %v783 = vsub.s32 0, %v782
      %v784 = vrot.slane %v746, %v783
      %v794 = vmul.f32 %v457, %v752
      %v795 = vmul.f32 %v458, %v756
      %v796 = vmul.f32 %v459, %v760
      %v797 = vmul.f32 %v460, %v764
      %v798 = vmul.f32 %v461, %v768
      %v799 = vmul.f32 %v462, %v772
      %v800 = vmul.f32 %v463, %v776
      %v801 = vmul.f32 %v464, %v780
      %v802 = vmul.f32 %v465, %v784
      %v803 = vmul.f32 %v466, %v752
      %v804 = vmul.f32 %v467, %v756
      %v805 = vmul.f32 %v468, %v760
      %v806 = vmul.f32 %v469, %v764
      %v807 = vmul.f32 %v470, %v768
      %v808 = vmul.f32 %v471, %v772
      %v809 = vmul.f32 %v472, %v776
      %v810 = vmul.f32 %v473, %v780
      %v811 = vmul.f32 %v474, %v784
      %v812 = vmul.f32 %v475, %v752
      %v813 = vmul.f32 %v476, %v756
      %v814 = vmul.f32 %v477, %v760
      %v815 = vmul.f32 %v478, %v764
      %v816 = vmul.f32 %v479, %v768
      %v817 = vmul.f32 %v480, %v772
      %v818 = vmul.f32 %v481, %v776
      %v819 = vmul.f32 %v482, %v780
      %v820 = vmul.f32 %v483, %v784
      %v821 = vmul.f32 %v484, %v752
      %v822 = vmul.f32 %v485, %v756
      %v823 = vmul.f32 %v486, %v760
      %v824 = vmul.f32 %v487, %v764
      %v825 = vmul.f32 %v488, %v768
      %v826 = vmul.f32 %v489, %v772
      %v827 = vmul.f32 %v490, %v776
      %v828 = vmul.f32 %v491, %v780
      %v829 = vmul.f32 %v492, %v784
      %v830 = vmul.f32 %v493, %v752
      %v831 = vmul.f32 %v494, %v756
      %v832 = vmul.f32 %v495, %v760
      %v833 = vmul.f32 %v496, %v764
      %v834 = vmul.f32 %v497, %v768
      %v835 = vmul.f32 %v498, %v772
      %v836 = vmul.f32 %v499, %v776
      %v837 = vmul.f32 %v500, %v780
      %v838 = vmul.f32 %v501, %v784
      %v839 = vmul.f32 %v502, %v752
      %v840 = vmul.f32 %v503, %v756
      %v841 = vmul.f32 %v504, %v760
      %v842 = vmul.f32 %v505, %v764
      %v843 = vmul.f32 %v506, %v768
      %v844 = vmul.f32 %v507, %v772
      %v845 = vmul.f32 %v508, %v776
      %v846 = vmul.f32 %v509, %v780
      %v847 = vmul.f32 %v510, %v784
      %v848 = vmul.f32 %v511, %v752
      %v849 = vmul.f32 %v512, %v756
      %v850 = vmul.f32 %v513, %v760
      %v851 = vmul.f32 %v514, %v764
      %v852 = vmul.f32 %v515, %v768
      %v853 = vmul.f32 %v516, %v772
      %v854 = vmul.f32 %v517, %v776
      %v855 = vmul.f32 %v518, %v780
      %v856 = vmul.f32 %v519, %v784
      %v857 = vmul.f32 %v520, %v752
      %v858 = vmul.f32 %v521, %v756
      %v859 = vmul.f32 %v522, %v760
      %v860 = vmul.f32 %v523, %v764
      %v861 = vmul.f32 %v524, %v768
      %v862 = vmul.f32 %v525, %v772
      %v863 = vmul.f32 %v526, %v776
      %v864 = vmul.f32 %v527, %v780
      %v865 = vmul.f32 %v528, %v784
      %v866 = vmul.f32 %v529, %v752
      %v867 = vmul.f32 %v530, %v756
      %v868 = vmul.f32 %v531, %v760
      %v869 = vmul.f32 %v532, %v764
      %v870 = vmul.f32 %v533, %v768
      %v871 = vmul.f32 %v534, %v772
      %v872 = vmul.f32 %v535, %v776
      %v873 = vmul.f32 %v536, %v780
      %v874 = vmul.f32 %v537, %v784
      %v875 = vmul.f32 %v538, %v752
      %v876 = vmul.f32 %v539, %v756
      %v877 = vmul.f32 %v540, %v760
      %v878 = vmul.f32 %v541, %v764
      %v879 = vmul.f32 %v542, %v768
      %v880 = vmul.f32 %v543, %v772
      %v881 = vmul.f32 %v544, %v776
      %v882 = vmul.f32 %v545, %v780
      %v883 = vmul.f32 %v546, %v784
      %v884 = vmul.f32 %v547, %v752
      %v885 = vmul.f32 %v548, %v756
      %v886 = vmul.f32 %v549, %v760
      %v887 = vmul.f32 %v550, %v764
      %v888 = vmul.f32 %v551, %v768
      %v889 = vmul.f32 %v552, %v772
      %v890 = vmul.f32 %v553, %v776
      %v891 = vmul.f32 %v554, %v780
      %v892 = vmul.f32 %v555, %v784
      %v893 = vmul.f32 %v556, %v752
      %v894 = vmul.f32 %v557, %v756
      %v895 = vmul.f32 %v558, %v760
      %v896 = vmul.f32 %v559, %v764
      %v897 = vmul.f32 %v560, %v768
      %v898 = vmul.f32 %v561, %v772
      %v899 = vmul.f32 %v562, %v776
      %v900 = vmul.f32 %v563, %v780
      %v901 = vmul.f32 %v564, %v784
      %v902 = vmul.f32 %v565, %v752
      %v903 = vmul.f32 %v566, %v756
      %v904 = vmul.f32 %v567, %v760
      %v905 = vmul.f32 %v568, %v764
      %v906 = vmul.f32 %v569, %v768
      %v907 = vmul.f32 %v570, %v772
      %v908 = vmul.f32 %v571, %v776
      %v909 = vmul.f32 %v572, %v780
      %v910 = vmul.f32 %v573, %v784
      %v911 = vmul.f32 %v574, %v752
      %v912 = vmul.f32 %v575, %v756
      %v913 = vmul.f32 %v576, %v760
      %v914 = vmul.f32 %v577, %v764
      %v915 = vmul.f32 %v578, %v768
      %v916 = vmul.f32 %v579, %v772
      %v917 = vmul.f32 %v580, %v776
      %v918 = vmul.f32 %v581, %v780
      %v919 = vmul.f32 %v582, %v784
      %v920 = vmul.f32 %v583, %v752
      %v921 = vmul.f32 %v584, %v756
      %v922 = vmul.f32 %v585, %v760
      %v923 = vmul.f32 %v586, %v764
      %v924 = vmul.f32 %v587, %v768
      %v925 = vmul.f32 %v588, %v772
      %v926 = vmul.f32 %v589, %v776
      %v927 = vmul.f32 %v590, %v780
      %v928 = vmul.f32 %v591, %v784
      %v929 = vmul.f32 %v592, %v752
      %v930 = vmul.f32 %v593, %v756
      %v931 = vmul.f32 %v594, %v760
      %v932 = vmul.f32 %v595, %v764
      %v933 = vmul.f32 %v596, %v768
      %v934 = vmul.f32 %v597, %v772
      %v935 = vmul.f32 %v598, %v776
      %v936 = vmul.f32 %v599, %v780
      %v937 = vmul.f32 %v600, %v784
      %v938 = vmul.f32 %v601, %v752
      %v939 = vmul.f32 %v602, %v756
      %v940 = vmul.f32 %v603, %v760
      %v941 = vmul.f32 %v604, %v764
      %v942 = vmul.f32 %v605, %v768
      %v943 = vmul.f32 %v606, %v772
      %v944 = vmul.f32 %v607, %v776
      %v945 = vmul.f32 %v608, %v780
      %v946 = vmul.f32 %v609, %v784
      %v947 = vmul.f32 %v610, %v752
      %v948 = vmul.f32 %v611, %v756
      %v949 = vmul.f32 %v612, %v760
      %v950 = vmul.f32 %v613, %v764
      %v951 = vmul.f32 %v614, %v768
      %v952 = vmul.f32 %v615, %v772
      %v953 = vmul.f32 %v616, %v776
      %v954 = vmul.f32 %v617, %v780
      %v955 = vmul.f32 %v618, %v784
      %v956 = vmul.f32 %v619, %v752
      %v957 = vmul.f32 %v620, %v756
      %v958 = vmul.f32 %v621, %v760
      %v959 = vmul.f32 %v622, %v764
      %v960 = vmul.f32 %v623, %v768
      %v961 = vmul.f32 %v624, %v772
      %v962 = vmul.f32 %v625, %v776
      %v963 = vmul.f32 %v626, %v780
      %v964 = vmul.f32 %v627, %v784
      %v965 = vmul.f32 %v628, %v752
      %v966 = vmul.f32 %v629, %v756
      %v967 = vmul.f32 %v630, %v760
      %v968 = vmul.f32 %v631, %v764
      %v969 = vmul.f32 %v632, %v768
      %v970 = vmul.f32 %v633, %v772
      %v971 = vmul.f32 %v634, %v776
      %v972 = vmul.f32 %v635, %v780
      %v973 = vmul.f32 %v636, %v784
      %v974 = vmul.f32 %v637, %v752
      %v975 = vmul.f32 %v638, %v756
      %v976 = vmul.f32 %v639, %v760
      %v977 = vmul.f32 %v640, %v764
      %v978 = vmul.f32 %v641, %v768
      %v979 = vmul.f32 %v642, %v772
      %v980 = vmul.f32 %v643, %v776
      %v981 = vmul.f32 %v644, %v780
      %v982 = vmul.f32 %v645, %v784
      %v983 = vmul.f32 %v646, %v752
      %v984 = vmul.f32 %v647, %v756
      %v985 = vmul.f32 %v648, %v760
      %v986 = vmul.f32 %v649, %v764
      %v987 = vmul.f32 %v650, %v768
      %v988 = vmul.f32 %v651, %v772
      %v989 = vmul.f32 %v652, %v776
      %v990 = vmul.f32 %v653, %v780
      %v991 = vmul.f32 %v654, %v784
      %v992 = vmul.f32 %v655, %v752
      %v993 = vmul.f32 %v656, %v756
      %v994 = vmul.f32 %v657, %v760
      %v995 = vmul.f32 %v658, %v764
      %v996 = vmul.f32 %v659, %v768
      %v997 = vmul.f32 %v660, %v772
      %v998 = vmul.f32 %v661, %v776
      %v999 = vmul.f32 %v662, %v780
      %v1000 = vmul.f32 %v663, %v784
      %v1001 = vmul.f32 %v664, %v752
      %v1002 = vmul.f32 %v665, %v756
      %v1003 = vmul.f32 %v666, %v760
      %v1004 = vmul.f32 %v667, %v764
      %v1005 = vmul.f32 %v668, %v768
      %v1006 = vmul.f32 %v669, %v772
      %v1007 = vmul.f32 %v670, %v776
      %v1008 = vmul.f32 %v671, %v780
      %v1009 = vmul.f32 %v672, %v784
      %v1010 = vmul.f32 %v673, %v752
      %v1011 = vmul.f32 %v674, %v756
      %v1012 = vmul.f32 %v675, %v760
      %v1013 = vmul.f32 %v676, %v764
      %v1014 = vmul.f32 %v677, %v768
      %v1015 = vmul.f32 %v678, %v772
      %v1016 = vmul.f32 %v679, %v776
      %v1017 = vmul.f32 %v680, %v780
      %v1018 = vmul.f32 %v681, %v784
      %v1019 = vmul.f32 %v682, %v752
      %v1020 = vmul.f32 %v683, %v756
      %v1021 = vmul.f32 %v684, %v760
      %v1022 = vmul.f32 %v685, %v764
      %v1023 = vmul.f32 %v686, %v768
      %v1024 = vmul.f32 %v687, %v772
      %v1025 = vmul.f32 %v688, %v776
      %v1026 = vmul.f32 %v689, %v780
      %v1027 = vmul.f32 %v690, %v784
      %v1028 = vmul.f32 %v691, %v752
      %v1029 = vmul.f32 %v692, %v756
      %v1030 = vmul.f32 %v693, %v760
      %v1031 = vmul.f32 %v694, %v764
      %v1032 = vmul.f32 %v695, %v768
      %v1033 = vmul.f32 %v696, %v772
      %v1034 = vmul.f32 %v697, %v776
      %v1035 = vmul.f32 %v698, %v780
      %v1036 = vmul.f32 %v699, %v784
      %v1037 = vmul.f32 %v700, %v752
      %v1038 = vmul.f32 %v701, %v756
      %v1039 = vmul.f32 %v702, %v760
      %v1040 = vmul.f32 %v703, %v764
      %v1041 = vmul.f32 %v704, %v768
      %v1042 = vmul.f32 %v705, %v772
      %v1043 = vmul.f32 %v706, %v776
      %v1044 = vmul.f32 %v707, %v780
      %v1045 = vmul.f32 %v708, %v784
      %v1046 = vmul.f32 %v709, %v752
      %v1047 = vmul.f32 %v710, %v756
      %v1048 = vmul.f32 %v711, %v760
      %v1049 = vmul.f32 %v712, %v764
      %v1050 = vmul.f32 %v713, %v768
      %v1051 = vmul.f32 %v714, %v772
      %v1052 = vmul.f32 %v715, %v776
      %v1053 = vmul.f32 %v716, %v780
      %v1054 = vmul.f32 %v717, %v784
      %v1055 = vmul.f32 %v718, %v752
      %v1056 = vmul.f32 %v719, %v756
      %v1057 = vmul.f32 %v720, %v760
      %v1058 = vmul.f32 %v721, %v764
      %v1059 = vmul.f32 %v722, %v768
      %v1060 = vmul.f32 %v723, %v772
      %v1061 = vmul.f32 %v724, %v776
      %v1062 = vmul.f32 %v725, %v780
      %v1063 = vmul.f32 %v726, %v784
      %v1064 = vmul.f32 %v727, %v752
      %v1065 = vmul.f32 %v728, %v756
      %v1066 = vmul.f32 %v729, %v760
      %v1067 = vmul.f32 %v730, %v764
      %v1068 = vmul.f32 %v731, %v768
      %v1069 = vmul.f32 %v732, %v772
      %v1070 = vmul.f32 %v733, %v776
      %v1071 = vmul.f32 %v734, %v780
      %v1072 = vmul.f32 %v735, %v784
      %v1073 = vmul.f32 %v736, %v752
      %v1074 = vmul.f32 %v737, %v756
      %v1075 = vmul.f32 %v738, %v760
      %v1076 = vmul.f32 %v739, %v764
      %v1077 = vmul.f32 %v740, %v768
      %v1078 = vmul.f32 %v741, %v772
      %v1079 = vmul.f32 %v742, %v776
      %v1080 = vmul.f32 %v743, %v780
      %v1081 = vmul.f32 %v744, %v784
      %v1082 = vld [vmem:[%s2] sm:$0xff]
      %v1083 = vld [vmem:[%s2 + $0x8] sm:$0x1]
      %v1086 = vlaneseq
      %v1087 = vshrl.u32 %v1086, 7
      %v1088 = vsub.s32 0, %v1087
      %v1089 = vrot.slane %v1082, %v1088
      %v1090 = vlaneseq
      %v1091 = vshrl.u32 %v1090, 7
      %v1092 = vsub.s32 1, %v1091
      %v1093 = vrot.slane %v1082, %v1092
      %v1094 = vlaneseq
      %v1095 = vshrl.u32 %v1094, 7
      %v1096 = vsub.s32 2, %v1095
      %v1097 = vrot.slane %v1082, %v1096
      %v1098 = vlaneseq
      %v1099 = vshrl.u32 %v1098, 7
      %v1100 = vsub.s32 3, %v1099
      %v1101 = vrot.slane %v1082, %v1100
      %v1102 = vlaneseq
      %v1103 = vshrl.u32 %v1102, 7
      %v1104 = vsub.s32 4, %v1103
      %v1105 = vrot.slane %v1082, %v1104
      %v1106 = vlaneseq
      %v1107 = vshrl.u32 %v1106, 7
      %v1108 = vsub.s32 5, %v1107
      %v1109 = vrot.slane %v1082, %v1108
      %v1110 = vlaneseq
      %v1111 = vshrl.u32 %v1110, 7
      %v1112 = vsub.s32 6, %v1111
      %v1113 = vrot.slane %v1082, %v1112
      %v1114 = vlaneseq
      %v1115 = vshrl.u32 %v1114, 7
      %v1116 = vsub.s32 7, %v1115
      %v1117 = vrot.slane %v1082, %v1116
      %v1118 = vlaneseq
      %v1119 = vshrl.u32 %v1118, 7
      %v1120 = vsub.s32 0, %v1119
      %v1121 = vrot.slane %v1083, %v1120
      %v1131 = vadd.f32 %v794, %v1089
      %v1132 = vadd.f32 %v795, %v1093
      %v1133 = vadd.f32 %v796, %v1097
      %v1134 = vadd.f32 %v797, %v1101
      %v1135 = vadd.f32 %v798, %v1105
      %v1136 = vadd.f32 %v799, %v1109
      %v1137 = vadd.f32 %v800, %v1113
      %v1138 = vadd.f32 %v801, %v1117
      %v1139 = vadd.f32 %v802, %v1121
      %v1140 = vadd.f32 %v803, %v1089
      %v1141 = vadd.f32 %v804, %v1093
      %v1142 = vadd.f32 %v805, %v1097
      %v1143 = vadd.f32 %v806, %v1101
      %v1144 = vadd.f32 %v807, %v1105
      %v1145 = vadd.f32 %v808, %v1109
      %v1146 = vadd.f32 %v809, %v1113
      %v1147 = vadd.f32 %v810, %v1117
      %v1148 = vadd.f32 %v811, %v1121
      %v1149 = vadd.f32 %v812, %v1089
      %v1150 = vadd.f32 %v813, %v1093
      %v1151 = vadd.f32 %v814, %v1097
      %v1152 = vadd.f32 %v815, %v1101
      %v1153 = vadd.f32 %v816, %v1105
      %v1154 = vadd.f32 %v817, %v1109
      %v1155 = vadd.f32 %v818, %v1113
      %v1156 = vadd.f32 %v819, %v1117
      %v1157 = vadd.f32 %v820, %v1121
      %v1158 = vadd.f32 %v821, %v1089
      %v1159 = vadd.f32 %v822, %v1093
      %v1160 = vadd.f32 %v823, %v1097
      %v1161 = vadd.f32 %v824, %v1101
      %v1162 = vadd.f32 %v825, %v1105
      %v1163 = vadd.f32 %v826, %v1109
      %v1164 = vadd.f32 %v827, %v1113
      %v1165 = vadd.f32 %v828, %v1117
      %v1166 = vadd.f32 %v829, %v1121
      %v1167 = vadd.f32 %v830, %v1089
      %v1168 = vadd.f32 %v831, %v1093
      %v1169 = vadd.f32 %v832, %v1097
      %v1170 = vadd.f32 %v833, %v1101
      %v1171 = vadd.f32 %v834, %v1105
      %v1172 = vadd.f32 %v835, %v1109
      %v1173 = vadd.f32 %v836, %v1113
      %v1174 = vadd.f32 %v837, %v1117
      %v1175 = vadd.f32 %v838, %v1121
      %v1176 = vadd.f32 %v839, %v1089
      %v1177 = vadd.f32 %v840, %v1093
      %v1178 = vadd.f32 %v841, %v1097
      %v1179 = vadd.f32 %v842, %v1101
      %v1180 = vadd.f32 %v843, %v1105
      %v1181 = vadd.f32 %v844, %v1109
      %v1182 = vadd.f32 %v845, %v1113
      %v1183 = vadd.f32 %v846, %v1117
      %v1184 = vadd.f32 %v847, %v1121
      %v1185 = vadd.f32 %v848, %v1089
      %v1186 = vadd.f32 %v849, %v1093
      %v1187 = vadd.f32 %v850, %v1097
      %v1188 = vadd.f32 %v851, %v1101
      %v1189 = vadd.f32 %v852, %v1105
      %v1190 = vadd.f32 %v853, %v1109
      %v1191 = vadd.f32 %v854, %v1113
      %v1192 = vadd.f32 %v855, %v1117
      %v1193 = vadd.f32 %v856, %v1121
      %v1194 = vadd.f32 %v857, %v1089
      %v1195 = vadd.f32 %v858, %v1093
      %v1196 = vadd.f32 %v859, %v1097
      %v1197 = vadd.f32 %v860, %v1101
      %v1198 = vadd.f32 %v861, %v1105
      %v1199 = vadd.f32 %v862, %v1109
      %v1200 = vadd.f32 %v863, %v1113
      %v1201 = vadd.f32 %v864, %v1117
      %v1202 = vadd.f32 %v865, %v1121
      %v1203 = vadd.f32 %v866, %v1089
      %v1204 = vadd.f32 %v867, %v1093
      %v1205 = vadd.f32 %v868, %v1097
      %v1206 = vadd.f32 %v869, %v1101
      %v1207 = vadd.f32 %v870, %v1105
      %v1208 = vadd.f32 %v871, %v1109
      %v1209 = vadd.f32 %v872, %v1113
      %v1210 = vadd.f32 %v873, %v1117
      %v1211 = vadd.f32 %v874, %v1121
      %v1212 = vadd.f32 %v875, %v1089
      %v1213 = vadd.f32 %v876, %v1093
      %v1214 = vadd.f32 %v877, %v1097
      %v1215 = vadd.f32 %v878, %v1101
      %v1216 = vadd.f32 %v879, %v1105
      %v1217 = vadd.f32 %v880, %v1109
      %v1218 = vadd.f32 %v881, %v1113
      %v1219 = vadd.f32 %v882, %v1117
      %v1220 = vadd.f32 %v883, %v1121
      %v1221 = vadd.f32 %v884, %v1089
      %v1222 = vadd.f32 %v885, %v1093
      %v1223 = vadd.f32 %v886, %v1097
      %v1224 = vadd.f32 %v887, %v1101
      %v1225 = vadd.f32 %v888, %v1105
      %v1226 = vadd.f32 %v889, %v1109
      %v1227 = vadd.f32 %v890, %v1113
      %v1228 = vadd.f32 %v891, %v1117
      %v1229 = vadd.f32 %v892, %v1121
      %v1230 = vadd.f32 %v893, %v1089
      %v1231 = vadd.f32 %v894, %v1093
      %v1232 = vadd.f32 %v895, %v1097
      %v1233 = vadd.f32 %v896, %v1101
      %v1234 = vadd.f32 %v897, %v1105
      %v1235 = vadd.f32 %v898, %v1109
      %v1236 = vadd.f32 %v899, %v1113
      %v1237 = vadd.f32 %v900, %v1117
      %v1238 = vadd.f32 %v901, %v1121
      %v1239 = vadd.f32 %v902, %v1089
      %v1240 = vadd.f32 %v903, %v1093
      %v1241 = vadd.f32 %v904, %v1097
      %v1242 = vadd.f32 %v905, %v1101
      %v1243 = vadd.f32 %v906, %v1105
      %v1244 = vadd.f32 %v907, %v1109
      %v1245 = vadd.f32 %v908, %v1113
      %v1246 = vadd.f32 %v909, %v1117
      %v1247 = vadd.f32 %v910, %v1121
      %v1248 = vadd.f32 %v911, %v1089
      %v1249 = vadd.f32 %v912, %v1093
      %v1250 = vadd.f32 %v913, %v1097
      %v1251 = vadd.f32 %v914, %v1101
      %v1252 = vadd.f32 %v915, %v1105
      %v1253 = vadd.f32 %v916, %v1109
      %v1254 = vadd.f32 %v917, %v1113
      %v1255 = vadd.f32 %v918, %v1117
      %v1256 = vadd.f32 %v919, %v1121
      %v1257 = vadd.f32 %v920, %v1089
      %v1258 = vadd.f32 %v921, %v1093
      %v1259 = vadd.f32 %v922, %v1097
      %v1260 = vadd.f32 %v923, %v1101
      %v1261 = vadd.f32 %v924, %v1105
      %v1262 = vadd.f32 %v925, %v1109
      %v1263 = vadd.f32 %v926, %v1113
      %v1264 = vadd.f32 %v927, %v1117
      %v1265 = vadd.f32 %v928, %v1121
      %v1266 = vadd.f32 %v929, %v1089
      %v1267 = vadd.f32 %v930, %v1093
      %v1268 = vadd.f32 %v931, %v1097
      %v1269 = vadd.f32 %v932, %v1101
      %v1270 = vadd.f32 %v933, %v1105
      %v1271 = vadd.f32 %v934, %v1109
      %v1272 = vadd.f32 %v935, %v1113
      %v1273 = vadd.f32 %v936, %v1117
      %v1274 = vadd.f32 %v937, %v1121
      %v1275 = vadd.f32 %v938, %v1089
      %v1276 = vadd.f32 %v939, %v1093
      %v1277 = vadd.f32 %v940, %v1097
      %v1278 = vadd.f32 %v941, %v1101
      %v1279 = vadd.f32 %v942, %v1105
      %v1280 = vadd.f32 %v943, %v1109
      %v1281 = vadd.f32 %v944, %v1113
      %v1282 = vadd.f32 %v945, %v1117
      %v1283 = vadd.f32 %v946, %v1121
      %v1284 = vadd.f32 %v947, %v1089
      %v1285 = vadd.f32 %v948, %v1093
      %v1286 = vadd.f32 %v949, %v1097
      %v1287 = vadd.f32 %v950, %v1101
      %v1288 = vadd.f32 %v951, %v1105
      %v1289 = vadd.f32 %v952, %v1109
      %v1290 = vadd.f32 %v953, %v1113
      %v1291 = vadd.f32 %v954, %v1117
      %v1292 = vadd.f32 %v955, %v1121
      %v1293 = vadd.f32 %v956, %v1089
      %v1294 = vadd.f32 %v957, %v1093
      %v1295 = vadd.f32 %v958, %v1097
      %v1296 = vadd.f32 %v959, %v1101
      %v1297 = vadd.f32 %v960, %v1105
      %v1298 = vadd.f32 %v961, %v1109
      %v1299 = vadd.f32 %v962, %v1113
      %v1300 = vadd.f32 %v963, %v1117
      %v1301 = vadd.f32 %v964, %v1121
      %v1302 = vadd.f32 %v965, %v1089
      %v1303 = vadd.f32 %v966, %v1093
      %v1304 = vadd.f32 %v967, %v1097
      %v1305 = vadd.f32 %v968, %v1101
      %v1306 = vadd.f32 %v969, %v1105
      %v1307 = vadd.f32 %v970, %v1109
      %v1308 = vadd.f32 %v971, %v1113
      %v1309 = vadd.f32 %v972, %v1117
      %v1310 = vadd.f32 %v973, %v1121
      %v1311 = vadd.f32 %v974, %v1089
      %v1312 = vadd.f32 %v975, %v1093
      %v1313 = vadd.f32 %v976, %v1097
      %v1314 = vadd.f32 %v977, %v1101
      %v1315 = vadd.f32 %v978, %v1105
      %v1316 = vadd.f32 %v979, %v1109
      %v1317 = vadd.f32 %v980, %v1113
      %v1318 = vadd.f32 %v981, %v1117
      %v1319 = vadd.f32 %v982, %v1121
      %v1320 = vadd.f32 %v983, %v1089
      %v1321 = vadd.f32 %v984, %v1093
      %v1322 = vadd.f32 %v985, %v1097
      %v1323 = vadd.f32 %v986, %v1101
      %v1324 = vadd.f32 %v987, %v1105
      %v1325 = vadd.f32 %v988, %v1109
      %v1326 = vadd.f32 %v989, %v1113
      %v1327 = vadd.f32 %v990, %v1117
      %v1328 = vadd.f32 %v991, %v1121
      %v1329 = vadd.f32 %v992, %v1089
      %v1330 = vadd.f32 %v993, %v1093
      %v1331 = vadd.f32 %v994, %v1097
      %v1332 = vadd.f32 %v995, %v1101
      %v1333 = vadd.f32 %v996, %v1105
      %v1334 = vadd.f32 %v997, %v1109
      %v1335 = vadd.f32 %v998, %v1113
      %v1336 = vadd.f32 %v999, %v1117
      %v1337 = vadd.f32 %v1000, %v1121
      %v1338 = vadd.f32 %v1001, %v1089
      %v1339 = vadd.f32 %v1002, %v1093
      %v1340 = vadd.f32 %v1003, %v1097
      %v1341 = vadd.f32 %v1004, %v1101
      %v1342 = vadd.f32 %v1005, %v1105
      %v1343 = vadd.f32 %v1006, %v1109
      %v1344 = vadd.f32 %v1007, %v1113
      %v1345 = vadd.f32 %v1008, %v1117
      %v1346 = vadd.f32 %v1009, %v1121
      %v1347 = vadd.f32 %v1010, %v1089
      %v1348 = vadd.f32 %v1011, %v1093
      %v1349 = vadd.f32 %v1012, %v1097
      %v1350 = vadd.f32 %v1013, %v1101
      %v1351 = vadd.f32 %v1014, %v1105
      %v1352 = vadd.f32 %v1015, %v1109
      %v1353 = vadd.f32 %v1016, %v1113
      %v1354 = vadd.f32 %v1017, %v1117
      %v1355 = vadd.f32 %v1018, %v1121
      %v1356 = vadd.f32 %v1019, %v1089
      %v1357 = vadd.f32 %v1020, %v1093
      %v1358 = vadd.f32 %v1021, %v1097
      %v1359 = vadd.f32 %v1022, %v1101
      %v1360 = vadd.f32 %v1023, %v1105
      %v1361 = vadd.f32 %v1024, %v1109
      %v1362 = vadd.f32 %v1025, %v1113
      %v1363 = vadd.f32 %v1026, %v1117
      %v1364 = vadd.f32 %v1027, %v1121
      %v1365 = vadd.f32 %v1028, %v1089
      %v1366 = vadd.f32 %v1029, %v1093
      %v1367 = vadd.f32 %v1030, %v1097
      %v1368 = vadd.f32 %v1031, %v1101
      %v1369 = vadd.f32 %v1032, %v1105
      %v1370 = vadd.f32 %v1033, %v1109
      %v1371 = vadd.f32 %v1034, %v1113
      %v1372 = vadd.f32 %v1035, %v1117
      %v1373 = vadd.f32 %v1036, %v1121
      %v1374 = vadd.f32 %v1037, %v1089
      %v1375 = vadd.f32 %v1038, %v1093
      %v1376 = vadd.f32 %v1039, %v1097
      %v1377 = vadd.f32 %v1040, %v1101
      %v1378 = vadd.f32 %v1041, %v1105
      %v1379 = vadd.f32 %v1042, %v1109
      %v1380 = vadd.f32 %v1043, %v1113
      %v1381 = vadd.f32 %v1044, %v1117
      %v1382 = vadd.f32 %v1045, %v1121
      %v1383 = vadd.f32 %v1046, %v1089
      %v1384 = vadd.f32 %v1047, %v1093
      %v1385 = vadd.f32 %v1048, %v1097
      %v1386 = vadd.f32 %v1049, %v1101
      %v1387 = vadd.f32 %v1050, %v1105
      %v1388 = vadd.f32 %v1051, %v1109
      %v1389 = vadd.f32 %v1052, %v1113
      %v1390 = vadd.f32 %v1053, %v1117
      %v1391 = vadd.f32 %v1054, %v1121
      %v1392 = vadd.f32 %v1055, %v1089
      %v1393 = vadd.f32 %v1056, %v1093
      %v1394 = vadd.f32 %v1057, %v1097
      %v1395 = vadd.f32 %v1058, %v1101
      %v1396 = vadd.f32 %v1059, %v1105
      %v1397 = vadd.f32 %v1060, %v1109
      %v1398 = vadd.f32 %v1061, %v1113
      %v1399 = vadd.f32 %v1062, %v1117
      %v1400 = vadd.f32 %v1063, %v1121
      %v1401 = vadd.f32 %v1064, %v1089
      %v1402 = vadd.f32 %v1065, %v1093
      %v1403 = vadd.f32 %v1066, %v1097
      %v1404 = vadd.f32 %v1067, %v1101
      %v1405 = vadd.f32 %v1068, %v1105
      %v1406 = vadd.f32 %v1069, %v1109
      %v1407 = vadd.f32 %v1070, %v1113
      %v1408 = vadd.f32 %v1071, %v1117
      %v1409 = vadd.f32 %v1072, %v1121
      %v1410 = vadd.f32 %v1073, %v1089
      %v1411 = vadd.f32 %v1074, %v1093
      %v1412 = vadd.f32 %v1075, %v1097
      %v1413 = vadd.f32 %v1076, %v1101
      %v1414 = vadd.f32 %v1077, %v1105
      %v1415 = vadd.f32 %v1078, %v1109
      %v1416 = vadd.f32 %v1079, %v1113
      %v1417 = vadd.f32 %v1080, %v1117
      %v1418 = vadd.f32 %v1081, %v1121
      %v1419 = vmax.f32 %v1131, 0.0
      %v1420 = vmax.f32 %v1132, 0.0
      %v1421 = vmax.f32 %v1133, 0.0
      %v1422 = vmax.f32 %v1134, 0.0
      %v1423 = vmax.f32 %v1135, 0.0
      %v1424 = vmax.f32 %v1136, 0.0
      %v1425 = vmax.f32 %v1137, 0.0
      %v1426 = vmax.f32 %v1138, 0.0
      %v1427 = vmax.f32 %v1139, 0.0
      %v1428 = vmax.f32 %v1140, 0.0
      %v1429 = vmax.f32 %v1141, 0.0
      %v1430 = vmax.f32 %v1142, 0.0
      %v1431 = vmax.f32 %v1143, 0.0
      %v1432 = vmax.f32 %v1144, 0.0
      %v1433 = vmax.f32 %v1145, 0.0
      %v1434 = vmax.f32 %v1146, 0.0
      %v1435 = vmax.f32 %v1147, 0.0
      %v1436 = vmax.f32 %v1148, 0.0
      %v1437 = vmax.f32 %v1149, 0.0
      %v1438 = vmax.f32 %v1150, 0.0
      %v1439 = vmax.f32 %v1151, 0.0
      %v1440 = vmax.f32 %v1152, 0.0
      %v1441 = vmax.f32 %v1153, 0.0
      %v1442 = vmax.f32 %v1154, 0.0
      %v1443 = vmax.f32 %v1155, 0.0
      %v1444 = vmax.f32 %v1156, 0.0
      %v1445 = vmax.f32 %v1157, 0.0
      %v1446 = vmax.f32 %v1158, 0.0
      %v1447 = vmax.f32 %v1159, 0.0
      %v1448 = vmax.f32 %v1160, 0.0
      %v1449 = vmax.f32 %v1161, 0.0
      %v1450 = vmax.f32 %v1162, 0.0
      %v1451 = vmax.f32 %v1163, 0.0
      %v1452 = vmax.f32 %v1164, 0.0
      %v1453 = vmax.f32 %v1165, 0.0
      %v1454 = vmax.f32 %v1166, 0.0
      %v1455 = vmax.f32 %v1167, 0.0
      %v1456 = vmax.f32 %v1168, 0.0
      %v1457 = vmax.f32 %v1169, 0.0
      %v1458 = vmax.f32 %v1170, 0.0
      %v1459 = vmax.f32 %v1171, 0.0
      %v1460 = vmax.f32 %v1172, 0.0
      %v1461 = vmax.f32 %v1173, 0.0
      %v1462 = vmax.f32 %v1174, 0.0
      %v1463 = vmax.f32 %v1175, 0.0
      %v1464 = vmax.f32 %v1176, 0.0
      %v1465 = vmax.f32 %v1177, 0.0
      %v1466 = vmax.f32 %v1178, 0.0
      %v1467 = vmax.f32 %v1179, 0.0
      %v1468 = vmax.f32 %v1180, 0.0
      %v1469 = vmax.f32 %v1181, 0.0
      %v1470 = vmax.f32 %v1182, 0.0
      %v1471 = vmax.f32 %v1183, 0.0
      %v1472 = vmax.f32 %v1184, 0.0
      %v1473 = vmax.f32 %v1185, 0.0
      %v1474 = vmax.f32 %v1186, 0.0
      %v1475 = vmax.f32 %v1187, 0.0
      %v1476 = vmax.f32 %v1188, 0.0
      %v1477 = vmax.f32 %v1189, 0.0
      %v1478 = vmax.f32 %v1190, 0.0
      %v1479 = vmax.f32 %v1191, 0.0
      %v1480 = vmax.f32 %v1192, 0.0
      %v1481 = vmax.f32 %v1193, 0.0
      %v1482 = vmax.f32 %v1194, 0.0
      %v1483 = vmax.f32 %v1195, 0.0
      %v1484 = vmax.f32 %v1196, 0.0
      %v1485 = vmax.f32 %v1197, 0.0
      %v1486 = vmax.f32 %v1198, 0.0
      %v1487 = vmax.f32 %v1199, 0.0
      %v1488 = vmax.f32 %v1200, 0.0
      %v1489 = vmax.f32 %v1201, 0.0
      %v1490 = vmax.f32 %v1202, 0.0
      %v1491 = vmax.f32 %v1203, 0.0
      %v1492 = vmax.f32 %v1204, 0.0
      %v1493 = vmax.f32 %v1205, 0.0
      %v1494 = vmax.f32 %v1206, 0.0
      %v1495 = vmax.f32 %v1207, 0.0
      %v1496 = vmax.f32 %v1208, 0.0
      %v1497 = vmax.f32 %v1209, 0.0
      %v1498 = vmax.f32 %v1210, 0.0
      %v1499 = vmax.f32 %v1211, 0.0
      %v1500 = vmax.f32 %v1212, 0.0
      %v1501 = vmax.f32 %v1213, 0.0
      %v1502 = vmax.f32 %v1214, 0.0
      %v1503 = vmax.f32 %v1215, 0.0
      %v1504 = vmax.f32 %v1216, 0.0
      %v1505 = vmax.f32 %v1217, 0.0
      %v1506 = vmax.f32 %v1218, 0.0
      %v1507 = vmax.f32 %v1219, 0.0
      %v1508 = vmax.f32 %v1220, 0.0
      %v1509 = vmax.f32 %v1221, 0.0
      %v1510 = vmax.f32 %v1222, 0.0
      %v1511 = vmax.f32 %v1223, 0.0
      %v1512 = vmax.f32 %v1224, 0.0
      %v1513 = vmax.f32 %v1225, 0.0
      %v1514 = vmax.f32 %v1226, 0.0
      %v1515 = vmax.f32 %v1227, 0.0
      %v1516 = vmax.f32 %v1228, 0.0
      %v1517 = vmax.f32 %v1229, 0.0
      %v1518 = vmax.f32 %v1230, 0.0
      %v1519 = vmax.f32 %v1231, 0.0
      %v1520 = vmax.f32 %v1232, 0.0
      %v1521 = vmax.f32 %v1233, 0.0
      %v1522 = vmax.f32 %v1234, 0.0
      %v1523 = vmax.f32 %v1235, 0.0
      %v1524 = vmax.f32 %v1236, 0.0
      %v1525 = vmax.f32 %v1237, 0.0
      %v1526 = vmax.f32 %v1238, 0.0
      %v1527 = vmax.f32 %v1239, 0.0
      %v1528 = vmax.f32 %v1240, 0.0
      %v1529 = vmax.f32 %v1241, 0.0
      %v1530 = vmax.f32 %v1242, 0.0
      %v1531 = vmax.f32 %v1243, 0.0
      %v1532 = vmax.f32 %v1244, 0.0
      %v1533 = vmax.f32 %v1245, 0.0
      %v1534 = vmax.f32 %v1246, 0.0
      %v1535 = vmax.f32 %v1247, 0.0
      %v1536 = vmax.f32 %v1248, 0.0
      %v1537 = vmax.f32 %v1249, 0.0
      %v1538 = vmax.f32 %v1250, 0.0
      %v1539 = vmax.f32 %v1251, 0.0
      %v1540 = vmax.f32 %v1252, 0.0
      %v1541 = vmax.f32 %v1253, 0.0
      %v1542 = vmax.f32 %v1254, 0.0
      %v1543 = vmax.f32 %v1255, 0.0
      %v1544 = vmax.f32 %v1256, 0.0
      %v1545 = vmax.f32 %v1257, 0.0
      %v1546 = vmax.f32 %v1258, 0.0
      %v1547 = vmax.f32 %v1259, 0.0
      %v1548 = vmax.f32 %v1260, 0.0
      %v1549 = vmax.f32 %v1261, 0.0
      %v1550 = vmax.f32 %v1262, 0.0
      %v1551 = vmax.f32 %v1263, 0.0
      %v1552 = vmax.f32 %v1264, 0.0
      %v1553 = vmax.f32 %v1265, 0.0
      %v1554 = vmax.f32 %v1266, 0.0
      %v1555 = vmax.f32 %v1267, 0.0
      %v1556 = vmax.f32 %v1268, 0.0
      %v1557 = vmax.f32 %v1269, 0.0
      %v1558 = vmax.f32 %v1270, 0.0
      %v1559 = vmax.f32 %v1271, 0.0
      %v1560 = vmax.f32 %v1272, 0.0
      %v1561 = vmax.f32 %v1273, 0.0
      %v1562 = vmax.f32 %v1274, 0.0
      %v1563 = vmax.f32 %v1275, 0.0
      %v1564 = vmax.f32 %v1276, 0.0
      %v1565 = vmax.f32 %v1277, 0.0
      %v1566 = vmax.f32 %v1278, 0.0
      %v1567 = vmax.f32 %v1279, 0.0
      %v1568 = vmax.f32 %v1280, 0.0
      %v1569 = vmax.f32 %v1281, 0.0
      %v1570 = vmax.f32 %v1282, 0.0
      %v1571 = vmax.f32 %v1283, 0.0
      %v1572 = vmax.f32 %v1284, 0.0
      %v1573 = vmax.f32 %v1285, 0.0
      %v1574 = vmax.f32 %v1286, 0.0
      %v1575 = vmax.f32 %v1287, 0.0
      %v1576 = vmax.f32 %v1288, 0.0
      %v1577 = vmax.f32 %v1289, 0.0
      %v1578 = vmax.f32 %v1290, 0.0
      %v1579 = vmax.f32 %v1291, 0.0
      %v1580 = vmax.f32 %v1292, 0.0
      %v1581 = vmax.f32 %v1293, 0.0
      %v1582 = vmax.f32 %v1294, 0.0
      %v1583 = vmax.f32 %v1295, 0.0
      %v1584 = vmax.f32 %v1296, 0.0
      %v1585 = vmax.f32 %v1297, 0.0
      %v1586 = vmax.f32 %v1298, 0.0
      %v1587 = vmax.f32 %v1299, 0.0
      %v1588 = vmax.f32 %v1300, 0.0
      %v1589 = vmax.f32 %v1301, 0.0
      %v1590 = vmax.f32 %v1302, 0.0
      %v1591 = vmax.f32 %v1303, 0.0
      %v1592 = vmax.f32 %v1304, 0.0
      %v1593 = vmax.f32 %v1305, 0.0
      %v1594 = vmax.f32 %v1306, 0.0
      %v1595 = vmax.f32 %v1307, 0.0
      %v1596 = vmax.f32 %v1308, 0.0
      %v1597 = vmax.f32 %v1309, 0.0
      %v1598 = vmax.f32 %v1310, 0.0
      %v1599 = vmax.f32 %v1311, 0.0
      %v1600 = vmax.f32 %v1312, 0.0
      %v1601 = vmax.f32 %v1313, 0.0
      %v1602 = vmax.f32 %v1314, 0.0
      %v1603 = vmax.f32 %v1315, 0.0
      %v1604 = vmax.f32 %v1316, 0.0
      %v1605 = vmax.f32 %v1317, 0.0
      %v1606 = vmax.f32 %v1318, 0.0
      %v1607 = vmax.f32 %v1319, 0.0
      %v1608 = vmax.f32 %v1320, 0.0
      %v1609 = vmax.f32 %v1321, 0.0
      %v1610 = vmax.f32 %v1322, 0.0
      %v1611 = vmax.f32 %v1323, 0.0
      %v1612 = vmax.f32 %v1324, 0.0
      %v1613 = vmax.f32 %v1325, 0.0
      %v1614 = vmax.f32 %v1326, 0.0
      %v1615 = vmax.f32 %v1327, 0.0
      %v1616 = vmax.f32 %v1328, 0.0
      %v1617 = vmax.f32 %v1329, 0.0
      %v1618 = vmax.f32 %v1330, 0.0
      %v1619 = vmax.f32 %v1331, 0.0
      %v1620 = vmax.f32 %v1332, 0.0
      %v1621 = vmax.f32 %v1333, 0.0
      %v1622 = vmax.f32 %v1334, 0.0
      %v1623 = vmax.f32 %v1335, 0.0
      %v1624 = vmax.f32 %v1336, 0.0
      %v1625 = vmax.f32 %v1337, 0.0
      %v1626 = vmax.f32 %v1338, 0.0
      %v1627 = vmax.f32 %v1339, 0.0
      %v1628 = vmax.f32 %v1340, 0.0
      %v1629 = vmax.f32 %v1341, 0.0
      %v1630 = vmax.f32 %v1342, 0.0
      %v1631 = vmax.f32 %v1343, 0.0
      %v1632 = vmax.f32 %v1344, 0.0
      %v1633 = vmax.f32 %v1345, 0.0
      %v1634 = vmax.f32 %v1346, 0.0
      %v1635 = vmax.f32 %v1347, 0.0
      %v1636 = vmax.f32 %v1348, 0.0
      %v1637 = vmax.f32 %v1349, 0.0
      %v1638 = vmax.f32 %v1350, 0.0
      %v1639 = vmax.f32 %v1351, 0.0
      %v1640 = vmax.f32 %v1352, 0.0
      %v1641 = vmax.f32 %v1353, 0.0
      %v1642 = vmax.f32 %v1354, 0.0
      %v1643 = vmax.f32 %v1355, 0.0
      %v1644 = vmax.f32 %v1356, 0.0
      %v1645 = vmax.f32 %v1357, 0.0
      %v1646 = vmax.f32 %v1358, 0.0
      %v1647 = vmax.f32 %v1359, 0.0
      %v1648 = vmax.f32 %v1360, 0.0
      %v1649 = vmax.f32 %v1361, 0.0
      %v1650 = vmax.f32 %v1362, 0.0
      %v1651 = vmax.f32 %v1363, 0.0
      %v1652 = vmax.f32 %v1364, 0.0
      %v1653 = vmax.f32 %v1365, 0.0
      %v1654 = vmax.f32 %v1366, 0.0
      %v1655 = vmax.f32 %v1367, 0.0
      %v1656 = vmax.f32 %v1368, 0.0
      %v1657 = vmax.f32 %v1369, 0.0
      %v1658 = vmax.f32 %v1370, 0.0
      %v1659 = vmax.f32 %v1371, 0.0
      %v1660 = vmax.f32 %v1372, 0.0
      %v1661 = vmax.f32 %v1373, 0.0
      %v1662 = vmax.f32 %v1374, 0.0
      %v1663 = vmax.f32 %v1375, 0.0
      %v1664 = vmax.f32 %v1376, 0.0
      %v1665 = vmax.f32 %v1377, 0.0
      %v1666 = vmax.f32 %v1378, 0.0
      %v1667 = vmax.f32 %v1379, 0.0
      %v1668 = vmax.f32 %v1380, 0.0
      %v1669 = vmax.f32 %v1381, 0.0
      %v1670 = vmax.f32 %v1382, 0.0
      %v1671 = vmax.f32 %v1383, 0.0
      %v1672 = vmax.f32 %v1384, 0.0
      %v1673 = vmax.f32 %v1385, 0.0
      %v1674 = vmax.f32 %v1386, 0.0
      %v1675 = vmax.f32 %v1387, 0.0
      %v1676 = vmax.f32 %v1388, 0.0
      %v1677 = vmax.f32 %v1389, 0.0
      %v1678 = vmax.f32 %v1390, 0.0
      %v1679 = vmax.f32 %v1391, 0.0
      %v1680 = vmax.f32 %v1392, 0.0
      %v1681 = vmax.f32 %v1393, 0.0
      %v1682 = vmax.f32 %v1394, 0.0
      %v1683 = vmax.f32 %v1395, 0.0
      %v1684 = vmax.f32 %v1396, 0.0
      %v1685 = vmax.f32 %v1397, 0.0
      %v1686 = vmax.f32 %v1398, 0.0
      %v1687 = vmax.f32 %v1399, 0.0
      %v1688 = vmax.f32 %v1400, 0.0
      %v1689 = vmax.f32 %v1401, 0.0
      %v1690 = vmax.f32 %v1402, 0.0
      %v1691 = vmax.f32 %v1403, 0.0
      %v1692 = vmax.f32 %v1404, 0.0
      %v1693 = vmax.f32 %v1405, 0.0
      %v1694 = vmax.f32 %v1406, 0.0
      %v1695 = vmax.f32 %v1407, 0.0
      %v1696 = vmax.f32 %v1408, 0.0
      %v1697 = vmax.f32 %v1409, 0.0
      %v1698 = vmax.f32 %v1410, 0.0
      %v1699 = vmax.f32 %v1411, 0.0
      %v1700 = vmax.f32 %v1412, 0.0
      %v1701 = vmax.f32 %v1413, 0.0
      %v1702 = vmax.f32 %v1414, 0.0
      %v1703 = vmax.f32 %v1415, 0.0
      %v1704 = vmax.f32 %v1416, 0.0
      %v1705 = vmax.f32 %v1417, 0.0
      %v1706 = vmax.f32 %v1418, 0.0
      %v1707 = vpack.c.bf16 %v1428, %v1419
      %v1708 = vpack.c.bf16 %v1429, %v1420
      %v1709 = vpack.c.bf16 %v1430, %v1421
      %v1710 = vpack.c.bf16 %v1431, %v1422
      %v1711 = vpack.c.bf16 %v1432, %v1423
      %v1712 = vpack.c.bf16 %v1433, %v1424
      %v1713 = vpack.c.bf16 %v1434, %v1425
      %v1714 = vpack.c.bf16 %v1435, %v1426
      %v1715 = vpack.c.bf16 %v1436, %v1427
      %v1716 = vpack.c.bf16 %v1446, %v1437
      %v1717 = vpack.c.bf16 %v1447, %v1438
      %v1718 = vpack.c.bf16 %v1448, %v1439
      %v1719 = vpack.c.bf16 %v1449, %v1440
      %v1720 = vpack.c.bf16 %v1450, %v1441
      %v1721 = vpack.c.bf16 %v1451, %v1442
      %v1722 = vpack.c.bf16 %v1452, %v1443
      %v1723 = vpack.c.bf16 %v1453, %v1444
      %v1724 = vpack.c.bf16 %v1454, %v1445
      %v1725 = vpack.c.bf16 %v1464, %v1455
      %v1726 = vpack.c.bf16 %v1465, %v1456
      %v1727 = vpack.c.bf16 %v1466, %v1457
      %v1728 = vpack.c.bf16 %v1467, %v1458
      %v1729 = vpack.c.bf16 %v1468, %v1459
      %v1730 = vpack.c.bf16 %v1469, %v1460
      %v1731 = vpack.c.bf16 %v1470, %v1461
      %v1732 = vpack.c.bf16 %v1471, %v1462
      %v1733 = vpack.c.bf16 %v1472, %v1463
      %v1734 = vpack.c.bf16 %v1482, %v1473
      %v1735 = vpack.c.bf16 %v1483, %v1474
      %v1736 = vpack.c.bf16 %v1484, %v1475
      %v1737 = vpack.c.bf16 %v1485, %v1476
      %v1738 = vpack.c.bf16 %v1486, %v1477
      %v1739 = vpack.c.bf16 %v1487, %v1478
      %v1740 = vpack.c.bf16 %v1488, %v1479
      %v1741 = vpack.c.bf16 %v1489, %v1480
      %v1742 = vpack.c.bf16 %v1490, %v1481
      %v1743 = vpack.c.bf16 %v1500, %v1491
      %v1744 = vpack.c.bf16 %v1501, %v1492
      %v1745 = vpack.c.bf16 %v1502, %v1493
      %v1746 = vpack.c.bf16 %v1503, %v1494
      %v1747 = vpack.c.bf16 %v1504, %v1495
      %v1748 = vpack.c.bf16 %v1505, %v1496
      %v1749 = vpack.c.bf16 %v1506, %v1497
      %v1750 = vpack.c.bf16 %v1507, %v1498
      %v1751 = vpack.c.bf16 %v1508, %v1499
      %v1752 = vpack.c.bf16 %v1518, %v1509
      %v1753 = vpack.c.bf16 %v1519, %v1510
      %v1754 = vpack.c.bf16 %v1520, %v1511
      %v1755 = vpack.c.bf16 %v1521, %v1512
      %v1756 = vpack.c.bf16 %v1522, %v1513
      %v1757 = vpack.c.bf16 %v1523, %v1514
      %v1758 = vpack.c.bf16 %v1524, %v1515
      %v1759 = vpack.c.bf16 %v1525, %v1516
      %v1760 = vpack.c.bf16 %v1526, %v1517
      %v1761 = vpack.c.bf16 %v1536, %v1527
      %v1762 = vpack.c.bf16 %v1537, %v1528
      %v1763 = vpack.c.bf16 %v1538, %v1529
      %v1764 = vpack.c.bf16 %v1539, %v1530
      %v1765 = vpack.c.bf16 %v1540, %v1531
      %v1766 = vpack.c.bf16 %v1541, %v1532
      %v1767 = vpack.c.bf16 %v1542, %v1533
      %v1768 = vpack.c.bf16 %v1543, %v1534
      %v1769 = vpack.c.bf16 %v1544, %v1535
      %v1770 = vpack.c.bf16 %v1554, %v1545
      %v1771 = vpack.c.bf16 %v1555, %v1546
      %v1772 = vpack.c.bf16 %v1556, %v1547
      %v1773 = vpack.c.bf16 %v1557, %v1548
      %v1774 = vpack.c.bf16 %v1558, %v1549
      %v1775 = vpack.c.bf16 %v1559, %v1550
      %v1776 = vpack.c.bf16 %v1560, %v1551
      %v1777 = vpack.c.bf16 %v1561, %v1552
      %v1778 = vpack.c.bf16 %v1562, %v1553
      %v1779 = vpack.c.bf16 %v1572, %v1563
      %v1780 = vpack.c.bf16 %v1573, %v1564
      %v1781 = vpack.c.bf16 %v1574, %v1565
      %v1782 = vpack.c.bf16 %v1575, %v1566
      %v1783 = vpack.c.bf16 %v1576, %v1567
      %v1784 = vpack.c.bf16 %v1577, %v1568
      %v1785 = vpack.c.bf16 %v1578, %v1569
      %v1786 = vpack.c.bf16 %v1579, %v1570
      %v1787 = vpack.c.bf16 %v1580, %v1571
      %v1788 = vpack.c.bf16 %v1590, %v1581
      %v1789 = vpack.c.bf16 %v1591, %v1582
      %v1790 = vpack.c.bf16 %v1592, %v1583
      %v1791 = vpack.c.bf16 %v1593, %v1584
      %v1792 = vpack.c.bf16 %v1594, %v1585
      %v1793 = vpack.c.bf16 %v1595, %v1586
      %v1794 = vpack.c.bf16 %v1596, %v1587
      %v1795 = vpack.c.bf16 %v1597, %v1588
      %v1796 = vpack.c.bf16 %v1598, %v1589
      %v1797 = vpack.c.bf16 %v1608, %v1599
      %v1798 = vpack.c.bf16 %v1609, %v1600
      %v1799 = vpack.c.bf16 %v1610, %v1601
      %v1800 = vpack.c.bf16 %v1611, %v1602
      %v1801 = vpack.c.bf16 %v1612, %v1603
      %v1802 = vpack.c.bf16 %v1613, %v1604
      %v1803 = vpack.c.bf16 %v1614, %v1605
      %v1804 = vpack.c.bf16 %v1615, %v1606
      %v1805 = vpack.c.bf16 %v1616, %v1607
      %v1806 = vpack.c.bf16 %v1626, %v1617
      %v1807 = vpack.c.bf16 %v1627, %v1618
      %v1808 = vpack.c.bf16 %v1628, %v1619
      %v1809 = vpack.c.bf16 %v1629, %v1620
      %v1810 = vpack.c.bf16 %v1630, %v1621
      %v1811 = vpack.c.bf16 %v1631, %v1622
      %v1812 = vpack.c.bf16 %v1632, %v1623
      %v1813 = vpack.c.bf16 %v1633, %v1624
      %v1814 = vpack.c.bf16 %v1634, %v1625
      %v1815 = vpack.c.bf16 %v1644, %v1635
      %v1816 = vpack.c.bf16 %v1645, %v1636
      %v1817 = vpack.c.bf16 %v1646, %v1637
      %v1818 = vpack.c.bf16 %v1647, %v1638
      %v1819 = vpack.c.bf16 %v1648, %v1639
      %v1820 = vpack.c.bf16 %v1649, %v1640
      %v1821 = vpack.c.bf16 %v1650, %v1641
      %v1822 = vpack.c.bf16 %v1651, %v1642
      %v1823 = vpack.c.bf16 %v1652, %v1643
      %v1824 = vpack.c.bf16 %v1662, %v1653
      %v1825 = vpack.c.bf16 %v1663, %v1654
      %v1826 = vpack.c.bf16 %v1664, %v1655
      %v1827 = vpack.c.bf16 %v1665, %v1656
      %v1828 = vpack.c.bf16 %v1666, %v1657
      %v1829 = vpack.c.bf16 %v1667, %v1658
      %v1830 = vpack.c.bf16 %v1668, %v1659
      %v1831 = vpack.c.bf16 %v1669, %v1660
      %v1832 = vpack.c.bf16 %v1670, %v1661
      %v1833 = vpack.c.bf16 %v1680, %v1671
      %v1834 = vpack.c.bf16 %v1681, %v1672
      %v1835 = vpack.c.bf16 %v1682, %v1673
      %v1836 = vpack.c.bf16 %v1683, %v1674
      %v1837 = vpack.c.bf16 %v1684, %v1675
      %v1838 = vpack.c.bf16 %v1685, %v1676
      %v1839 = vpack.c.bf16 %v1686, %v1677
      %v1840 = vpack.c.bf16 %v1687, %v1678
      %v1841 = vpack.c.bf16 %v1688, %v1679
      %v1842 = vpack.c.bf16 %v1698, %v1689
      %v1843 = vpack.c.bf16 %v1699, %v1690
      %v1844 = vpack.c.bf16 %v1700, %v1691
      %v1845 = vpack.c.bf16 %v1701, %v1692
      %v1846 = vpack.c.bf16 %v1702, %v1693
      %v1847 = vpack.c.bf16 %v1703, %v1694
      %v1848 = vpack.c.bf16 %v1704, %v1695
      %v1849 = vpack.c.bf16 %v1705, %v1696
      %v1850 = vpack.c.bf16 %v1706, %v1697
      %v1851 = vld [vmem:[%s3] sm:$0xf]
      %v1852 = vld [vmem:[%s3 + $0x4] sm:$0xf]
      %v1853 = vld [vmem:[%s3 + $0x8] sm:$0xf]
      %v1854 = vld [vmem:[%s3 + $0xc] sm:$0xf]
      %v1855 = vld [vmem:[%s3 + $0x10] sm:$0xf]
      %v1856 = vld [vmem:[%s3 + $0x14] sm:$0xf]
      %v1857 = vld [vmem:[%s3 + $0x18] sm:$0xf]
      %v1858 = vld [vmem:[%s3 + $0x1c] sm:$0xf]
      %v1859 = vld [vmem:[%s3 + $0x20] sm:$0xf]
      %v1860 = vld [vmem:[%s3 + $0x24] sm:$0xf]
      %v1861 = vld [vmem:[%s3 + $0x28] sm:$0xf]
      %v1862 = vld [vmem:[%s3 + $0x2c] sm:$0xf]
      %v1863 = vld [vmem:[%s3 + $0x30] sm:$0xf]
      %v1864 = vld [vmem:[%s3 + $0x34] sm:$0xf]
      %v1865 = vld [vmem:[%s3 + $0x38] sm:$0xf]
      %v1866 = vld [vmem:[%s3 + $0x3c] sm:$0xf]
      %v1867 = vld [vmem:[%s3 + $0x40] sm:$0xf]
      %v1868 = vld [vmem:[%s3 + $0x44] sm:$0xf]
      %v1869 = vld [vmem:[%s3 + $0x48] sm:$0xf]
      %v1870 = vld [vmem:[%s3 + $0x4c] sm:$0xf]
      %v1871 = vld [vmem:[%s3 + $0x50] sm:$0xf]
      %v1872 = vld [vmem:[%s3 + $0x54] sm:$0xf]
      %v1873 = vld [vmem:[%s3 + $0x58] sm:$0xf]
      %v1874 = vld [vmem:[%s3 + $0x5c] sm:$0xf]
      %v1875 = vld [vmem:[%s3 + $0x60] sm:$0xf]
      %v1876 = vld [vmem:[%s3 + $0x64] sm:$0xf]
      %v1877 = vld [vmem:[%s3 + $0x68] sm:$0xf]
      %v1878 = vld [vmem:[%s3 + $0x6c] sm:$0xf]
      %v1879 = vld [vmem:[%s3 + $0x70] sm:$0xf]
      %v1880 = vld [vmem:[%s3 + $0x74] sm:$0xf]
      %v1881 = vld [vmem:[%s3 + $0x78] sm:$0xf]
      %v1882 = vld [vmem:[%s3 + $0x7c] sm:$0xf]
      %v1883 = vld [vmem:[%s3 + $0x80] sm:$0xf]
      %v1884 = vld [vmem:[%s3 + $0x84] sm:$0xf]
      %v1885 = vld [vmem:[%s3 + $0x88] sm:$0xf]
      %v1886 = vld [vmem:[%s3 + $0x8c] sm:$0xf]
      %v1887 = vld [vmem:[%s3 + $0x90] sm:$0xf]
      %v1888 = vld [vmem:[%s3 + $0x94] sm:$0xf]
      %v1889 = vld [vmem:[%s3 + $0x98] sm:$0xf]
      %v1890 = vld [vmem:[%s3 + $0x9c] sm:$0xf]
      %v1891 = vld [vmem:[%s3 + $0xa0] sm:$0xf]
      %v1892 = vld [vmem:[%s3 + $0xa4] sm:$0xf]
      %v1893 = vld [vmem:[%s3 + $0xa8] sm:$0xf]
      %v1894 = vld [vmem:[%s3 + $0xac] sm:$0xf]
      %v1895 = vld [vmem:[%s3 + $0xb0] sm:$0xf]
      %v1896 = vld [vmem:[%s3 + $0xb4] sm:$0xf]
      %v1897 = vld [vmem:[%s3 + $0xb8] sm:$0xf]
      %v1898 = vld [vmem:[%s3 + $0xbc] sm:$0xf]
      %v1899 = vld [vmem:[%s3 + $0xc0] sm:$0xf]
      %v1900 = vld [vmem:[%s3 + $0xc4] sm:$0xf]
      %v1901 = vld [vmem:[%s3 + $0xc8] sm:$0xf]
      %v1902 = vld [vmem:[%s3 + $0xcc] sm:$0xf]
      %v1903 = vld [vmem:[%s3 + $0xd0] sm:$0xf]
      %v1904 = vld [vmem:[%s3 + $0xd4] sm:$0xf]
      %v1905 = vld [vmem:[%s3 + $0xd8] sm:$0xf]
      %v1906 = vld [vmem:[%s3 + $0xdc] sm:$0xf]
      %v1907 = vld [vmem:[%s3 + $0xe0] sm:$0xf]
      %v1908 = vld [vmem:[%s3 + $0xe4] sm:$0xf]
      %v1909 = vld [vmem:[%s3 + $0xe8] sm:$0xf]
      %v1910 = vld [vmem:[%s3 + $0xec] sm:$0xf]
      %v1911 = vld [vmem:[%s3 + $0xf0] sm:$0xf]
      %v1912 = vld [vmem:[%s3 + $0xf4] sm:$0xf]
      %v1913 = vld [vmem:[%s3 + $0xf8] sm:$0xf]
      %v1914 = vld [vmem:[%s3 + $0xfc] sm:$0xf]
      %v1915 = vld [vmem:[%s3 + $0x100] sm:$0xf]
      %v1916 = vld [vmem:[%s3 + $0x104] sm:$0xf]
      %v1917 = vld [vmem:[%s3 + $0x108] sm:$0xf]
      %v1918 = vld [vmem:[%s3 + $0x10c] sm:$0xf]
      %v1919 = vld [vmem:[%s3 + $0x110] sm:$0xf]
      %v1920 = vld [vmem:[%s3 + $0x114] sm:$0xf]
      %v1921 = vld [vmem:[%s3 + $0x118] sm:$0xf]
      %v1922 = vld [vmem:[%s3 + $0x11c] sm:$0xf]
      %v1923 = vld [vmem:[%s3 + $0x120] sm:$0xf]
      %v1924 = vld [vmem:[%s3 + $0x124] sm:$0xf]
      %v1925 = vld [vmem:[%s3 + $0x128] sm:$0xf]
      %v1926 = vld [vmem:[%s3 + $0x12c] sm:$0xf]
      %v1927 = vld [vmem:[%s3 + $0x130] sm:$0xf]
      %v1928 = vld [vmem:[%s3 + $0x134] sm:$0xf]
      %v1929 = vld [vmem:[%s3 + $0x138] sm:$0xf]
      %v1930 = vld [vmem:[%s3 + $0x13c] sm:$0xf]
      %v1931 = vld [vmem:[%s3 + $0x140] sm:$0xf]
      %v1932 = vld [vmem:[%s3 + $0x144] sm:$0xf]
      %v1933 = vld [vmem:[%s3 + $0x148] sm:$0xf]
      %v1934 = vld [vmem:[%s3 + $0x14c] sm:$0xf]
      %v1935 = vld [vmem:[%s3 + $0x150] sm:$0xf]
      %v1936 = vld [vmem:[%s3 + $0x154] sm:$0xf]
      %v1937 = vld [vmem:[%s3 + $0x158] sm:$0xf]
      %v1938 = vld [vmem:[%s3 + $0x15c] sm:$0xf]
      %v1939 = vld [vmem:[%s3 + $0x160] sm:$0xf]
      %v1940 = vld [vmem:[%s3 + $0x164] sm:$0xf]
      %v1941 = vld [vmem:[%s3 + $0x168] sm:$0xf]
      %v1942 = vld [vmem:[%s3 + $0x16c] sm:$0xf]
      %v1943 = vld [vmem:[%s3 + $0x170] sm:$0xf]
      %v1944 = vld [vmem:[%s3 + $0x174] sm:$0xf]
      %v1945 = vld [vmem:[%s3 + $0x178] sm:$0xf]
      %v1946 = vld [vmem:[%s3 + $0x17c] sm:$0xf]
      %v1947 = vld [vmem:[%s3 + $0x180] sm:$0xf]
      %v1948 = vld [vmem:[%s3 + $0x184] sm:$0xf]
      %v1949 = vld [vmem:[%s3 + $0x188] sm:$0xf]
      %v1950 = vld [vmem:[%s3 + $0x18c] sm:$0xf]
      %v1951 = vld [vmem:[%s3 + $0x190] sm:$0xf]
      %v1952 = vld [vmem:[%s3 + $0x194] sm:$0xf]
      %v1953 = vld [vmem:[%s3 + $0x198] sm:$0xf]
      %v1954 = vld [vmem:[%s3 + $0x19c] sm:$0xf]
      %v1955 = vld [vmem:[%s3 + $0x1a0] sm:$0xf]
      %v1956 = vld [vmem:[%s3 + $0x1a4] sm:$0xf]
      %v1957 = vld [vmem:[%s3 + $0x1a8] sm:$0xf]
      %v1958 = vld [vmem:[%s3 + $0x1ac] sm:$0xf]
      %v1959 = vld [vmem:[%s3 + $0x1b0] sm:$0xf]
      %v1960 = vld [vmem:[%s3 + $0x1b4] sm:$0xf]
      %v1961 = vld [vmem:[%s3 + $0x1b8] sm:$0xf]
      %v1962 = vld [vmem:[%s3 + $0x1bc] sm:$0xf]
      %v1963 = vld [vmem:[%s3 + $0x1c0] sm:$0xf]
      %v1964 = vld [vmem:[%s3 + $0x1c4] sm:$0xf]
      %v1965 = vld [vmem:[%s3 + $0x1c8] sm:$0xf]
      %v1966 = vld [vmem:[%s3 + $0x1cc] sm:$0xf]
      %v1967 = vld [vmem:[%s3 + $0x1d0] sm:$0xf]
      %v1968 = vld [vmem:[%s3 + $0x1d4] sm:$0xf]
      %v1969 = vld [vmem:[%s3 + $0x1d8] sm:$0xf]
      %v1970 = vld [vmem:[%s3 + $0x1dc] sm:$0xf]
      %v1971 = vld [vmem:[%s3 + $0x1e0] sm:$0xf]
      %v1972 = vld [vmem:[%s3 + $0x1e4] sm:$0xf]
      %v1973 = vld [vmem:[%s3 + $0x1e8] sm:$0xf]
      %v1974 = vld [vmem:[%s3 + $0x1ec] sm:$0xf]
      %v1975 = vld [vmem:[%s3 + $0x1f0] sm:$0xf]
      %v1976 = vld [vmem:[%s3 + $0x1f4] sm:$0xf]
      %v1977 = vld [vmem:[%s3 + $0x1f8] sm:$0xf]
      %v1978 = vld [vmem:[%s3 + $0x1fc] sm:$0xf]
      %v1979 = vld [vmem:[%s3 + $0x200] sm:$0xf]
      %v1980 = vld [vmem:[%s3 + $0x204] sm:$0xf]
      %v1981 = vld [vmem:[%s3 + $0x208] sm:$0xf]
      %v1982 = vld [vmem:[%s3 + $0x20c] sm:$0xf]
      %v1983 = vld [vmem:[%s3 + $0x210] sm:$0xf]
      %v1984 = vld [vmem:[%s3 + $0x214] sm:$0xf]
      %v1985 = vld [vmem:[%s3 + $0x218] sm:$0xf]
      %v1986 = vld [vmem:[%s3 + $0x21c] sm:$0xf]
      %v1987 = vld [vmem:[%s3 + $0x220] sm:$0xf]
      %v1988 = vld [vmem:[%s3 + $0x224] sm:$0xf]
      %v1989 = vld [vmem:[%s3 + $0x228] sm:$0xf]
      %v1990 = vld [vmem:[%s3 + $0x22c] sm:$0xf]
      %v1991 = vld [vmem:[%s3 + $0x230] sm:$0xf]
      %v1992 = vld [vmem:[%s3 + $0x234] sm:$0xf]
      %v1993 = vld [vmem:[%s3 + $0x238] sm:$0xf]
      %v1994 = vld [vmem:[%s3 + $0x23c] sm:$0xf]
      %v2139 = vunpack.c.l.b16 %v1851
      %v2140 = vunpack.c.l.b16 %v1852
      %v2141 = vunpack.c.l.b16 %v1853
      %v2142 = vunpack.c.l.b16 %v1854
      %v2143 = vunpack.c.l.b16 %v1855
      %v2144 = vunpack.c.l.b16 %v1856
      %v2145 = vunpack.c.l.b16 %v1857
      %v2146 = vunpack.c.l.b16 %v1858
      %v2147 = vunpack.c.l.b16 %v1859
      %v2148 = vunpack.c.l.b16 %v1860
      %v2149 = vunpack.c.l.b16 %v1861
      %v2150 = vunpack.c.l.b16 %v1862
      %v2151 = vunpack.c.l.b16 %v1863
      %v2152 = vunpack.c.l.b16 %v1864
      %v2153 = vunpack.c.l.b16 %v1865
      %v2154 = vunpack.c.l.b16 %v1866
      %v2155 = vunpack.c.l.b16 %v1867
      %v2156 = vunpack.c.l.b16 %v1868
      %v2157 = vunpack.c.l.b16 %v1869
      %v2158 = vunpack.c.l.b16 %v1870
      %v2159 = vunpack.c.l.b16 %v1871
      %v2160 = vunpack.c.l.b16 %v1872
      %v2161 = vunpack.c.l.b16 %v1873
      %v2162 = vunpack.c.l.b16 %v1874
      %v2163 = vunpack.c.l.b16 %v1875
      %v2164 = vunpack.c.l.b16 %v1876
      %v2165 = vunpack.c.l.b16 %v1877
      %v2166 = vunpack.c.l.b16 %v1878
      %v2167 = vunpack.c.l.b16 %v1879
      %v2168 = vunpack.c.l.b16 %v1880
      %v2169 = vunpack.c.l.b16 %v1881
      %v2170 = vunpack.c.l.b16 %v1882
      %v2171 = vunpack.c.l.b16 %v1883
      %v2172 = vunpack.c.l.b16 %v1884
      %v2173 = vunpack.c.l.b16 %v1885
      %v2174 = vunpack.c.l.b16 %v1886
      %v2175 = vunpack.c.l.b16 %v1887
      %v2176 = vunpack.c.l.b16 %v1888
      %v2177 = vunpack.c.l.b16 %v1889
      %v2178 = vunpack.c.l.b16 %v1890
      %v2179 = vunpack.c.l.b16 %v1891
      %v2180 = vunpack.c.l.b16 %v1892
      %v2181 = vunpack.c.l.b16 %v1893
      %v2182 = vunpack.c.l.b16 %v1894
      %v2183 = vunpack.c.l.b16 %v1895
      %v2184 = vunpack.c.l.b16 %v1896
      %v2185 = vunpack.c.l.b16 %v1897
      %v2186 = vunpack.c.l.b16 %v1898
      %v2187 = vunpack.c.l.b16 %v1899
      %v2188 = vunpack.c.l.b16 %v1900
      %v2189 = vunpack.c.l.b16 %v1901
      %v2190 = vunpack.c.l.b16 %v1902
      %v2191 = vunpack.c.l.b16 %v1903
      %v2192 = vunpack.c.l.b16 %v1904
      %v2193 = vunpack.c.l.b16 %v1905
      %v2194 = vunpack.c.l.b16 %v1906
      %v2195 = vunpack.c.l.b16 %v1907
      %v2196 = vunpack.c.l.b16 %v1908
      %v2197 = vunpack.c.l.b16 %v1909
      %v2198 = vunpack.c.l.b16 %v1910
      %v2199 = vunpack.c.l.b16 %v1911
      %v2200 = vunpack.c.l.b16 %v1912
      %v2201 = vunpack.c.l.b16 %v1913
      %v2202 = vunpack.c.l.b16 %v1914
      %v2203 = vunpack.c.l.b16 %v1915
      %v2204 = vunpack.c.l.b16 %v1916
      %v2205 = vunpack.c.l.b16 %v1917
      %v2206 = vunpack.c.l.b16 %v1918
      %v2207 = vunpack.c.l.b16 %v1919
      %v2208 = vunpack.c.l.b16 %v1920
      %v2209 = vunpack.c.l.b16 %v1921
      %v2210 = vunpack.c.l.b16 %v1922
      %v2211 = vunpack.c.l.b16 %v1923
      %v2212 = vunpack.c.l.b16 %v1924
      %v2213 = vunpack.c.l.b16 %v1925
      %v2214 = vunpack.c.l.b16 %v1926
      %v2215 = vunpack.c.l.b16 %v1927
      %v2216 = vunpack.c.l.b16 %v1928
      %v2217 = vunpack.c.l.b16 %v1929
      %v2218 = vunpack.c.l.b16 %v1930
      %v2219 = vunpack.c.l.b16 %v1931
      %v2220 = vunpack.c.l.b16 %v1932
      %v2221 = vunpack.c.l.b16 %v1933
      %v2222 = vunpack.c.l.b16 %v1934
      %v2223 = vunpack.c.l.b16 %v1935
      %v2224 = vunpack.c.l.b16 %v1936
      %v2225 = vunpack.c.l.b16 %v1937
      %v2226 = vunpack.c.l.b16 %v1938
      %v2227 = vunpack.c.l.b16 %v1939
      %v2228 = vunpack.c.l.b16 %v1940
      %v2229 = vunpack.c.l.b16 %v1941
      %v2230 = vunpack.c.l.b16 %v1942
      %v2231 = vunpack.c.l.b16 %v1943
      %v2232 = vunpack.c.l.b16 %v1944
      %v2233 = vunpack.c.l.b16 %v1945
      %v2234 = vunpack.c.l.b16 %v1946
      %v2235 = vunpack.c.l.b16 %v1947
      %v2236 = vunpack.c.l.b16 %v1948
      %v2237 = vunpack.c.l.b16 %v1949
      %v2238 = vunpack.c.l.b16 %v1950
      %v2239 = vunpack.c.l.b16 %v1951
      %v2240 = vunpack.c.l.b16 %v1952
      %v2241 = vunpack.c.l.b16 %v1953
      %v2242 = vunpack.c.l.b16 %v1954
      %v2243 = vunpack.c.l.b16 %v1955
      %v2244 = vunpack.c.l.b16 %v1956
      %v2245 = vunpack.c.l.b16 %v1957
      %v2246 = vunpack.c.l.b16 %v1958
      %v2247 = vunpack.c.l.b16 %v1959
      %v2248 = vunpack.c.l.b16 %v1960
      %v2249 = vunpack.c.l.b16 %v1961
      %v2250 = vunpack.c.l.b16 %v1962
      %v2251 = vunpack.c.l.b16 %v1963
      %v2252 = vunpack.c.l.b16 %v1964
      %v2253 = vunpack.c.l.b16 %v1965
      %v2254 = vunpack.c.l.b16 %v1966
      %v2255 = vunpack.c.l.b16 %v1967
      %v2256 = vunpack.c.l.b16 %v1968
      %v2257 = vunpack.c.l.b16 %v1969
      %v2258 = vunpack.c.l.b16 %v1970
      %v2259 = vunpack.c.l.b16 %v1971
      %v2260 = vunpack.c.l.b16 %v1972
      %v2261 = vunpack.c.l.b16 %v1973
      %v2262 = vunpack.c.l.b16 %v1974
      %v2263 = vunpack.c.l.b16 %v1975
      %v2264 = vunpack.c.l.b16 %v1976
      %v2265 = vunpack.c.l.b16 %v1977
      %v2266 = vunpack.c.l.b16 %v1978
      %v2267 = vunpack.c.l.b16 %v1979
      %v2268 = vunpack.c.l.b16 %v1980
      %v2269 = vunpack.c.l.b16 %v1981
      %v2270 = vunpack.c.l.b16 %v1982
      %v2271 = vunpack.c.l.b16 %v1983
      %v2272 = vunpack.c.l.b16 %v1984
      %v2273 = vunpack.c.l.b16 %v1985
      %v2274 = vunpack.c.l.b16 %v1986
      %v2275 = vunpack.c.l.b16 %v1987
      %v2276 = vunpack.c.l.b16 %v1988
      %v2277 = vunpack.c.l.b16 %v1989
      %v2278 = vunpack.c.l.b16 %v1990
      %v2279 = vunpack.c.l.b16 %v1991
      %v2280 = vunpack.c.l.b16 %v1992
      %v2281 = vunpack.c.l.b16 %v1993
      %v2282 = vunpack.c.l.b16 %v1994
      %v2283 = vpack.c.b16 %v2140, %v2139
      %v2284 = vpack.c.b16 %v2142, %v2141
      %v2285 = vpack.c.b16 %v2144, %v2143
      %v2286 = vpack.c.b16 %v2146, %v2145
      %v2287 = vpack.c.b16 %v2148, %v2147
      %v2288 = vpack.c.b16 %v2150, %v2149
      %v2289 = vpack.c.b16 %v2152, %v2151
      %v2290 = vpack.c.b16 %v2154, %v2153
      %v2291 = vpack.c.b16 %v2156, %v2155
      %v2292 = vpack.c.b16 %v2158, %v2157
      %v2293 = vpack.c.b16 %v2160, %v2159
      %v2294 = vpack.c.b16 %v2162, %v2161
      %v2295 = vpack.c.b16 %v2164, %v2163
      %v2296 = vpack.c.b16 %v2166, %v2165
      %v2297 = vpack.c.b16 %v2168, %v2167
      %v2298 = vpack.c.b16 %v2170, %v2169
      %v2299 = vpack.c.b16 %v2172, %v2171
      %v2300 = vpack.c.b16 %v2174, %v2173
      %v2301 = vpack.c.b16 %v2176, %v2175
      %v2302 = vpack.c.b16 %v2178, %v2177
      %v2303 = vpack.c.b16 %v2180, %v2179
      %v2304 = vpack.c.b16 %v2182, %v2181
      %v2305 = vpack.c.b16 %v2184, %v2183
      %v2306 = vpack.c.b16 %v2186, %v2185
      %v2307 = vpack.c.b16 %v2188, %v2187
      %v2308 = vpack.c.b16 %v2190, %v2189
      %v2309 = vpack.c.b16 %v2192, %v2191
      %v2310 = vpack.c.b16 %v2194, %v2193
      %v2311 = vpack.c.b16 %v2196, %v2195
      %v2312 = vpack.c.b16 %v2198, %v2197
      %v2313 = vpack.c.b16 %v2200, %v2199
      %v2314 = vpack.c.b16 %v2202, %v2201
      %v2315 = vpack.c.b16 %v2204, %v2203
      %v2316 = vpack.c.b16 %v2206, %v2205
      %v2317 = vpack.c.b16 %v2208, %v2207
      %v2318 = vpack.c.b16 %v2210, %v2209
      %v2319 = vpack.c.b16 %v2212, %v2211
      %v2320 = vpack.c.b16 %v2214, %v2213
      %v2321 = vpack.c.b16 %v2216, %v2215
      %v2322 = vpack.c.b16 %v2218, %v2217
      %v2323 = vpack.c.b16 %v2220, %v2219
      %v2324 = vpack.c.b16 %v2222, %v2221
      %v2325 = vpack.c.b16 %v2224, %v2223
      %v2326 = vpack.c.b16 %v2226, %v2225
      %v2327 = vpack.c.b16 %v2228, %v2227
      %v2328 = vpack.c.b16 %v2230, %v2229
      %v2329 = vpack.c.b16 %v2232, %v2231
      %v2330 = vpack.c.b16 %v2234, %v2233
      %v2331 = vpack.c.b16 %v2236, %v2235
      %v2332 = vpack.c.b16 %v2238, %v2237
      %v2333 = vpack.c.b16 %v2240, %v2239
      %v2334 = vpack.c.b16 %v2242, %v2241
      %v2335 = vpack.c.b16 %v2244, %v2243
      %v2336 = vpack.c.b16 %v2246, %v2245
      %v2337 = vpack.c.b16 %v2248, %v2247
      %v2338 = vpack.c.b16 %v2250, %v2249
      %v2339 = vpack.c.b16 %v2252, %v2251
      %v2340 = vpack.c.b16 %v2254, %v2253
      %v2341 = vpack.c.b16 %v2256, %v2255
      %v2342 = vpack.c.b16 %v2258, %v2257
      %v2343 = vpack.c.b16 %v2260, %v2259
      %v2344 = vpack.c.b16 %v2262, %v2261
      %v2345 = vpack.c.b16 %v2264, %v2263
      %v2346 = vpack.c.b16 %v2266, %v2265
      %v2347 = vpack.c.b16 %v2268, %v2267
      %v2348 = vpack.c.b16 %v2270, %v2269
      %v2349 = vpack.c.b16 %v2272, %v2271
      %v2350 = vpack.c.b16 %v2274, %v2273
      %v2351 = vpack.c.b16 %v2276, %v2275
      %v2352 = vpack.c.b16 %v2278, %v2277
      %v2353 = vpack.c.b16 %v2280, %v2279
      %v2354 = vpack.c.b16 %v2282, %v2281
      %2427 = vmatprep.subr.bf16.mxu0 0
      %2428 = vmatpush1.bf16.msra.mxu0 %v2283
      %2429 = vmatprep.subr.bf16.mxu0 0
      %2430 = vmatpush1.bf16.msra.mxu0 %v2284
      %2431 = vmatprep.subr.bf16.mxu0 0
      %2432 = vmatpush1.bf16.msra.mxu0 %v2285
      %2433 = vmatprep.subr.bf16.mxu0 0
      %2434 = vmatpush1.bf16.msra.mxu0 %v2286
      %2435 = vmatprep.subr.bf16.mxu0 0
      %2436 = vmatpush1.bf16.msra.mxu0 %v2287
      %2437 = vmatprep.subr.bf16.mxu0 0
      %2438 = vmatpush1.bf16.msra.mxu0 %v2288
      %2439 = vmatprep.subr.bf16.mxu0 0
      %2440 = vmatpush1.bf16.msra.mxu0 %v2289
      %2441 = vmatprep.subr.bf16.mxu0 0
      %2442 = vmatpush1.bf16.msra.mxu0 %v2290
      %2443 = vmatprep.subr.bf16.mxu0 0
      %2444 = vmatpush1.bf16.msra.mxu0 %v2291
      %2445 = vmatprep.subr.bf16.mxu0 0
      %2446 = vmatpush1.bf16.msra.mxu0 %v2292
      %2447 = vmatprep.subr.bf16.mxu0 0
      %2448 = vmatpush1.bf16.msra.mxu0 %v2293
      %2449 = vmatprep.subr.bf16.mxu0 0
      %2450 = vmatpush1.bf16.msra.mxu0 %v2294
      %2451 = vmatprep.subr.bf16.mxu0 0
      %2452 = vmatpush1.bf16.msra.mxu0 %v2295
      %2453 = vmatprep.subr.bf16.mxu0 0
      %2454 = vmatpush1.bf16.msra.mxu0 %v2296
      %2455 = vmatprep.subr.bf16.mxu0 0
      %2456 = vmatpush1.bf16.msra.mxu0 %v2297
      %2457 = vmatprep.subr.bf16.mxu0 0
      %2458 = vmatpush1.bf16.msra.mxu0 %v2298
      %2459 = vmatprep.mubr.bf16.mxu0 %v1708
      %2460 = vmatmul.mubr.bf16.gmra.mrb[0].mxu0 %v1707
      %v2461 = vpop.f32.mrb[0].mxu0
      %v2462 = vadd.f32 0.0, %v2461
      %v2463 = vpop.f32.mrb[0].mxu0
      %v2464 = vpop.f32.mrb[0].mxu0
      %v2465 = vadd.f32 0.0, %v2464
      %v2466 = vpop.f32.mrb[0].mxu0
      %2467 = vmatprep.mubr.bf16.mxu0 %v1717
      %2468 = vmatmul.mubr.bf16.gmra.mrb[0].mxu0 %v1716
      %v2469 = vpop.f32.mrb[0].mxu0
      %v2470 = vadd.f32 0.0, %v2469
      %v2471 = vpop.f32.mrb[0].mxu0
      %v2472 = vpop.f32.mrb[0].mxu0
      %v2473 = vadd.f32 0.0, %v2472
      %v2474 = vpop.f32.mrb[0].mxu0
      %2475 = vmatprep.mubr.bf16.mxu0 %v1726
      %2476 = vmatmul.mubr.bf16.gmra.mrb[0].mxu0 %v1725
      %v2477 = vpop.f32.mrb[0].mxu0
      %v2478 = vadd.f32 0.0, %v2477
      %v2479 = vpop.f32.mrb[0].mxu0
      %v2480 = vpop.f32.mrb[0].mxu0
      %v2481 = vadd.f32 0.0, %v2480
      %v2482 = vpop.f32.mrb[0].mxu0
      %2483 = vmatprep.mubr.bf16.mxu0 %v1735
      %2484 = vmatmul.mubr.bf16.gmra.mrb[0].mxu0 %v1734
      %v2485 = vpop.f32.mrb[0].mxu0
      %v2486 = vadd.f32 0.0, %v2485
      %v2487 = vpop.f32.mrb[0].mxu0
      %v2488 = vpop.f32.mrb[0].mxu0
      %v2489 = vadd.f32 0.0, %v2488
      %v2490 = vpop.f32.mrb[0].mxu0
      %2491 = vmatprep.mubr.bf16.mxu0 %v1744
      %2492 = vmatmul.mubr.bf16.gmra.mrb[0].mxu0 %v1743
      %v2493 = vpop.f32.mrb[0].mxu0
      %v2494 = vadd.f32 0.0, %v2493
      %v2495 = vpop.f32.mrb[0].mxu0
      %v2496 = vpop.f32.mrb[0].mxu0
      %v2497 = vadd.f32 0.0, %v2496
      %v2498 = vpop.f32.mrb[0].mxu0
      %2499 = vmatprep.mubr.bf16.mxu0 %v1753
      %2500 = vmatmul.mubr.bf16.gmra.mrb[0].mxu0 %v1752
      %v2501 = vpop.f32.mrb[0].mxu0
      %v2502 = vadd.f32 0.0, %v2501
      %v2503 = vpop.f32.mrb[0].mxu0
      %v2504 = vpop.f32.mrb[0].mxu0
      %v2505 = vadd.f32 0.0, %v2504
      %v2506 = vpop.f32.mrb[0].mxu0
      %2507 = vmatprep.mubr.bf16.mxu0 %v1762
      %2508 = vmatmul.mubr.bf16.gmra.mrb[0].mxu0 %v1761
      %v2509 = vpop.f32.mrb[0].mxu0
      %v2510 = vadd.f32 0.0, %v2509
      %v2511 = vpop.f32.mrb[0].mxu0
      %v2512 = vpop.f32.mrb[0].mxu0
      %v2513 = vadd.f32 0.0, %v2512
      %v2514 = vpop.f32.mrb[0].mxu0
      %2515 = vmatprep.mubr.bf16.mxu0 %v1771
      %2516 = vmatmul.mubr.bf16.gmra.mrb[0].mxu0 %v1770
      %v2517 = vpop.f32.mrb[0].mxu0
      %v2518 = vadd.f32 0.0, %v2517
      %v2519 = vpop.f32.mrb[0].mxu0
      %v2520 = vpop.f32.mrb[0].mxu0
      %v2521 = vadd.f32 0.0, %v2520
      %v2522 = vpop.f32.mrb[0].mxu0
      %2523 = vmatprep.mubr.bf16.mxu0 %v1780
      %2524 = vmatmul.mubr.bf16.gmra.mrb[0].mxu0 %v1779
      %v2525 = vpop.f32.mrb[0].mxu0
      %v2526 = vadd.f32 0.0, %v2525
      %v2527 = vpop.f32.mrb[0].mxu0
      %v2528 = vpop.f32.mrb[0].mxu0
      %v2529 = vadd.f32 0.0, %v2528
      %v2530 = vpop.f32.mrb[0].mxu0
      %2531 = vmatprep.mubr.bf16.mxu0 %v1789
      %2532 = vmatmul.mubr.bf16.gmra.mrb[0].mxu0 %v1788
      %v2533 = vpop.f32.mrb[0].mxu0
      %v2534 = vadd.f32 0.0, %v2533
      %v2535 = vpop.f32.mrb[0].mxu0
      %v2536 = vpop.f32.mrb[0].mxu0
      %v2537 = vadd.f32 0.0, %v2536
      %v2538 = vpop.f32.mrb[0].mxu0
      %2539 = vmatprep.mubr.bf16.mxu0 %v1798
      %2540 = vmatmul.mubr.bf16.gmra.mrb[0].mxu0 %v1797
      %v2541 = vpop.f32.mrb[0].mxu0
      %v2542 = vadd.f32 0.0, %v2541
      %v2543 = vpop.f32.mrb[0].mxu0
      %v2544 = vpop.f32.mrb[0].mxu0
      %v2545 = vadd.f32 0.0, %v2544
      %v2546 = vpop.f32.mrb[0].mxu0
      %2547 = vmatprep.mubr.bf16.mxu0 %v1807
      %2548 = vmatmul.mubr.bf16.gmra.mrb[0].mxu0 %v1806
      %v2549 = vpop.f32.mrb[0].mxu0
      %v2550 = vadd.f32 0.0, %v2549
      %v2551 = vpop.f32.mrb[0].mxu0
      %v2552 = vpop.f32.mrb[0].mxu0
      %v2553 = vadd.f32 0.0, %v2552
      %v2554 = vpop.f32.mrb[0].mxu0
      %2555 = vmatprep.mubr.bf16.mxu0 %v1816
      %2556 = vmatmul.mubr.bf16.gmra.mrb[0].mxu0 %v1815
      %v2557 = vpop.f32.mrb[0].mxu0
      %v2558 = vadd.f32 0.0, %v2557
      %v2559 = vpop.f32.mrb[0].mxu0
      %v2560 = vpop.f32.mrb[0].mxu0
      %v2561 = vadd.f32 0.0, %v2560
      %v2562 = vpop.f32.mrb[0].mxu0
      %2563 = vmatprep.mubr.bf16.mxu0 %v1825
      %2564 = vmatmul.mubr.bf16.gmra.mrb[0].mxu0 %v1824
      %v2565 = vpop.f32.mrb[0].mxu0
      %v2566 = vadd.f32 0.0, %v2565
      %v2567 = vpop.f32.mrb[0].mxu0
      %v2568 = vpop.f32.mrb[0].mxu0
      %v2569 = vadd.f32 0.0, %v2568
      %v2570 = vpop.f32.mrb[0].mxu0
      %2571 = vmatprep.mubr.bf16.mxu0 %v1834
      %2572 = vmatmul.mubr.bf16.gmra.mrb[0].mxu0 %v1833
      %v2573 = vpop.f32.mrb[0].mxu0
      %v2574 = vadd.f32 0.0, %v2573
      %v2575 = vpop.f32.mrb[0].mxu0
      %v2576 = vpop.f32.mrb[0].mxu0
      %v2577 = vadd.f32 0.0, %v2576
      %v2578 = vpop.f32.mrb[0].mxu0
      %2579 = vmatprep.mubr.bf16.mxu0 %v1843
      %2580 = vmatmul.mubr.bf16.gmra.mrb[0].mxu0 %v1842
      %v2581 = vpop.f32.mrb[0].mxu0
      %v2582 = vadd.f32 0.0, %v2581
      %v2583 = vpop.f32.mrb[0].mxu0
      %v2584 = vpop.f32.mrb[0].mxu0
      %v2585 = vadd.f32 0.0, %v2584
      %v2586 = vpop.f32.mrb[0].mxu0
      %2587 = vdwg.mxu0
      %2588 = vmatprep.subr.bf16.mxu0 0
      %2589 = vmatpush1.bf16.msra.mxu0 %v2299
      %2590 = vmatprep.subr.bf16.mxu0 0
      %2591 = vmatpush1.bf16.msra.mxu0 %v2300
      %2592 = vmatprep.subr.bf16.mxu0 0
      %2593 = vmatpush1.bf16.msra.mxu0 %v2301
      %2594 = vmatprep.subr.bf16.mxu0 0
      %2595 = vmatpush1.bf16.msra.mxu0 %v2302
      %2596 = vmatprep.subr.bf16.mxu0 0
      %2597 = vmatpush1.bf16.msra.mxu0 %v2303
      %2598 = vmatprep.subr.bf16.mxu0 0
      %2599 = vmatpush1.bf16.msra.mxu0 %v2304
      %2600 = vmatprep.subr.bf16.mxu0 0
      %2601 = vmatpush1.bf16.msra.mxu0 %v2305
      %2602 = vmatprep.subr.bf16.mxu0 0
      %2603 = vmatpush1.bf16.msra.mxu0 %v2306
      %2604 = vmatprep.subr.bf16.mxu0 0
      %2605 = vmatpush1.bf16.msra.mxu0 %v2307
      %2606 = vmatprep.subr.bf16.mxu0 0
      %2607 = vmatpush1.bf16.msra.mxu0 %v2308
      %2608 = vmatprep.subr.bf16.mxu0 0
      %2609 = vmatpush1.bf16.msra.mxu0 %v2309
      %2610 = vmatprep.subr.bf16.mxu0 0
      %2611 = vmatpush1.bf16.msra.mxu0 %v2310
      %2612 = vmatprep.subr.bf16.mxu0 0
      %2613 = vmatpush1.bf16.msra.mxu0 %v2311
      %2614 = vmatprep.subr.bf16.mxu0 0
      %2615 = vmatpush1.bf16.msra.mxu0 %v2312
      %2616 = vmatprep.subr.bf16.mxu0 0
      %2617 = vmatpush1.bf16.msra.mxu0 %v2313
      %2618 = vmatprep.subr.bf16.mxu0 0
      %2619 = vmatpush1.bf16.msra.mxu0 %v2314
      %2620 = vmatprep.mubr.bf16.mxu0 %v1710
      %2621 = vmatmul.mubr.bf16.gmra.mrb[0].mxu0 %v1709
      %v2622 = vpop.f32.mrb[0].mxu0
      %v2623 = vadd.f32 %v2462, %v2622
      %v2624 = vpop.f32.mrb[0].mxu0
      %v2625 = vpop.f32.mrb[0].mxu0
      %v2626 = vadd.f32 %v2465, %v2625
      %v2627 = vpop.f32.mrb[0].mxu0
      %2628 = vmatprep.mubr.bf16.mxu0 %v1719
      %2629 = vmatmul.mubr.bf16.gmra.mrb[0].mxu0 %v1718
      %v2630 = vpop.f32.mrb[0].mxu0
      %v2631 = vadd.f32 %v2470, %v2630
      %v2632 = vpop.f32.mrb[0].mxu0
      %v2633 = vpop.f32.mrb[0].mxu0
      %v2634 = vadd.f32 %v2473, %v2633
      %v2635 = vpop.f32.mrb[0].mxu0
      %2636 = vmatprep.mubr.bf16.mxu0 %v1728
      %2637 = vmatmul.mubr.bf16.gmra.mrb[0].mxu0 %v1727
      %v2638 = vpop.f32.mrb[0].mxu0
      %v2639 = vadd.f32 %v2478, %v2638
      %v2640 = vpop.f32.mrb[0].mxu0
      %v2641 = vpop.f32.mrb[0].mxu0
      %v2642 = vadd.f32 %v2481, %v2641
      %v2643 = vpop.f32.mrb[0].mxu0
      %2644 = vmatprep.mubr.bf16.mxu0 %v1737
      %2645 = vmatmul.mubr.bf16.gmra.mrb[0].mxu0 %v1736
      %v2646 = vpop.f32.mrb[0].mxu0
      %v2647 = vadd.f32 %v2486, %v2646
      %v2648 = vpop.f32.mrb[0].mxu0
      %v2649 = vpop.f32.mrb[0].mxu0
      %v2650 = vadd.f32 %v2489, %v2649
      %v2651 = vpop.f32.mrb[0].mxu0
      %2652 = vmatprep.mubr.bf16.mxu0 %v1746
      %2653 = vmatmul.mubr.bf16.gmra.mrb[0].mxu0 %v1745
      %v2654 = vpop.f32.mrb[0].mxu0
      %v2655 = vadd.f32 %v2494, %v2654
      %v2656 = vpop.f32.mrb[0].mxu0
      %v2657 = vpop.f32.mrb[0].mxu0
      %v2658 = vadd.f32 %v2497, %v2657
      %v2659 = vpop.f32.mrb[0].mxu0
      %2660 = vmatprep.mubr.bf16.mxu0 %v1755
      %2661 = vmatmul.mubr.bf16.gmra.mrb[0].mxu0 %v1754
      %v2662 = vpop.f32.mrb[0].mxu0
      %v2663 = vadd.f32 %v2502, %v2662
      %v2664 = vpop.f32.mrb[0].mxu0
      %v2665 = vpop.f32.mrb[0].mxu0
      %v2666 = vadd.f32 %v2505, %v2665
      %v2667 = vpop.f32.mrb[0].mxu0
      %2668 = vmatprep.mubr.bf16.mxu0 %v1764
      %2669 = vmatmul.mubr.bf16.gmra.mrb[0].mxu0 %v1763
      %v2670 = vpop.f32.mrb[0].mxu0
      %v2671 = vadd.f32 %v2510, %v2670
      %v2672 = vpop.f32.mrb[0].mxu0
      %v2673 = vpop.f32.mrb[0].mxu0
      %v2674 = vadd.f32 %v2513, %v2673
      %v2675 = vpop.f32.mrb[0].mxu0
      %2676 = vmatprep.mubr.bf16.mxu0 %v1773
      %2677 = vmatmul.mubr.bf16.gmra.mrb[0].mxu0 %v1772
      %v2678 = vpop.f32.mrb[0].mxu0
      %v2679 = vadd.f32 %v2518, %v2678
      %v2680 = vpop.f32.mrb[0].mxu0
      %v2681 = vpop.f32.mrb[0].mxu0
      %v2682 = vadd.f32 %v2521, %v2681
      %v2683 = vpop.f32.mrb[0].mxu0
      %2684 = vmatprep.mubr.bf16.mxu0 %v1782
      %2685 = vmatmul.mubr.bf16.gmra.mrb[0].mxu0 %v1781
      %v2686 = vpop.f32.mrb[0].mxu0
      %v2687 = vadd.f32 %v2526, %v2686
      %v2688 = vpop.f32.mrb[0].mxu0
      %v2689 = vpop.f32.mrb[0].mxu0
      %v2690 = vadd.f32 %v2529, %v2689
      %v2691 = vpop.f32.mrb[0].mxu0
      %2692 = vmatprep.mubr.bf16.mxu0 %v1791
      %2693 = vmatmul.mubr.bf16.gmra.mrb[0].mxu0 %v1790
      %v2694 = vpop.f32.mrb[0].mxu0
      %v2695 = vadd.f32 %v2534, %v2694
      %v2696 = vpop.f32.mrb[0].mxu0
      %v2697 = vpop.f32.mrb[0].mxu0
      %v2698 = vadd.f32 %v2537, %v2697
      %v2699 = vpop.f32.mrb[0].mxu0
      %2700 = vmatprep.mubr.bf16.mxu0 %v1800
      %2701 = vmatmul.mubr.bf16.gmra.mrb[0].mxu0 %v1799
      %v2702 = vpop.f32.mrb[0].mxu0
      %v2703 = vadd.f32 %v2542, %v2702
      %v2704 = vpop.f32.mrb[0].mxu0
      %v2705 = vpop.f32.mrb[0].mxu0
      %v2706 = vadd.f32 %v2545, %v2705
      %v2707 = vpop.f32.mrb[0].mxu0
      %2708 = vmatprep.mubr.bf16.mxu0 %v1809
      %2709 = vmatmul.mubr.bf16.gmra.mrb[0].mxu0 %v1808
      %v2710 = vpop.f32.mrb[0].mxu0
      %v2711 = vadd.f32 %v2550, %v2710
      %v2712 = vpop.f32.mrb[0].mxu0
      %v2713 = vpop.f32.mrb[0].mxu0
      %v2714 = vadd.f32 %v2553, %v2713
      %v2715 = vpop.f32.mrb[0].mxu0
      %2716 = vmatprep.mubr.bf16.mxu0 %v1818
      %2717 = vmatmul.mubr.bf16.gmra.mrb[0].mxu0 %v1817
      %v2718 = vpop.f32.mrb[0].mxu0
      %v2719 = vadd.f32 %v2558, %v2718
      %v2720 = vpop.f32.mrb[0].mxu0
      %v2721 = vpop.f32.mrb[0].mxu0
      %v2722 = vadd.f32 %v2561, %v2721
      %v2723 = vpop.f32.mrb[0].mxu0
      %2724 = vmatprep.mubr.bf16.mxu0 %v1827
      %2725 = vmatmul.mubr.bf16.gmra.mrb[0].mxu0 %v1826
      %v2726 = vpop.f32.mrb[0].mxu0
      %v2727 = vadd.f32 %v2566, %v2726
      %v2728 = vpop.f32.mrb[0].mxu0
      %v2729 = vpop.f32.mrb[0].mxu0
      %v2730 = vadd.f32 %v2569, %v2729
      %v2731 = vpop.f32.mrb[0].mxu0
      %2732 = vmatprep.mubr.bf16.mxu0 %v1836
      %2733 = vmatmul.mubr.bf16.gmra.mrb[0].mxu0 %v1835
      %v2734 = vpop.f32.mrb[0].mxu0
      %v2735 = vadd.f32 %v2574, %v2734
      %v2736 = vpop.f32.mrb[0].mxu0
      %v2737 = vpop.f32.mrb[0].mxu0
      %v2738 = vadd.f32 %v2577, %v2737
      %v2739 = vpop.f32.mrb[0].mxu0
      %2740 = vmatprep.mubr.bf16.mxu0 %v1845
      %2741 = vmatmul.mubr.bf16.gmra.mrb[0].mxu0 %v1844
      %v2742 = vpop.f32.mrb[0].mxu0
      %v2743 = vadd.f32 %v2582, %v2742
      %v2744 = vpop.f32.mrb[0].mxu0
      %v2745 = vpop.f32.mrb[0].mxu0
      %v2746 = vadd.f32 %v2585, %v2745
      %v2747 = vpop.f32.mrb[0].mxu0
      %2748 = vdwg.mxu0
      %2749 = vmatprep.subr.bf16.mxu0 0
      %2750 = vmatpush1.bf16.msra.mxu0 %v2315
      %2751 = vmatprep.subr.bf16.mxu0 0
      %2752 = vmatpush1.bf16.msra.mxu0 %v2316
      %2753 = vmatprep.subr.bf16.mxu0 0
      %2754 = vmatpush1.bf16.msra.mxu0 %v2317
      %2755 = vmatprep.subr.bf16.mxu0 0
      %2756 = vmatpush1.bf16.msra.mxu0 %v2318
      %2757 = vmatprep.subr.bf16.mxu0 0
      %2758 = vmatpush1.bf16.msra.mxu0 %v2319
      %2759 = vmatprep.subr.bf16.mxu0 0
      %2760 = vmatpush1.bf16.msra.mxu0 %v2320
      %2761 = vmatprep.subr.bf16.mxu0 0
      %2762 = vmatpush1.bf16.msra.mxu0 %v2321
      %2763 = vmatprep.subr.bf16.mxu0 0
      %2764 = vmatpush1.bf16.msra.mxu0 %v2322
      %2765 = vmatprep.subr.bf16.mxu0 0
      %2766 = vmatpush1.bf16.msra.mxu0 %v2323
      %2767 = vmatprep.subr.bf16.mxu0 0
      %2768 = vmatpush1.bf16.msra.mxu0 %v2324
      %2769 = vmatprep.subr.bf16.mxu0 0
      %2770 = vmatpush1.bf16.msra.mxu0 %v2325
      %2771 = vmatprep.subr.bf16.mxu0 0
      %2772 = vmatpush1.bf16.msra.mxu0 %v2326
      %2773 = vmatprep.subr.bf16.mxu0 0
      %2774 = vmatpush1.bf16.msra.mxu0 %v2327
      %2775 = vmatprep.subr.bf16.mxu0 0
      %2776 = vmatpush1.bf16.msra.mxu0 %v2328
      %2777 = vmatprep.subr.bf16.mxu0 0
      %2778 = vmatpush1.bf16.msra.mxu0 %v2329
      %2779 = vmatprep.subr.bf16.mxu0 0
      %2780 = vmatpush1.bf16.msra.mxu0 %v2330
      %2781 = vmatprep.mubr.bf16.mxu0 %v1712
      %2782 = vmatmul.mubr.bf16.gmra.mrb[0].mxu0 %v1711
      %v2783 = vpop.f32.mrb[0].mxu0
      %v2784 = vadd.f32 %v2623, %v2783
      %v2785 = vpop.f32.mrb[0].mxu0
      %v2786 = vpop.f32.mrb[0].mxu0
      %v2787 = vadd.f32 %v2626, %v2786
      %v2788 = vpop.f32.mrb[0].mxu0
      %2789 = vmatprep.mubr.bf16.mxu0 %v1721
      %2790 = vmatmul.mubr.bf16.gmra.mrb[0].mxu0 %v1720
      %v2791 = vpop.f32.mrb[0].mxu0
      %v2792 = vadd.f32 %v2631, %v2791
      %v2793 = vpop.f32.mrb[0].mxu0
      %v2794 = vpop.f32.mrb[0].mxu0
      %v2795 = vadd.f32 %v2634, %v2794
      %v2796 = vpop.f32.mrb[0].mxu0
      %2797 = vmatprep.mubr.bf16.mxu0 %v1730
      %2798 = vmatmul.mubr.bf16.gmra.mrb[0].mxu0 %v1729
      %v2799 = vpop.f32.mrb[0].mxu0
      %v2800 = vadd.f32 %v2639, %v2799
      %v2801 = vpop.f32.mrb[0].mxu0
      %v2802 = vpop.f32.mrb[0].mxu0
      %v2803 = vadd.f32 %v2642, %v2802
      %v2804 = vpop.f32.mrb[0].mxu0
      %2805 = vmatprep.mubr.bf16.mxu0 %v1739
      %2806 = vmatmul.mubr.bf16.gmra.mrb[0].mxu0 %v1738
      %v2807 = vpop.f32.mrb[0].mxu0
      %v2808 = vadd.f32 %v2647, %v2807
      %v2809 = vpop.f32.mrb[0].mxu0
      %v2810 = vpop.f32.mrb[0].mxu0
      %v2811 = vadd.f32 %v2650, %v2810
      %v2812 = vpop.f32.mrb[0].mxu0
      %2813 = vmatprep.mubr.bf16.mxu0 %v1748
      %2814 = vmatmul.mubr.bf16.gmra.mrb[0].mxu0 %v1747
      %v2815 = vpop.f32.mrb[0].mxu0
      %v2816 = vadd.f32 %v2655, %v2815
      %v2817 = vpop.f32.mrb[0].mxu0
      %v2818 = vpop.f32.mrb[0].mxu0
      %v2819 = vadd.f32 %v2658, %v2818
      %v2820 = vpop.f32.mrb[0].mxu0
      %2821 = vmatprep.mubr.bf16.mxu0 %v1757
      %2822 = vmatmul.mubr.bf16.gmra.mrb[0].mxu0 %v1756
      %v2823 = vpop.f32.mrb[0].mxu0
      %v2824 = vadd.f32 %v2663, %v2823
      %v2825 = vpop.f32.mrb[0].mxu0
      %v2826 = vpop.f32.mrb[0].mxu0
      %v2827 = vadd.f32 %v2666, %v2826
      %v2828 = vpop.f32.mrb[0].mxu0
      %2829 = vmatprep.mubr.bf16.mxu0 %v1766
      %2830 = vmatmul.mubr.bf16.gmra.mrb[0].mxu0 %v1765
      %v2831 = vpop.f32.mrb[0].mxu0
      %v2832 = vadd.f32 %v2671, %v2831
      %v2833 = vpop.f32.mrb[0].mxu0
      %v2834 = vpop.f32.mrb[0].mxu0
      %v2835 = vadd.f32 %v2674, %v2834
      %v2836 = vpop.f32.mrb[0].mxu0
      %2837 = vmatprep.mubr.bf16.mxu0 %v1775
      %2838 = vmatmul.mubr.bf16.gmra.mrb[0].mxu0 %v1774
      %v2839 = vpop.f32.mrb[0].mxu0
      %v2840 = vadd.f32 %v2679, %v2839
      %v2841 = vpop.f32.mrb[0].mxu0
      %v2842 = vpop.f32.mrb[0].mxu0
      %v2843 = vadd.f32 %v2682, %v2842
      %v2844 = vpop.f32.mrb[0].mxu0
      %2845 = vmatprep.mubr.bf16.mxu0 %v1784
      %2846 = vmatmul.mubr.bf16.gmra.mrb[0].mxu0 %v1783
      %v2847 = vpop.f32.mrb[0].mxu0
      %v2848 = vadd.f32 %v2687, %v2847
      %v2849 = vpop.f32.mrb[0].mxu0
      %v2850 = vpop.f32.mrb[0].mxu0
      %v2851 = vadd.f32 %v2690, %v2850
      %v2852 = vpop.f32.mrb[0].mxu0
      %2853 = vmatprep.mubr.bf16.mxu0 %v1793
      %2854 = vmatmul.mubr.bf16.gmra.mrb[0].mxu0 %v1792
      %v2855 = vpop.f32.mrb[0].mxu0
      %v2856 = vadd.f32 %v2695, %v2855
      %v2857 = vpop.f32.mrb[0].mxu0
      %v2858 = vpop.f32.mrb[0].mxu0
      %v2859 = vadd.f32 %v2698, %v2858
      %v2860 = vpop.f32.mrb[0].mxu0
      %2861 = vmatprep.mubr.bf16.mxu0 %v1802
      %2862 = vmatmul.mubr.bf16.gmra.mrb[0].mxu0 %v1801
      %v2863 = vpop.f32.mrb[0].mxu0
      %v2864 = vadd.f32 %v2703, %v2863
      %v2865 = vpop.f32.mrb[0].mxu0
      %v2866 = vpop.f32.mrb[0].mxu0
      %v2867 = vadd.f32 %v2706, %v2866
      %v2868 = vpop.f32.mrb[0].mxu0
      %2869 = vmatprep.mubr.bf16.mxu0 %v1811
      %2870 = vmatmul.mubr.bf16.gmra.mrb[0].mxu0 %v1810
      %v2871 = vpop.f32.mrb[0].mxu0
      %v2872 = vadd.f32 %v2711, %v2871
      %v2873 = vpop.f32.mrb[0].mxu0
      %v2874 = vpop.f32.mrb[0].mxu0
      %v2875 = vadd.f32 %v2714, %v2874
      %v2876 = vpop.f32.mrb[0].mxu0
      %2877 = vmatprep.mubr.bf16.mxu0 %v1820
      %2878 = vmatmul.mubr.bf16.gmra.mrb[0].mxu0 %v1819
      %v2879 = vpop.f32.mrb[0].mxu0
      %v2880 = vadd.f32 %v2719, %v2879
      %v2881 = vpop.f32.mrb[0].mxu0
      %v2882 = vpop.f32.mrb[0].mxu0
      %v2883 = vadd.f32 %v2722, %v2882
      %v2884 = vpop.f32.mrb[0].mxu0
      %2885 = vmatprep.mubr.bf16.mxu0 %v1829
      %2886 = vmatmul.mubr.bf16.gmra.mrb[0].mxu0 %v1828
      %v2887 = vpop.f32.mrb[0].mxu0
      %v2888 = vadd.f32 %v2727, %v2887
      %v2889 = vpop.f32.mrb[0].mxu0
      %v2890 = vpop.f32.mrb[0].mxu0
      %v2891 = vadd.f32 %v2730, %v2890
      %v2892 = vpop.f32.mrb[0].mxu0
      %2893 = vmatprep.mubr.bf16.mxu0 %v1838
      %2894 = vmatmul.mubr.bf16.gmra.mrb[0].mxu0 %v1837
      %v2895 = vpop.f32.mrb[0].mxu0
      %v2896 = vadd.f32 %v2735, %v2895
      %v2897 = vpop.f32.mrb[0].mxu0
      %v2898 = vpop.f32.mrb[0].mxu0
      %v2899 = vadd.f32 %v2738, %v2898
      %v2900 = vpop.f32.mrb[0].mxu0
      %2901 = vmatprep.mubr.bf16.mxu0 %v1847
      %2902 = vmatmul.mubr.bf16.gmra.mrb[0].mxu0 %v1846
      %v2903 = vpop.f32.mrb[0].mxu0
      %v2904 = vadd.f32 %v2743, %v2903
      %v2905 = vpop.f32.mrb[0].mxu0
      %v2906 = vpop.f32.mrb[0].mxu0
      %v2907 = vadd.f32 %v2746, %v2906
      %v2908 = vpop.f32.mrb[0].mxu0
      %2909 = vdwg.mxu0
      %2910 = vmatprep.subr.bf16.mxu0 0
      %2911 = vmatpush1.bf16.msra.mxu0 %v2331
      %2912 = vmatprep.subr.bf16.mxu0 0
      %2913 = vmatpush1.bf16.msra.mxu0 %v2332
      %2914 = vmatprep.subr.bf16.mxu0 0
      %2915 = vmatpush1.bf16.msra.mxu0 %v2333
      %2916 = vmatprep.subr.bf16.mxu0 0
      %2917 = vmatpush1.bf16.msra.mxu0 %v2334
      %2918 = vmatprep.subr.bf16.mxu0 0
      %2919 = vmatpush1.bf16.msra.mxu0 %v2335
      %2920 = vmatprep.subr.bf16.mxu0 0
      %2921 = vmatpush1.bf16.msra.mxu0 %v2336
      %2922 = vmatprep.subr.bf16.mxu0 0
      %2923 = vmatpush1.bf16.msra.mxu0 %v2337
      %2924 = vmatprep.subr.bf16.mxu0 0
      %2925 = vmatpush1.bf16.msra.mxu0 %v2338
      %2926 = vmatprep.subr.bf16.mxu0 0
      %2927 = vmatpush1.bf16.msra.mxu0 %v2339
      %2928 = vmatprep.subr.bf16.mxu0 0
      %2929 = vmatpush1.bf16.msra.mxu0 %v2340
      %2930 = vmatprep.subr.bf16.mxu0 0
      %2931 = vmatpush1.bf16.msra.mxu0 %v2341
      %2932 = vmatprep.subr.bf16.mxu0 0
      %2933 = vmatpush1.bf16.msra.mxu0 %v2342
      %2934 = vmatprep.subr.bf16.mxu0 0
      %2935 = vmatpush1.bf16.msra.mxu0 %v2343
      %2936 = vmatprep.subr.bf16.mxu0 0
      %2937 = vmatpush1.bf16.msra.mxu0 %v2344
      %2938 = vmatprep.subr.bf16.mxu0 0
      %2939 = vmatpush1.bf16.msra.mxu0 %v2345
      %2940 = vmatprep.subr.bf16.mxu0 0
      %2941 = vmatpush1.bf16.msra.mxu0 %v2346
      %2942 = vmatprep.mubr.bf16.mxu0 %v1714
      %2943 = vmatmul.mubr.bf16.gmra.mrb[0].mxu0 %v1713
      %v2944 = vpop.f32.mrb[0].mxu0
      %v2945 = vadd.f32 %v2784, %v2944
      %v2946 = vpop.f32.mrb[0].mxu0
      %v2947 = vpop.f32.mrb[0].mxu0
      %v2948 = vadd.f32 %v2787, %v2947
      %v2949 = vpop.f32.mrb[0].mxu0
      %2950 = vmatprep.mubr.bf16.mxu0 %v1723
      %2951 = vmatmul.mubr.bf16.gmra.mrb[0].mxu0 %v1722
      %v2952 = vpop.f32.mrb[0].mxu0
      %v2953 = vadd.f32 %v2792, %v2952
      %v2954 = vpop.f32.mrb[0].mxu0
      %v2955 = vpop.f32.mrb[0].mxu0
      %v2956 = vadd.f32 %v2795, %v2955
      %v2957 = vpop.f32.mrb[0].mxu0
      %2958 = vmatprep.mubr.bf16.mxu0 %v1732
      %2959 = vmatmul.mubr.bf16.gmra.mrb[0].mxu0 %v1731
      %v2960 = vpop.f32.mrb[0].mxu0
      %v2961 = vadd.f32 %v2800, %v2960
      %v2962 = vpop.f32.mrb[0].mxu0
      %v2963 = vpop.f32.mrb[0].mxu0
      %v2964 = vadd.f32 %v2803, %v2963
      %v2965 = vpop.f32.mrb[0].mxu0
      %2966 = vmatprep.mubr.bf16.mxu0 %v1741
      %2967 = vmatmul.mubr.bf16.gmra.mrb[0].mxu0 %v1740
      %v2968 = vpop.f32.mrb[0].mxu0
      %v2969 = vadd.f32 %v2808, %v2968
      %v2970 = vpop.f32.mrb[0].mxu0
      %v2971 = vpop.f32.mrb[0].mxu0
      %v2972 = vadd.f32 %v2811, %v2971
      %v2973 = vpop.f32.mrb[0].mxu0
      %2974 = vmatprep.mubr.bf16.mxu0 %v1750
      %2975 = vmatmul.mubr.bf16.gmra.mrb[0].mxu0 %v1749
      %v2976 = vpop.f32.mrb[0].mxu0
      %v2977 = vadd.f32 %v2816, %v2976
      %v2978 = vpop.f32.mrb[0].mxu0
      %v2979 = vpop.f32.mrb[0].mxu0
      %v2980 = vadd.f32 %v2819, %v2979
      %v2981 = vpop.f32.mrb[0].mxu0
      %2982 = vmatprep.mubr.bf16.mxu0 %v1759
      %2983 = vmatmul.mubr.bf16.gmra.mrb[0].mxu0 %v1758
      %v2984 = vpop.f32.mrb[0].mxu0
      %v2985 = vadd.f32 %v2824, %v2984
      %v2986 = vpop.f32.mrb[0].mxu0
      %v2987 = vpop.f32.mrb[0].mxu0
      %v2988 = vadd.f32 %v2827, %v2987
      %v2989 = vpop.f32.mrb[0].mxu0
      %2990 = vmatprep.mubr.bf16.mxu0 %v1768
      %2991 = vmatmul.mubr.bf16.gmra.mrb[0].mxu0 %v1767
      %v2992 = vpop.f32.mrb[0].mxu0
      %v2993 = vadd.f32 %v2832, %v2992
      %v2994 = vpop.f32.mrb[0].mxu0
      %v2995 = vpop.f32.mrb[0].mxu0
      %v2996 = vadd.f32 %v2835, %v2995
      %v2997 = vpop.f32.mrb[0].mxu0
      %2998 = vmatprep.mubr.bf16.mxu0 %v1777
      %2999 = vmatmul.mubr.bf16.gmra.mrb[0].mxu0 %v1776
      %v3000 = vpop.f32.mrb[0].mxu0
      %v3001 = vadd.f32 %v2840, %v3000
      %v3002 = vpop.f32.mrb[0].mxu0
      %v3003 = vpop.f32.mrb[0].mxu0
      %v3004 = vadd.f32 %v2843, %v3003
      %v3005 = vpop.f32.mrb[0].mxu0
      %3006 = vmatprep.mubr.bf16.mxu0 %v1786
      %3007 = vmatmul.mubr.bf16.gmra.mrb[0].mxu0 %v1785
      %v3008 = vpop.f32.mrb[0].mxu0
      %v3009 = vadd.f32 %v2848, %v3008
      %v3010 = vpop.f32.mrb[0].mxu0
      %v3011 = vpop.f32.mrb[0].mxu0
      %v3012 = vadd.f32 %v2851, %v3011
      %v3013 = vpop.f32.mrb[0].mxu0
      %3014 = vmatprep.mubr.bf16.mxu0 %v1795
      %3015 = vmatmul.mubr.bf16.gmra.mrb[0].mxu0 %v1794
      %v3016 = vpop.f32.mrb[0].mxu0
      %v3017 = vadd.f32 %v2856, %v3016
      %v3018 = vpop.f32.mrb[0].mxu0
      %v3019 = vpop.f32.mrb[0].mxu0
      %v3020 = vadd.f32 %v2859, %v3019
      %v3021 = vpop.f32.mrb[0].mxu0
      %3022 = vmatprep.mubr.bf16.mxu0 %v1804
      %3023 = vmatmul.mubr.bf16.gmra.mrb[0].mxu0 %v1803
      %v3024 = vpop.f32.mrb[0].mxu0
      %v3025 = vadd.f32 %v2864, %v3024
      %v3026 = vpop.f32.mrb[0].mxu0
      %v3027 = vpop.f32.mrb[0].mxu0
      %v3028 = vadd.f32 %v2867, %v3027
      %v3029 = vpop.f32.mrb[0].mxu0
      %3030 = vmatprep.mubr.bf16.mxu0 %v1813
      %3031 = vmatmul.mubr.bf16.gmra.mrb[0].mxu0 %v1812
      %v3032 = vpop.f32.mrb[0].mxu0
      %v3033 = vadd.f32 %v2872, %v3032
      %v3034 = vpop.f32.mrb[0].mxu0
      %v3035 = vpop.f32.mrb[0].mxu0
      %v3036 = vadd.f32 %v2875, %v3035
      %v3037 = vpop.f32.mrb[0].mxu0
      %3038 = vmatprep.mubr.bf16.mxu0 %v1822
      %3039 = vmatmul.mubr.bf16.gmra.mrb[0].mxu0 %v1821
      %v3040 = vpop.f32.mrb[0].mxu0
      %v3041 = vadd.f32 %v2880, %v3040
      %v3042 = vpop.f32.mrb[0].mxu0
      %v3043 = vpop.f32.mrb[0].mxu0
      %v3044 = vadd.f32 %v2883, %v3043
      %v3045 = vpop.f32.mrb[0].mxu0
      %3046 = vmatprep.mubr.bf16.mxu0 %v1831
      %3047 = vmatmul.mubr.bf16.gmra.mrb[0].mxu0 %v1830
      %v3048 = vpop.f32.mrb[0].mxu0
      %v3049 = vadd.f32 %v2888, %v3048
      %v3050 = vpop.f32.mrb[0].mxu0
      %v3051 = vpop.f32.mrb[0].mxu0
      %v3052 = vadd.f32 %v2891, %v3051
      %v3053 = vpop.f32.mrb[0].mxu0
      %3054 = vmatprep.mubr.bf16.mxu0 %v1840
      %3055 = vmatmul.mubr.bf16.gmra.mrb[0].mxu0 %v1839
      %v3056 = vpop.f32.mrb[0].mxu0
      %v3057 = vadd.f32 %v2896, %v3056
      %v3058 = vpop.f32.mrb[0].mxu0
      %v3059 = vpop.f32.mrb[0].mxu0
      %v3060 = vadd.f32 %v2899, %v3059
      %v3061 = vpop.f32.mrb[0].mxu0
      %3062 = vmatprep.mubr.bf16.mxu0 %v1849
      %3063 = vmatmul.mubr.bf16.gmra.mrb[0].mxu0 %v1848
      %v3064 = vpop.f32.mrb[0].mxu0
      %v3065 = vadd.f32 %v2904, %v3064
      %v3066 = vpop.f32.mrb[0].mxu0
      %v3067 = vpop.f32.mrb[0].mxu0
      %v3068 = vadd.f32 %v2907, %v3067
      %v3069 = vpop.f32.mrb[0].mxu0
      %3070 = vdwg.mxu0
      %3071 = vmatprep.subr.bf16.mxu0 0
      %3072 = vmatpush1.bf16.msra.mxu0 %v2347
      %3073 = vmatprep.subr.bf16.mxu0 0
      %3074 = vmatpush1.bf16.msra.mxu0 %v2348
      %3075 = vmatprep.subr.bf16.mxu0 0
      %3076 = vmatpush1.bf16.msra.mxu0 %v2349
      %3077 = vmatprep.subr.bf16.mxu0 0
      %3078 = vmatpush1.bf16.msra.mxu0 %v2350
      %3079 = vmatprep.subr.bf16.mxu0 0
      %3080 = vmatpush1.bf16.msra.mxu0 %v2351
      %3081 = vmatprep.subr.bf16.mxu0 0
      %3082 = vmatpush1.bf16.msra.mxu0 %v2352
      %3083 = vmatprep.subr.bf16.mxu0 0
      %3084 = vmatpush1.bf16.msra.mxu0 %v2353
      %3085 = vmatprep.subr.bf16.mxu0 0
      %3086 = vmatpush1.bf16.msra.mxu0 %v2354
      %3087 = vmatprep.subr.bf16.mxu0 0
      %3088 = vmatpush1.bf16.msra.mxu0 0
      %3089 = vmatprep.subr.bf16.mxu0 0
      %3090 = vmatpush1.bf16.msra.mxu0 0
      %3091 = vmatprep.subr.bf16.mxu0 0
      %3092 = vmatpush1.bf16.msra.mxu0 0
      %3093 = vmatprep.subr.bf16.mxu0 0
      %3094 = vmatpush1.bf16.msra.mxu0 0
      %3095 = vmatprep.subr.bf16.mxu0 0
      %3096 = vmatpush1.bf16.msra.mxu0 0
      %3097 = vmatprep.subr.bf16.mxu0 0
      %3098 = vmatpush1.bf16.msra.mxu0 0
      %3099 = vmatprep.subr.bf16.mxu0 0
      %3100 = vmatpush1.bf16.msra.mxu0 0
      %3101 = vmatprep.subr.bf16.mxu0 0
      %3102 = vmatpush1.bf16.msra.mxu0 0
      %3103 = vmatprep.mubr.bf16.mxu0 0
      %3104 = vmatmul.mubr.bf16.gmra.mrb[0].mxu0 %v1715
      %v3105 = vpop.f32.mrb[0].mxu0
      %v3106 = vadd.f32 %v2945, %v3105
      %v3107 = vpop.f32.mrb[0].mxu0
      %v3108 = vpop.f32.mrb[0].mxu0
      %v3109 = vadd.f32 %v2948, %v3108
      %v3110 = vpop.f32.mrb[0].mxu0
      %3111 = vmatprep.mubr.bf16.mxu0 0
      %3112 = vmatmul.mubr.bf16.gmra.mrb[0].mxu0 %v1724
      %v3113 = vpop.f32.mrb[0].mxu0
      %v3114 = vadd.f32 %v2953, %v3113
      %v3115 = vpop.f32.mrb[0].mxu0
      %v3116 = vpop.f32.mrb[0].mxu0
      %v3117 = vadd.f32 %v2956, %v3116
      %v3118 = vpop.f32.mrb[0].mxu0
      %3119 = vmatprep.mubr.bf16.mxu0 0
      %3120 = vmatmul.mubr.bf16.gmra.mrb[0].mxu0 %v1733
      %v3121 = vpop.f32.mrb[0].mxu0
      %v3122 = vadd.f32 %v2961, %v3121
      %v3123 = vpop.f32.mrb[0].mxu0
      %v3124 = vpop.f32.mrb[0].mxu0
      %v3125 = vadd.f32 %v2964, %v3124
      %v3126 = vpop.f32.mrb[0].mxu0
      %3127 = vmatprep.mubr.bf16.mxu0 0
      %3128 = vmatmul.mubr.bf16.gmra.mrb[0].mxu0 %v1742
      %v3129 = vpop.f32.mrb[0].mxu0
      %v3130 = vadd.f32 %v2969, %v3129
      %v3131 = vpop.f32.mrb[0].mxu0
      %v3132 = vpop.f32.mrb[0].mxu0
      %v3133 = vadd.f32 %v2972, %v3132
      %v3134 = vpop.f32.mrb[0].mxu0
      %3135 = vmatprep.mubr.bf16.mxu0 0
      %3136 = vmatmul.mubr.bf16.gmra.mrb[0].mxu0 %v1751
      %v3137 = vpop.f32.mrb[0].mxu0
      %v3138 = vadd.f32 %v2977, %v3137
      %v3139 = vpop.f32.mrb[0].mxu0
      %v3140 = vpop.f32.mrb[0].mxu0
      %v3141 = vadd.f32 %v2980, %v3140
      %v3142 = vpop.f32.mrb[0].mxu0
      %3143 = vmatprep.mubr.bf16.mxu0 0
      %3144 = vmatmul.mubr.bf16.gmra.mrb[0].mxu0 %v1760
      %v3145 = vpop.f32.mrb[0].mxu0
      %v3146 = vadd.f32 %v2985, %v3145
      %v3147 = vpop.f32.mrb[0].mxu0
      %v3148 = vpop.f32.mrb[0].mxu0
      %v3149 = vadd.f32 %v2988, %v3148
      %v3150 = vpop.f32.mrb[0].mxu0
      %3151 = vmatprep.mubr.bf16.mxu0 0
      %3152 = vmatmul.mubr.bf16.gmra.mrb[0].mxu0 %v1769
      %v3153 = vpop.f32.mrb[0].mxu0
      %v3154 = vadd.f32 %v2993, %v3153
      %v3155 = vpop.f32.mrb[0].mxu0
      %v3156 = vpop.f32.mrb[0].mxu0
      %v3157 = vadd.f32 %v2996, %v3156
      %v3158 = vpop.f32.mrb[0].mxu0
      %3159 = vmatprep.mubr.bf16.mxu0 0
      %3160 = vmatmul.mubr.bf16.gmra.mrb[0].mxu0 %v1778
      %v3161 = vpop.f32.mrb[0].mxu0
      %v3162 = vadd.f32 %v3001, %v3161
      %v3163 = vpop.f32.mrb[0].mxu0
      %v3164 = vpop.f32.mrb[0].mxu0
      %v3165 = vadd.f32 %v3004, %v3164
      %v3166 = vpop.f32.mrb[0].mxu0
      %3167 = vmatprep.mubr.bf16.mxu0 0
      %3168 = vmatmul.mubr.bf16.gmra.mrb[0].mxu0 %v1787
      %v3169 = vpop.f32.mrb[0].mxu0
      %v3170 = vadd.f32 %v3009, %v3169
      %v3171 = vpop.f32.mrb[0].mxu0
      %v3172 = vpop.f32.mrb[0].mxu0
      %v3173 = vadd.f32 %v3012, %v3172
      %v3174 = vpop.f32.mrb[0].mxu0
      %3175 = vmatprep.mubr.bf16.mxu0 0
      %3176 = vmatmul.mubr.bf16.gmra.mrb[0].mxu0 %v1796
      %v3177 = vpop.f32.mrb[0].mxu0
      %v3178 = vadd.f32 %v3017, %v3177
      %v3179 = vpop.f32.mrb[0].mxu0
      %v3180 = vpop.f32.mrb[0].mxu0
      %v3181 = vadd.f32 %v3020, %v3180
      %v3182 = vpop.f32.mrb[0].mxu0
      %3183 = vmatprep.mubr.bf16.mxu0 0
      %3184 = vmatmul.mubr.bf16.gmra.mrb[0].mxu0 %v1805
      %v3185 = vpop.f32.mrb[0].mxu0
      %v3186 = vadd.f32 %v3025, %v3185
      %v3187 = vpop.f32.mrb[0].mxu0
      %v3188 = vpop.f32.mrb[0].mxu0
      %v3189 = vadd.f32 %v3028, %v3188
      %v3190 = vpop.f32.mrb[0].mxu0
      %3191 = vmatprep.mubr.bf16.mxu0 0
      %3192 = vmatmul.mubr.bf16.gmra.mrb[0].mxu0 %v1814
      %v3193 = vpop.f32.mrb[0].mxu0
      %v3194 = vadd.f32 %v3033, %v3193
      %v3195 = vpop.f32.mrb[0].mxu0
      %v3196 = vpop.f32.mrb[0].mxu0
      %v3197 = vadd.f32 %v3036, %v3196
      %v3198 = vpop.f32.mrb[0].mxu0
      %3199 = vmatprep.mubr.bf16.mxu0 0
      %3200 = vmatmul.mubr.bf16.gmra.mrb[0].mxu0 %v1823
      %v3201 = vpop.f32.mrb[0].mxu0
      %v3202 = vadd.f32 %v3041, %v3201
      %v3203 = vpop.f32.mrb[0].mxu0
      %v3204 = vpop.f32.mrb[0].mxu0
      %v3205 = vadd.f32 %v3044, %v3204
      %v3206 = vpop.f32.mrb[0].mxu0
      %3207 = vmatprep.mubr.bf16.mxu0 0
      %3208 = vmatmul.mubr.bf16.gmra.mrb[0].mxu0 %v1832
      %v3209 = vpop.f32.mrb[0].mxu0
      %v3210 = vadd.f32 %v3049, %v3209
      %v3211 = vpop.f32.mrb[0].mxu0
      %v3212 = vpop.f32.mrb[0].mxu0
      %v3213 = vadd.f32 %v3052, %v3212
      %v3214 = vpop.f32.mrb[0].mxu0
      %3215 = vmatprep.mubr.bf16.mxu0 0
      %3216 = vmatmul.mubr.bf16.gmra.mrb[0].mxu0 %v1841
      %v3217 = vpop.f32.mrb[0].mxu0
      %v3218 = vadd.f32 %v3057, %v3217
      %v3219 = vpop.f32.mrb[0].mxu0
      %v3220 = vpop.f32.mrb[0].mxu0
      %v3221 = vadd.f32 %v3060, %v3220
      %v3222 = vpop.f32.mrb[0].mxu0
      %3223 = vmatprep.mubr.bf16.mxu0 0
      %3224 = vmatmul.mubr.bf16.gmra.mrb[0].mxu0 %v1850
      %v3225 = vpop.f32.mrb[0].mxu0
      %v3226 = vadd.f32 %v3065, %v3225
      %v3227 = vpop.f32.mrb[0].mxu0
      %v3228 = vpop.f32.mrb[0].mxu0
      %v3229 = vadd.f32 %v3068, %v3228
      %v3230 = vpop.f32.mrb[0].mxu0
      %3231 = vdwg.mxu0
      %s3232 = smul.u32 %s18, 256
      %v3233 = vlaneseq
      %v3234 = vshrl.u32 %v3233, 7
      %v3235 = vadd.s32 %v3234, 8
      %v3236 = vadd.s32 %v3234, 16
      %v3237 = vadd.s32 %v3234, 24
      %v3238 = vadd.s32 %v3234, 32
      %v3239 = vadd.s32 %v3234, 40
      %v3240 = vadd.s32 %v3234, 48
      %v3241 = vadd.s32 %v3234, 56
      %v3242 = vadd.s32 %v3234, 64
      %v3243 = vadd.s32 %v3234, 72
      %v3244 = vadd.s32 %v3234, 80
      %v3245 = vadd.s32 %v3234, 88
      %v3246 = vadd.s32 %v3234, 96
      %v3247 = vadd.s32 %v3234, 104
      %v3248 = vadd.s32 %v3234, 112
      %v3249 = vadd.s32 %v3234, 120
      %v3250 = vadd.s32 %v3234, 128
      %v3251 = vadd.s32 %v3234, 136
      %v3252 = vadd.s32 %v3234, 144
      %v3253 = vadd.s32 %v3234, 152
      %v3254 = vadd.s32 %v3234, 160
      %v3255 = vadd.s32 %v3234, 168
      %v3256 = vadd.s32 %v3234, 176
      %v3257 = vadd.s32 %v3234, 184
      %v3258 = vadd.s32 %v3234, 192
      %v3259 = vadd.s32 %v3234, 200
      %v3260 = vadd.s32 %v3234, 208
      %v3261 = vadd.s32 %v3234, 216
      %v3262 = vadd.s32 %v3234, 224
      %v3263 = vadd.s32 %v3234, 232
      %v3264 = vadd.s32 %v3234, 240
      %v3265 = vadd.s32 %v3234, 248
      %v3266 = vstv %s3232
      %v3267 = vadd.s32 %v3266, %v3234
      %v3268 = vadd.s32 %v3266, %v3235
      %v3269 = vadd.s32 %v3266, %v3236
      %v3270 = vadd.s32 %v3266, %v3237
      %v3271 = vadd.s32 %v3266, %v3238
      %v3272 = vadd.s32 %v3266, %v3239
      %v3273 = vadd.s32 %v3266, %v3240
      %v3274 = vadd.s32 %v3266, %v3241
      %v3275 = vadd.s32 %v3266, %v3242
      %v3276 = vadd.s32 %v3266, %v3243
      %v3277 = vadd.s32 %v3266, %v3244
      %v3278 = vadd.s32 %v3266, %v3245
      %v3279 = vadd.s32 %v3266, %v3246
      %v3280 = vadd.s32 %v3266, %v3247
      %v3281 = vadd.s32 %v3266, %v3248
      %v3282 = vadd.s32 %v3266, %v3249
      %v3283 = vadd.s32 %v3266, %v3250
      %v3284 = vadd.s32 %v3266, %v3251
      %v3285 = vadd.s32 %v3266, %v3252
      %v3286 = vadd.s32 %v3266, %v3253
      %v3287 = vadd.s32 %v3266, %v3254
      %v3288 = vadd.s32 %v3266, %v3255
      %v3289 = vadd.s32 %v3266, %v3256
      %v3290 = vadd.s32 %v3266, %v3257
      %v3291 = vadd.s32 %v3266, %v3258
      %v3292 = vadd.s32 %v3266, %v3259
      %v3293 = vadd.s32 %v3266, %v3260
      %v3294 = vadd.s32 %v3266, %v3261
      %v3295 = vadd.s32 %v3266, %v3262
      %v3296 = vadd.s32 %v3266, %v3263
      %v3297 = vadd.s32 %v3266, %v3264
      %v3298 = vadd.s32 %v3266, %v3265
      %vm3299 = vcmp.lt.s32.totalorder %v3267, 288
      %vm3300 = vcmp.lt.s32.totalorder %v3268, 288
      %vm3301 = vcmp.lt.s32.totalorder %v3269, 288
      %vm3302 = vcmp.lt.s32.totalorder %v3270, 288
      %vm3303 = vcmp.lt.s32.totalorder %v3271, 288
      %vm3304 = vcmp.lt.s32.totalorder %v3272, 288
      %vm3305 = vcmp.lt.s32.totalorder %v3273, 288
      %vm3306 = vcmp.lt.s32.totalorder %v3274, 288
      %vm3307 = vcmp.lt.s32.totalorder %v3275, 288
      %vm3308 = vcmp.lt.s32.totalorder %v3276, 288
      %vm3309 = vcmp.lt.s32.totalorder %v3277, 288
      %vm3310 = vcmp.lt.s32.totalorder %v3278, 288
      %vm3311 = vcmp.lt.s32.totalorder %v3279, 288
      %vm3312 = vcmp.lt.s32.totalorder %v3280, 288
      %vm3313 = vcmp.lt.s32.totalorder %v3281, 288
      %vm3314 = vcmp.lt.s32.totalorder %v3282, 288
      %vm3315 = vcmp.lt.s32.totalorder %v3283, 288
      %vm3316 = vcmp.lt.s32.totalorder %v3284, 288
      %vm3317 = vcmp.lt.s32.totalorder %v3285, 288
      %vm3318 = vcmp.lt.s32.totalorder %v3286, 288
      %vm3319 = vcmp.lt.s32.totalorder %v3287, 288
      %vm3320 = vcmp.lt.s32.totalorder %v3288, 288
      %vm3321 = vcmp.lt.s32.totalorder %v3289, 288
      %vm3322 = vcmp.lt.s32.totalorder %v3290, 288
      %vm3323 = vcmp.lt.s32.totalorder %v3291, 288
      %vm3324 = vcmp.lt.s32.totalorder %v3292, 288
      %vm3325 = vcmp.lt.s32.totalorder %v3293, 288
      %vm3326 = vcmp.lt.s32.totalorder %v3294, 288
      %vm3327 = vcmp.lt.s32.totalorder %v3295, 288
      %vm3328 = vcmp.lt.s32.totalorder %v3296, 288
      %vm3329 = vcmp.lt.s32.totalorder %v3297, 288
      %vm3330 = vcmp.lt.s32.totalorder %v3298, 288
      %v3331 = vsel %vm3299, 1, 0
      %v3332 = vsel %vm3300, 1, 0
      %v3333 = vsel %vm3301, 1, 0
      %v3334 = vsel %vm3302, 1, 0
      %v3335 = vsel %vm3303, 1, 0
      %v3336 = vsel %vm3304, 1, 0
      %v3337 = vsel %vm3305, 1, 0
      %v3338 = vsel %vm3306, 1, 0
      %v3339 = vsel %vm3307, 1, 0
      %v3340 = vsel %vm3308, 1, 0
      %v3341 = vsel %vm3309, 1, 0
      %v3342 = vsel %vm3310, 1, 0
      %v3343 = vsel %vm3311, 1, 0
      %v3344 = vsel %vm3312, 1, 0
      %v3345 = vsel %vm3313, 1, 0
      %v3346 = vsel %vm3314, 1, 0
      %v3347 = vsel %vm3315, 1, 0
      %v3348 = vsel %vm3316, 1, 0
      %v3349 = vsel %vm3317, 1, 0
      %v3350 = vsel %vm3318, 1, 0
      %v3351 = vsel %vm3319, 1, 0
      %v3352 = vsel %vm3320, 1, 0
      %v3353 = vsel %vm3321, 1, 0
      %v3354 = vsel %vm3322, 1, 0
      %v3355 = vsel %vm3323, 1, 0
      %v3356 = vsel %vm3324, 1, 0
      %v3357 = vsel %vm3325, 1, 0
      %v3358 = vsel %vm3326, 1, 0
      %v3359 = vsel %vm3327, 1, 0
      %v3360 = vsel %vm3328, 1, 0
      %v3361 = vsel %vm3329, 1, 0
      %v3362 = vsel %vm3330, 1, 0
      %vm3363 = vcmp.eq.s32.totalorder %v3331, 1
      %vm3364 = vcmp.eq.s32.totalorder %v3332, 1
      %vm3365 = vcmp.eq.s32.totalorder %v3333, 1
      %vm3366 = vcmp.eq.s32.totalorder %v3334, 1
      %vm3367 = vcmp.eq.s32.totalorder %v3335, 1
      %vm3368 = vcmp.eq.s32.totalorder %v3336, 1
      %vm3369 = vcmp.eq.s32.totalorder %v3337, 1
      %vm3370 = vcmp.eq.s32.totalorder %v3338, 1
      %vm3371 = vcmp.eq.s32.totalorder %v3339, 1
      %vm3372 = vcmp.eq.s32.totalorder %v3340, 1
      %vm3373 = vcmp.eq.s32.totalorder %v3341, 1
      %vm3374 = vcmp.eq.s32.totalorder %v3342, 1
      %vm3375 = vcmp.eq.s32.totalorder %v3343, 1
      %vm3376 = vcmp.eq.s32.totalorder %v3344, 1
      %vm3377 = vcmp.eq.s32.totalorder %v3345, 1
      %vm3378 = vcmp.eq.s32.totalorder %v3346, 1
      %vm3379 = vcmp.eq.s32.totalorder %v3347, 1
      %vm3380 = vcmp.eq.s32.totalorder %v3348, 1
      %vm3381 = vcmp.eq.s32.totalorder %v3349, 1
      %vm3382 = vcmp.eq.s32.totalorder %v3350, 1
      %vm3383 = vcmp.eq.s32.totalorder %v3351, 1
      %vm3384 = vcmp.eq.s32.totalorder %v3352, 1
      %vm3385 = vcmp.eq.s32.totalorder %v3353, 1
      %vm3386 = vcmp.eq.s32.totalorder %v3354, 1
      %vm3387 = vcmp.eq.s32.totalorder %v3355, 1
      %vm3388 = vcmp.eq.s32.totalorder %v3356, 1
      %vm3389 = vcmp.eq.s32.totalorder %v3357, 1
      %vm3390 = vcmp.eq.s32.totalorder %v3358, 1
      %vm3391 = vcmp.eq.s32.totalorder %v3359, 1
      %vm3392 = vcmp.eq.s32.totalorder %v3360, 1
      %vm3393 = vcmp.eq.s32.totalorder %v3361, 1
      %vm3394 = vcmp.eq.s32.totalorder %v3362, 1
      %v3395 = vsel %vm3363, %v3106, 0.0
      %v3396 = vsel %vm3364, %v3109, 0.0
      %v3397 = vsel %vm3365, %v3114, 0.0
      %v3398 = vsel %vm3366, %v3117, 0.0
      %v3399 = vsel %vm3367, %v3122, 0.0
      %v3400 = vsel %vm3368, %v3125, 0.0
      %v3401 = vsel %vm3369, %v3130, 0.0
      %v3402 = vsel %vm3370, %v3133, 0.0
      %v3403 = vsel %vm3371, %v3138, 0.0
      %v3404 = vsel %vm3372, %v3141, 0.0
      %v3405 = vsel %vm3373, %v3146, 0.0
      %v3406 = vsel %vm3374, %v3149, 0.0
      %v3407 = vsel %vm3375, %v3154, 0.0
      %v3408 = vsel %vm3376, %v3157, 0.0
      %v3409 = vsel %vm3377, %v3162, 0.0
      %v3410 = vsel %vm3378, %v3165, 0.0
      %v3411 = vsel %vm3379, %v3170, 0.0
      %v3412 = vsel %vm3380, %v3173, 0.0
      %v3413 = vsel %vm3381, %v3178, 0.0
      %v3414 = vsel %vm3382, %v3181, 0.0
      %v3415 = vsel %vm3383, %v3186, 0.0
      %v3416 = vsel %vm3384, %v3189, 0.0
      %v3417 = vsel %vm3385, %v3194, 0.0
      %v3418 = vsel %vm3386, %v3197, 0.0
      %v3419 = vsel %vm3387, %v3202, 0.0
      %v3420 = vsel %vm3388, %v3205, 0.0
      %v3421 = vsel %vm3389, %v3210, 0.0
      %v3422 = vsel %vm3390, %v3213, 0.0
      %v3423 = vsel %vm3391, %v3218, 0.0
      %v3424 = vsel %vm3392, %v3221, 0.0
      %v3425 = vsel %vm3393, %v3226, 0.0
      %v3426 = vsel %vm3394, %v3229, 0.0
      %3427 = vst [vmem:[%s290] sm:$0xff] %v3395
      %3428 = vst [vmem:[%s290 + $0x10] sm:$0xff] %v3396
      %3429 = vst [vmem:[%s290 + $0x20] sm:$0xff] %v3397
      %3430 = vst [vmem:[%s290 + $0x30] sm:$0xff] %v3398
      %3431 = vst [vmem:[%s290 + $0x40] sm:$0xff] %v3399
      %3432 = vst [vmem:[%s290 + $0x50] sm:$0xff] %v3400
      %3433 = vst [vmem:[%s290 + $0x60] sm:$0xff] %v3401
      %3434 = vst [vmem:[%s290 + $0x70] sm:$0xff] %v3402
      %3435 = vst [vmem:[%s290 + $0x80] sm:$0xff] %v3403
      %3436 = vst [vmem:[%s290 + $0x90] sm:$0xff] %v3404
      %3437 = vst [vmem:[%s290 + $0xa0] sm:$0xff] %v3405
      %3438 = vst [vmem:[%s290 + $0xb0] sm:$0xff] %v3406
      %3439 = vst [vmem:[%s290 + $0xc0] sm:$0xff] %v3407
      %3440 = vst [vmem:[%s290 + $0xd0] sm:$0xff] %v3408
      %3441 = vst [vmem:[%s290 + $0xe0] sm:$0xff] %v3409
      %3442 = vst [vmem:[%s290 + $0xf0] sm:$0xff] %v3410
      %3443 = vst [vmem:[%s290 + $0x100] sm:$0xff] %v3411
      %3444 = vst [vmem:[%s290 + $0x110] sm:$0xff] %v3412
      %3445 = vst [vmem:[%s290 + $0x120] sm:$0xff] %v3413
      %3446 = vst [vmem:[%s290 + $0x130] sm:$0xff] %v3414
      %3447 = vst [vmem:[%s290 + $0x140] sm:$0xff] %v3415
      %3448 = vst [vmem:[%s290 + $0x150] sm:$0xff] %v3416
      %3449 = vst [vmem:[%s290 + $0x160] sm:$0xff] %v3417
      %3450 = vst [vmem:[%s290 + $0x170] sm:$0xff] %v3418
      %3451 = vst [vmem:[%s290 + $0x180] sm:$0xff] %v3419
      %3452 = vst [vmem:[%s290 + $0x190] sm:$0xff] %v3420
      %3453 = vst [vmem:[%s290 + $0x1a0] sm:$0xff] %v3421
      %3454 = vst [vmem:[%s290 + $0x1b0] sm:$0xff] %v3422
      %3455 = vst [vmem:[%s290 + $0x1c0] sm:$0xff] %v3423
      %3456 = vst [vmem:[%s290 + $0x1d0] sm:$0xff] %v3424
      %3457 = vst [vmem:[%s290 + $0x1e0] sm:$0xff] %v3425
      %3458 = vst [vmem:[%s290 + $0x1f0] sm:$0xff] %v3426
      %v3459 = vld [vmem:[%s283] sm:$0xf]
      %v3460 = vld [vmem:[%s283 + $0x24] sm:$0xf]
      %v3461 = vld [vmem:[%s283 + $0x48] sm:$0xf]
      %v3462 = vld [vmem:[%s283 + $0x6c] sm:$0xf]
      %v3463 = vld [vmem:[%s283 + $0x90] sm:$0xf]
      %v3464 = vld [vmem:[%s283 + $0xb4] sm:$0xf]
      %v3465 = vld [vmem:[%s283 + $0xd8] sm:$0xf]
      %v3466 = vld [vmem:[%s283 + $0xfc] sm:$0xf]
      %v3467 = vld [vmem:[%s283 + $0x120] sm:$0xf]
      %v3468 = vld [vmem:[%s283 + $0x144] sm:$0xf]
      %v3469 = vld [vmem:[%s283 + $0x168] sm:$0xf]
      %v3470 = vld [vmem:[%s283 + $0x18c] sm:$0xf]
      %v3471 = vld [vmem:[%s283 + $0x1b0] sm:$0xf]
      %v3472 = vld [vmem:[%s283 + $0x1d4] sm:$0xf]
      %v3473 = vld [vmem:[%s283 + $0x1f8] sm:$0xf]
      %v3474 = vld [vmem:[%s283 + $0x21c] sm:$0xf]
      %v3475 = vld [vmem:[%s283 + $0x240] sm:$0xf]
      %v3476 = vld [vmem:[%s283 + $0x264] sm:$0xf]
      %v3477 = vld [vmem:[%s283 + $0x288] sm:$0xf]
      %v3478 = vld [vmem:[%s283 + $0x2ac] sm:$0xf]
      %v3479 = vld [vmem:[%s283 + $0x2d0] sm:$0xf]
      %v3480 = vld [vmem:[%s283 + $0x2f4] sm:$0xf]
      %v3481 = vld [vmem:[%s283 + $0x318] sm:$0xf]
      %v3482 = vld [vmem:[%s283 + $0x33c] sm:$0xf]
      %v3483 = vld [vmem:[%s283 + $0x360] sm:$0xf]
      %v3484 = vld [vmem:[%s283 + $0x384] sm:$0xf]
      %v3485 = vld [vmem:[%s283 + $0x3a8] sm:$0xf]
      %v3486 = vld [vmem:[%s283 + $0x3cc] sm:$0xf]
      %v3487 = vld [vmem:[%s283 + $0x3f0] sm:$0xf]
      %v3488 = vld [vmem:[%s283 + $0x414] sm:$0xf]
      %v3489 = vld [vmem:[%s283 + $0x438] sm:$0xf]
      %v3490 = vld [vmem:[%s283 + $0x45c] sm:$0xf]
      %v3491 = vunpack.c.l.bf16 %v3459
      %v3492 = vunpack.c.l.bf16 %v3460
      %v3493 = vunpack.c.l.bf16 %v3461
      %v3494 = vunpack.c.l.bf16 %v3462
      %v3495 = vunpack.c.l.bf16 %v3463
      %v3496 = vunpack.c.l.bf16 %v3464
      %v3497 = vunpack.c.l.bf16 %v3465
      %v3498 = vunpack.c.l.bf16 %v3466
      %v3499 = vunpack.c.l.bf16 %v3467
      %v3500 = vunpack.c.l.bf16 %v3468
      %v3501 = vunpack.c.l.bf16 %v3469
      %v3502 = vunpack.c.l.bf16 %v3470
      %v3503 = vunpack.c.l.bf16 %v3471
      %v3504 = vunpack.c.l.bf16 %v3472
      %v3505 = vunpack.c.l.bf16 %v3473
      %v3506 = vunpack.c.l.bf16 %v3474
      %v3507 = vunpack.c.l.bf16 %v3475
      %v3508 = vunpack.c.l.bf16 %v3476
      %v3509 = vunpack.c.l.bf16 %v3477
      %v3510 = vunpack.c.l.bf16 %v3478
      %v3511 = vunpack.c.l.bf16 %v3479
      %v3512 = vunpack.c.l.bf16 %v3480
      %v3513 = vunpack.c.l.bf16 %v3481
      %v3514 = vunpack.c.l.bf16 %v3482
      %v3515 = vunpack.c.l.bf16 %v3483
      %v3516 = vunpack.c.l.bf16 %v3484
      %v3517 = vunpack.c.l.bf16 %v3485
      %v3518 = vunpack.c.l.bf16 %v3486
      %v3519 = vunpack.c.l.bf16 %v3487
      %v3520 = vunpack.c.l.bf16 %v3488
      %v3521 = vunpack.c.l.bf16 %v3489
      %v3522 = vunpack.c.l.bf16 %v3490
      %v3523 = vld [vmem:[%s283 + $0x4] sm:$0xf]
      %v3524 = vld [vmem:[%s283 + $0x28] sm:$0xf]
      %v3525 = vld [vmem:[%s283 + $0x4c] sm:$0xf]
      %v3526 = vld [vmem:[%s283 + $0x70] sm:$0xf]
      %v3527 = vld [vmem:[%s283 + $0x94] sm:$0xf]
      %v3528 = vld [vmem:[%s283 + $0xb8] sm:$0xf]
      %v3529 = vld [vmem:[%s283 + $0xdc] sm:$0xf]
      %v3530 = vld [vmem:[%s283 + $0x100] sm:$0xf]
      %v3531 = vld [vmem:[%s283 + $0x124] sm:$0xf]
      %v3532 = vld [vmem:[%s283 + $0x148] sm:$0xf]
      %v3533 = vld [vmem:[%s283 + $0x16c] sm:$0xf]
      %v3534 = vld [vmem:[%s283 + $0x190] sm:$0xf]
      %v3535 = vld [vmem:[%s283 + $0x1b4] sm:$0xf]
      %v3536 = vld [vmem:[%s283 + $0x1d8] sm:$0xf]
      %v3537 = vld [vmem:[%s283 + $0x1fc] sm:$0xf]
      %v3538 = vld [vmem:[%s283 + $0x220] sm:$0xf]
      %v3539 = vld [vmem:[%s283 + $0x244] sm:$0xf]
      %v3540 = vld [vmem:[%s283 + $0x268] sm:$0xf]
      %v3541 = vld [vmem:[%s283 + $0x28c] sm:$0xf]
      %v3542 = vld [vmem:[%s283 + $0x2b0] sm:$0xf]
      %v3543 = vld [vmem:[%s283 + $0x2d4] sm:$0xf]
      %v3544 = vld [vmem:[%s283 + $0x2f8] sm:$0xf]
      %v3545 = vld [vmem:[%s283 + $0x31c] sm:$0xf]
      %v3546 = vld [vmem:[%s283 + $0x340] sm:$0xf]
      %v3547 = vld [vmem:[%s283 + $0x364] sm:$0xf]
      %v3548 = vld [vmem:[%s283 + $0x388] sm:$0xf]
      %v3549 = vld [vmem:[%s283 + $0x3ac] sm:$0xf]
      %v3550 = vld [vmem:[%s283 + $0x3d0] sm:$0xf]
      %v3551 = vld [vmem:[%s283 + $0x3f4] sm:$0xf]
      %v3552 = vld [vmem:[%s283 + $0x418] sm:$0xf]
      %v3553 = vld [vmem:[%s283 + $0x43c] sm:$0xf]
      %v3554 = vld [vmem:[%s283 + $0x460] sm:$0xf]
      %v3555 = vunpack.c.l.bf16 %v3523
      %v3556 = vunpack.c.l.bf16 %v3524
      %v3557 = vunpack.c.l.bf16 %v3525
      %v3558 = vunpack.c.l.bf16 %v3526
      %v3559 = vunpack.c.l.bf16 %v3527
      %v3560 = vunpack.c.l.bf16 %v3528
      %v3561 = vunpack.c.l.bf16 %v3529
      %v3562 = vunpack.c.l.bf16 %v3530
      %v3563 = vunpack.c.l.bf16 %v3531
      %v3564 = vunpack.c.l.bf16 %v3532
      %v3565 = vunpack.c.l.bf16 %v3533
      %v3566 = vunpack.c.l.bf16 %v3534
      %v3567 = vunpack.c.l.bf16 %v3535
      %v3568 = vunpack.c.l.bf16 %v3536
      %v3569 = vunpack.c.l.bf16 %v3537
      %v3570 = vunpack.c.l.bf16 %v3538
      %v3571 = vunpack.c.l.bf16 %v3539
      %v3572 = vunpack.c.l.bf16 %v3540
      %v3573 = vunpack.c.l.bf16 %v3541
      %v3574 = vunpack.c.l.bf16 %v3542
      %v3575 = vunpack.c.l.bf16 %v3543
      %v3576 = vunpack.c.l.bf16 %v3544
      %v3577 = vunpack.c.l.bf16 %v3545
      %v3578 = vunpack.c.l.bf16 %v3546
      %v3579 = vunpack.c.l.bf16 %v3547
      %v3580 = vunpack.c.l.bf16 %v3548
      %v3581 = vunpack.c.l.bf16 %v3549
      %v3582 = vunpack.c.l.bf16 %v3550
      %v3583 = vunpack.c.l.bf16 %v3551
      %v3584 = vunpack.c.l.bf16 %v3552
      %v3585 = vunpack.c.l.bf16 %v3553
      %v3586 = vunpack.c.l.bf16 %v3554
      %v3587 = vadd.f32 %v3491, %v3555
      %v3588 = vadd.f32 %v3492, %v3556
      %v3589 = vadd.f32 %v3493, %v3557
      %v3590 = vadd.f32 %v3494, %v3558
      %v3591 = vadd.f32 %v3495, %v3559
      %v3592 = vadd.f32 %v3496, %v3560
      %v3593 = vadd.f32 %v3497, %v3561
      %v3594 = vadd.f32 %v3498, %v3562
      %v3595 = vadd.f32 %v3499, %v3563
      %v3596 = vadd.f32 %v3500, %v3564
      %v3597 = vadd.f32 %v3501, %v3565
      %v3598 = vadd.f32 %v3502, %v3566
      %v3599 = vadd.f32 %v3503, %v3567
      %v3600 = vadd.f32 %v3504, %v3568
      %v3601 = vadd.f32 %v3505, %v3569
      %v3602 = vadd.f32 %v3506, %v3570
      %v3603 = vadd.f32 %v3507, %v3571
      %v3604 = vadd.f32 %v3508, %v3572
      %v3605 = vadd.f32 %v3509, %v3573
      %v3606 = vadd.f32 %v3510, %v3574
      %v3607 = vadd.f32 %v3511, %v3575
      %v3608 = vadd.f32 %v3512, %v3576
      %v3609 = vadd.f32 %v3513, %v3577
      %v3610 = vadd.f32 %v3514, %v3578
      %v3611 = vadd.f32 %v3515, %v3579
      %v3612 = vadd.f32 %v3516, %v3580
      %v3613 = vadd.f32 %v3517, %v3581
      %v3614 = vadd.f32 %v3518, %v3582
      %v3615 = vadd.f32 %v3519, %v3583
      %v3616 = vadd.f32 %v3520, %v3584
      %v3617 = vadd.f32 %v3521, %v3585
      %v3618 = vadd.f32 %v3522, %v3586
      %v3619 = vld [vmem:[%s283 + $0x8] sm:$0xf]
      %v3620 = vld [vmem:[%s283 + $0x2c] sm:$0xf]
      %v3621 = vld [vmem:[%s283 + $0x50] sm:$0xf]
      %v3622 = vld [vmem:[%s283 + $0x74] sm:$0xf]
      %v3623 = vld [vmem:[%s283 + $0x98] sm:$0xf]
      %v3624 = vld [vmem:[%s283 + $0xbc] sm:$0xf]
      %v3625 = vld [vmem:[%s283 + $0xe0] sm:$0xf]
      %v3626 = vld [vmem:[%s283 + $0x104] sm:$0xf]
      %v3627 = vld [vmem:[%s283 + $0x128] sm:$0xf]
      %v3628 = vld [vmem:[%s283 + $0x14c] sm:$0xf]
      %v3629 = vld [vmem:[%s283 + $0x170] sm:$0xf]
      %v3630 = vld [vmem:[%s283 + $0x194] sm:$0xf]
      %v3631 = vld [vmem:[%s283 + $0x1b8] sm:$0xf]
      %v3632 = vld [vmem:[%s283 + $0x1dc] sm:$0xf]
      %v3633 = vld [vmem:[%s283 + $0x200] sm:$0xf]
      %v3634 = vld [vmem:[%s283 + $0x224] sm:$0xf]
      %v3635 = vld [vmem:[%s283 + $0x248] sm:$0xf]
      %v3636 = vld [vmem:[%s283 + $0x26c] sm:$0xf]
      %v3637 = vld [vmem:[%s283 + $0x290] sm:$0xf]
      %v3638 = vld [vmem:[%s283 + $0x2b4] sm:$0xf]
      %v3639 = vld [vmem:[%s283 + $0x2d8] sm:$0xf]
      %v3640 = vld [vmem:[%s283 + $0x2fc] sm:$0xf]
      %v3641 = vld [vmem:[%s283 + $0x320] sm:$0xf]
      %v3642 = vld [vmem:[%s283 + $0x344] sm:$0xf]
      %v3643 = vld [vmem:[%s283 + $0x368] sm:$0xf]
      %v3644 = vld [vmem:[%s283 + $0x38c] sm:$0xf]
      %v3645 = vld [vmem:[%s283 + $0x3b0] sm:$0xf]
      %v3646 = vld [vmem:[%s283 + $0x3d4] sm:$0xf]
      %v3647 = vld [vmem:[%s283 + $0x3f8] sm:$0xf]
      %v3648 = vld [vmem:[%s283 + $0x41c] sm:$0xf]
      %v3649 = vld [vmem:[%s283 + $0x440] sm:$0xf]
      %v3650 = vld [vmem:[%s283 + $0x464] sm:$0xf]
      %v3651 = vunpack.c.l.bf16 %v3619
      %v3652 = vunpack.c.l.bf16 %v3620
      %v3653 = vunpack.c.l.bf16 %v3621
      %v3654 = vunpack.c.l.bf16 %v3622
      %v3655 = vunpack.c.l.bf16 %v3623
      %v3656 = vunpack.c.l.bf16 %v3624
      %v3657 = vunpack.c.l.bf16 %v3625
      %v3658 = vunpack.c.l.bf16 %v3626
      %v3659 = vunpack.c.l.bf16 %v3627
      %v3660 = vunpack.c.l.bf16 %v3628
      %v3661 = vunpack.c.l.bf16 %v3629
      %v3662 = vunpack.c.l.bf16 %v3630
      %v3663 = vunpack.c.l.bf16 %v3631
      %v3664 = vunpack.c.l.bf16 %v3632
      %v3665 = vunpack.c.l.bf16 %v3633
      %v3666 = vunpack.c.l.bf16 %v3634
      %v3667 = vunpack.c.l.bf16 %v3635
      %v3668 = vunpack.c.l.bf16 %v3636
      %v3669 = vunpack.c.l.bf16 %v3637
      %v3670 = vunpack.c.l.bf16 %v3638
      %v3671 = vunpack.c.l.bf16 %v3639
      %v3672 = vunpack.c.l.bf16 %v3640
      %v3673 = vunpack.c.l.bf16 %v3641
      %v3674 = vunpack.c.l.bf16 %v3642
      %v3675 = vunpack.c.l.bf16 %v3643
      %v3676 = vunpack.c.l.bf16 %v3644
      %v3677 = vunpack.c.l.bf16 %v3645
      %v3678 = vunpack.c.l.bf16 %v3646
      %v3679 = vunpack.c.l.bf16 %v3647
      %v3680 = vunpack.c.l.bf16 %v3648
      %v3681 = vunpack.c.l.bf16 %v3649
      %v3682 = vunpack.c.l.bf16 %v3650
      %v3683 = vadd.f32 %v3587, %v3651
      %v3684 = vadd.f32 %v3588, %v3652
      %v3685 = vadd.f32 %v3589, %v3653
      %v3686 = vadd.f32 %v3590, %v3654
      %v3687 = vadd.f32 %v3591, %v3655
      %v3688 = vadd.f32 %v3592, %v3656
      %v3689 = vadd.f32 %v3593, %v3657
      %v3690 = vadd.f32 %v3594, %v3658
      %v3691 = vadd.f32 %v3595, %v3659
      %v3692 = vadd.f32 %v3596, %v3660
      %v3693 = vadd.f32 %v3597, %v3661
      %v3694 = vadd.f32 %v3598, %v3662
      %v3695 = vadd.f32 %v3599, %v3663
      %v3696 = vadd.f32 %v3600, %v3664
      %v3697 = vadd.f32 %v3601, %v3665
      %v3698 = vadd.f32 %v3602, %v3666
      %v3699 = vadd.f32 %v3603, %v3667
      %v3700 = vadd.f32 %v3604, %v3668
      %v3701 = vadd.f32 %v3605, %v3669
      %v3702 = vadd.f32 %v3606, %v3670
      %v3703 = vadd.f32 %v3607, %v3671
      %v3704 = vadd.f32 %v3608, %v3672
      %v3705 = vadd.f32 %v3609, %v3673
      %v3706 = vadd.f32 %v3610, %v3674
      %v3707 = vadd.f32 %v3611, %v3675
      %v3708 = vadd.f32 %v3612, %v3676
      %v3709 = vadd.f32 %v3613, %v3677
      %v3710 = vadd.f32 %v3614, %v3678
      %v3711 = vadd.f32 %v3615, %v3679
      %v3712 = vadd.f32 %v3616, %v3680
      %v3713 = vadd.f32 %v3617, %v3681
      %v3714 = vadd.f32 %v3618, %v3682
      %v3715 = vld [vmem:[%s283 + $0xc] sm:$0xf]
      %v3716 = vld [vmem:[%s283 + $0x30] sm:$0xf]
      %v3717 = vld [vmem:[%s283 + $0x54] sm:$0xf]
      %v3718 = vld [vmem:[%s283 + $0x78] sm:$0xf]
      %v3719 = vld [vmem:[%s283 + $0x9c] sm:$0xf]
      %v3720 = vld [vmem:[%s283 + $0xc0] sm:$0xf]
      %v3721 = vld [vmem:[%s283 + $0xe4] sm:$0xf]
      %v3722 = vld [vmem:[%s283 + $0x108] sm:$0xf]
      %v3723 = vld [vmem:[%s283 + $0x12c] sm:$0xf]
      %v3724 = vld [vmem:[%s283 + $0x150] sm:$0xf]
      %v3725 = vld [vmem:[%s283 + $0x174] sm:$0xf]
      %v3726 = vld [vmem:[%s283 + $0x198] sm:$0xf]
      %v3727 = vld [vmem:[%s283 + $0x1bc] sm:$0xf]
      %v3728 = vld [vmem:[%s283 + $0x1e0] sm:$0xf]
      %v3729 = vld [vmem:[%s283 + $0x204] sm:$0xf]
      %v3730 = vld [vmem:[%s283 + $0x228] sm:$0xf]
      %v3731 = vld [vmem:[%s283 + $0x24c] sm:$0xf]
      %v3732 = vld [vmem:[%s283 + $0x270] sm:$0xf]
      %v3733 = vld [vmem:[%s283 + $0x294] sm:$0xf]
      %v3734 = vld [vmem:[%s283 + $0x2b8] sm:$0xf]
      %v3735 = vld [vmem:[%s283 + $0x2dc] sm:$0xf]
      %v3736 = vld [vmem:[%s283 + $0x300] sm:$0xf]
      %v3737 = vld [vmem:[%s283 + $0x324] sm:$0xf]
      %v3738 = vld [vmem:[%s283 + $0x348] sm:$0xf]
      %v3739 = vld [vmem:[%s283 + $0x36c] sm:$0xf]
      %v3740 = vld [vmem:[%s283 + $0x390] sm:$0xf]
      %v3741 = vld [vmem:[%s283 + $0x3b4] sm:$0xf]
      %v3742 = vld [vmem:[%s283 + $0x3d8] sm:$0xf]
      %v3743 = vld [vmem:[%s283 + $0x3fc] sm:$0xf]
      %v3744 = vld [vmem:[%s283 + $0x420] sm:$0xf]
      %v3745 = vld [vmem:[%s283 + $0x444] sm:$0xf]
      %v3746 = vld [vmem:[%s283 + $0x468] sm:$0xf]
      %v3747 = vunpack.c.l.bf16 %v3715
      %v3748 = vunpack.c.l.bf16 %v3716
      %v3749 = vunpack.c.l.bf16 %v3717
      %v3750 = vunpack.c.l.bf16 %v3718
      %v3751 = vunpack.c.l.bf16 %v3719
      %v3752 = vunpack.c.l.bf16 %v3720
      %v3753 = vunpack.c.l.bf16 %v3721
      %v3754 = vunpack.c.l.bf16 %v3722
      %v3755 = vunpack.c.l.bf16 %v3723
      %v3756 = vunpack.c.l.bf16 %v3724
      %v3757 = vunpack.c.l.bf16 %v3725
      %v3758 = vunpack.c.l.bf16 %v3726
      %v3759 = vunpack.c.l.bf16 %v3727
      %v3760 = vunpack.c.l.bf16 %v3728
      %v3761 = vunpack.c.l.bf16 %v3729
      %v3762 = vunpack.c.l.bf16 %v3730
      %v3763 = vunpack.c.l.bf16 %v3731
      %v3764 = vunpack.c.l.bf16 %v3732
      %v3765 = vunpack.c.l.bf16 %v3733
      %v3766 = vunpack.c.l.bf16 %v3734
      %v3767 = vunpack.c.l.bf16 %v3735
      %v3768 = vunpack.c.l.bf16 %v3736
      %v3769 = vunpack.c.l.bf16 %v3737
      %v3770 = vunpack.c.l.bf16 %v3738
      %v3771 = vunpack.c.l.bf16 %v3739
      %v3772 = vunpack.c.l.bf16 %v3740
      %v3773 = vunpack.c.l.bf16 %v3741
      %v3774 = vunpack.c.l.bf16 %v3742
      %v3775 = vunpack.c.l.bf16 %v3743
      %v3776 = vunpack.c.l.bf16 %v3744
      %v3777 = vunpack.c.l.bf16 %v3745
      %v3778 = vunpack.c.l.bf16 %v3746
      %v3779 = vadd.f32 %v3683, %v3747
      %v3780 = vadd.f32 %v3684, %v3748
      %v3781 = vadd.f32 %v3685, %v3749
      %v3782 = vadd.f32 %v3686, %v3750
      %v3783 = vadd.f32 %v3687, %v3751
      %v3784 = vadd.f32 %v3688, %v3752
      %v3785 = vadd.f32 %v3689, %v3753
      %v3786 = vadd.f32 %v3690, %v3754
      %v3787 = vadd.f32 %v3691, %v3755
      %v3788 = vadd.f32 %v3692, %v3756
      %v3789 = vadd.f32 %v3693, %v3757
      %v3790 = vadd.f32 %v3694, %v3758
      %v3791 = vadd.f32 %v3695, %v3759
      %v3792 = vadd.f32 %v3696, %v3760
      %v3793 = vadd.f32 %v3697, %v3761
      %v3794 = vadd.f32 %v3698, %v3762
      %v3795 = vadd.f32 %v3699, %v3763
      %v3796 = vadd.f32 %v3700, %v3764
      %v3797 = vadd.f32 %v3701, %v3765
      %v3798 = vadd.f32 %v3702, %v3766
      %v3799 = vadd.f32 %v3703, %v3767
      %v3800 = vadd.f32 %v3704, %v3768
      %v3801 = vadd.f32 %v3705, %v3769
      %v3802 = vadd.f32 %v3706, %v3770
      %v3803 = vadd.f32 %v3707, %v3771
      %v3804 = vadd.f32 %v3708, %v3772
      %v3805 = vadd.f32 %v3709, %v3773
      %v3806 = vadd.f32 %v3710, %v3774
      %v3807 = vadd.f32 %v3711, %v3775
      %v3808 = vadd.f32 %v3712, %v3776
      %v3809 = vadd.f32 %v3713, %v3777
      %v3810 = vadd.f32 %v3714, %v3778
      %v3811 = vld [vmem:[%s283 + $0x10] sm:$0xf]
      %v3812 = vld [vmem:[%s283 + $0x34] sm:$0xf]
      %v3813 = vld [vmem:[%s283 + $0x58] sm:$0xf]
      %v3814 = vld [vmem:[%s283 + $0x7c] sm:$0xf]
      %v3815 = vld [vmem:[%s283 + $0xa0] sm:$0xf]
      %v3816 = vld [vmem:[%s283 + $0xc4] sm:$0xf]
      %v3817 = vld [vmem:[%s283 + $0xe8] sm:$0xf]
      %v3818 = vld [vmem:[%s283 + $0x10c] sm:$0xf]
      %v3819 = vld [vmem:[%s283 + $0x130] sm:$0xf]
      %v3820 = vld [vmem:[%s283 + $0x154] sm:$0xf]
      %v3821 = vld [vmem:[%s283 + $0x178] sm:$0xf]
      %v3822 = vld [vmem:[%s283 + $0x19c] sm:$0xf]
      %v3823 = vld [vmem:[%s283 + $0x1c0] sm:$0xf]
      %v3824 = vld [vmem:[%s283 + $0x1e4] sm:$0xf]
      %v3825 = vld [vmem:[%s283 + $0x208] sm:$0xf]
      %v3826 = vld [vmem:[%s283 + $0x22c] sm:$0xf]
      %v3827 = vld [vmem:[%s283 + $0x250] sm:$0xf]
      %v3828 = vld [vmem:[%s283 + $0x274] sm:$0xf]
      %v3829 = vld [vmem:[%s283 + $0x298] sm:$0xf]
      %v3830 = vld [vmem:[%s283 + $0x2bc] sm:$0xf]
      %v3831 = vld [vmem:[%s283 + $0x2e0] sm:$0xf]
      %v3832 = vld [vmem:[%s283 + $0x304] sm:$0xf]
      %v3833 = vld [vmem:[%s283 + $0x328] sm:$0xf]
      %v3834 = vld [vmem:[%s283 + $0x34c] sm:$0xf]
      %v3835 = vld [vmem:[%s283 + $0x370] sm:$0xf]
      %v3836 = vld [vmem:[%s283 + $0x394] sm:$0xf]
      %v3837 = vld [vmem:[%s283 + $0x3b8] sm:$0xf]
      %v3838 = vld [vmem:[%s283 + $0x3dc] sm:$0xf]
      %v3839 = vld [vmem:[%s283 + $0x400] sm:$0xf]
      %v3840 = vld [vmem:[%s283 + $0x424] sm:$0xf]
      %v3841 = vld [vmem:[%s283 + $0x448] sm:$0xf]
      %v3842 = vld [vmem:[%s283 + $0x46c] sm:$0xf]
      %v3843 = vunpack.c.l.bf16 %v3811
      %v3844 = vunpack.c.l.bf16 %v3812
      %v3845 = vunpack.c.l.bf16 %v3813
      %v3846 = vunpack.c.l.bf16 %v3814
      %v3847 = vunpack.c.l.bf16 %v3815
      %v3848 = vunpack.c.l.bf16 %v3816
      %v3849 = vunpack.c.l.bf16 %v3817
      %v3850 = vunpack.c.l.bf16 %v3818
      %v3851 = vunpack.c.l.bf16 %v3819
      %v3852 = vunpack.c.l.bf16 %v3820
      %v3853 = vunpack.c.l.bf16 %v3821
      %v3854 = vunpack.c.l.bf16 %v3822
      %v3855 = vunpack.c.l.bf16 %v3823
      %v3856 = vunpack.c.l.bf16 %v3824
      %v3857 = vunpack.c.l.bf16 %v3825
      %v3858 = vunpack.c.l.bf16 %v3826
      %v3859 = vunpack.c.l.bf16 %v3827
      %v3860 = vunpack.c.l.bf16 %v3828
      %v3861 = vunpack.c.l.bf16 %v3829
      %v3862 = vunpack.c.l.bf16 %v3830
      %v3863 = vunpack.c.l.bf16 %v3831
      %v3864 = vunpack.c.l.bf16 %v3832
      %v3865 = vunpack.c.l.bf16 %v3833
      %v3866 = vunpack.c.l.bf16 %v3834
      %v3867 = vunpack.c.l.bf16 %v3835
      %v3868 = vunpack.c.l.bf16 %v3836
      %v3869 = vunpack.c.l.bf16 %v3837
      %v3870 = vunpack.c.l.bf16 %v3838
      %v3871 = vunpack.c.l.bf16 %v3839
      %v3872 = vunpack.c.l.bf16 %v3840
      %v3873 = vunpack.c.l.bf16 %v3841
      %v3874 = vunpack.c.l.bf16 %v3842
      %v3875 = vadd.f32 %v3779, %v3843
      %v3876 = vadd.f32 %v3780, %v3844
      %v3877 = vadd.f32 %v3781, %v3845
      %v3878 = vadd.f32 %v3782, %v3846
      %v3879 = vadd.f32 %v3783, %v3847
      %v3880 = vadd.f32 %v3784, %v3848
      %v3881 = vadd.f32 %v3785, %v3849
      %v3882 = vadd.f32 %v3786, %v3850
      %v3883 = vadd.f32 %v3787, %v3851
      %v3884 = vadd.f32 %v3788, %v3852
      %v3885 = vadd.f32 %v3789, %v3853
      %v3886 = vadd.f32 %v3790, %v3854
      %v3887 = vadd.f32 %v3791, %v3855
      %v3888 = vadd.f32 %v3792, %v3856
      %v3889 = vadd.f32 %v3793, %v3857
      %v3890 = vadd.f32 %v3794, %v3858
      %v3891 = vadd.f32 %v3795, %v3859
      %v3892 = vadd.f32 %v3796, %v3860
      %v3893 = vadd.f32 %v3797, %v3861
      %v3894 = vadd.f32 %v3798, %v3862
      %v3895 = vadd.f32 %v3799, %v3863
      %v3896 = vadd.f32 %v3800, %v3864
      %v3897 = vadd.f32 %v3801, %v3865
      %v3898 = vadd.f32 %v3802, %v3866
      %v3899 = vadd.f32 %v3803, %v3867
      %v3900 = vadd.f32 %v3804, %v3868
      %v3901 = vadd.f32 %v3805, %v3869
      %v3902 = vadd.f32 %v3806, %v3870
      %v3903 = vadd.f32 %v3807, %v3871
      %v3904 = vadd.f32 %v3808, %v3872
      %v3905 = vadd.f32 %v3809, %v3873
      %v3906 = vadd.f32 %v3810, %v3874
      %v3907 = vld [vmem:[%s283 + $0x14] sm:$0xf]
      %v3908 = vld [vmem:[%s283 + $0x38] sm:$0xf]
      %v3909 = vld [vmem:[%s283 + $0x5c] sm:$0xf]
      %v3910 = vld [vmem:[%s283 + $0x80] sm:$0xf]
      %v3911 = vld [vmem:[%s283 + $0xa4] sm:$0xf]
      %v3912 = vld [vmem:[%s283 + $0xc8] sm:$0xf]
      %v3913 = vld [vmem:[%s283 + $0xec] sm:$0xf]
      %v3914 = vld [vmem:[%s283 + $0x110] sm:$0xf]
      %v3915 = vld [vmem:[%s283 + $0x134] sm:$0xf]
      %v3916 = vld [vmem:[%s283 + $0x158] sm:$0xf]
      %v3917 = vld [vmem:[%s283 + $0x17c] sm:$0xf]
      %v3918 = vld [vmem:[%s283 + $0x1a0] sm:$0xf]
      %v3919 = vld [vmem:[%s283 + $0x1c4] sm:$0xf]
      %v3920 = vld [vmem:[%s283 + $0x1e8] sm:$0xf]
      %v3921 = vld [vmem:[%s283 + $0x20c] sm:$0xf]
      %v3922 = vld [vmem:[%s283 + $0x230] sm:$0xf]
      %v3923 = vld [vmem:[%s283 + $0x254] sm:$0xf]
      %v3924 = vld [vmem:[%s283 + $0x278] sm:$0xf]
      %v3925 = vld [vmem:[%s283 + $0x29c] sm:$0xf]
      %v3926 = vld [vmem:[%s283 + $0x2c0] sm:$0xf]
      %v3927 = vld [vmem:[%s283 + $0x2e4] sm:$0xf]
      %v3928 = vld [vmem:[%s283 + $0x308] sm:$0xf]
      %v3929 = vld [vmem:[%s283 + $0x32c] sm:$0xf]
      %v3930 = vld [vmem:[%s283 + $0x350] sm:$0xf]
      %v3931 = vld [vmem:[%s283 + $0x374] sm:$0xf]
      %v3932 = vld [vmem:[%s283 + $0x398] sm:$0xf]
      %v3933 = vld [vmem:[%s283 + $0x3bc] sm:$0xf]
      %v3934 = vld [vmem:[%s283 + $0x3e0] sm:$0xf]
      %v3935 = vld [vmem:[%s283 + $0x404] sm:$0xf]
      %v3936 = vld [vmem:[%s283 + $0x428] sm:$0xf]
      %v3937 = vld [vmem:[%s283 + $0x44c] sm:$0xf]
      %v3938 = vld [vmem:[%s283 + $0x470] sm:$0xf]
      %v3939 = vunpack.c.l.bf16 %v3907
      %v3940 = vunpack.c.l.bf16 %v3908
      %v3941 = vunpack.c.l.bf16 %v3909
      %v3942 = vunpack.c.l.bf16 %v3910
      %v3943 = vunpack.c.l.bf16 %v3911
      %v3944 = vunpack.c.l.bf16 %v3912
      %v3945 = vunpack.c.l.bf16 %v3913
      %v3946 = vunpack.c.l.bf16 %v3914
      %v3947 = vunpack.c.l.bf16 %v3915
      %v3948 = vunpack.c.l.bf16 %v3916
      %v3949 = vunpack.c.l.bf16 %v3917
      %v3950 = vunpack.c.l.bf16 %v3918
      %v3951 = vunpack.c.l.bf16 %v3919
      %v3952 = vunpack.c.l.bf16 %v3920
      %v3953 = vunpack.c.l.bf16 %v3921
      %v3954 = vunpack.c.l.bf16 %v3922
      %v3955 = vunpack.c.l.bf16 %v3923
      %v3956 = vunpack.c.l.bf16 %v3924
      %v3957 = vunpack.c.l.bf16 %v3925
      %v3958 = vunpack.c.l.bf16 %v3926
      %v3959 = vunpack.c.l.bf16 %v3927
      %v3960 = vunpack.c.l.bf16 %v3928
      %v3961 = vunpack.c.l.bf16 %v3929
      %v3962 = vunpack.c.l.bf16 %v3930
      %v3963 = vunpack.c.l.bf16 %v3931
      %v3964 = vunpack.c.l.bf16 %v3932
      %v3965 = vunpack.c.l.bf16 %v3933
      %v3966 = vunpack.c.l.bf16 %v3934
      %v3967 = vunpack.c.l.bf16 %v3935
      %v3968 = vunpack.c.l.bf16 %v3936
      %v3969 = vunpack.c.l.bf16 %v3937
      %v3970 = vunpack.c.l.bf16 %v3938
      %v3971 = vadd.f32 %v3875, %v3939
      %v3972 = vadd.f32 %v3876, %v3940
      %v3973 = vadd.f32 %v3877, %v3941
      %v3974 = vadd.f32 %v3878, %v3942
      %v3975 = vadd.f32 %v3879, %v3943
      %v3976 = vadd.f32 %v3880, %v3944
      %v3977 = vadd.f32 %v3881, %v3945
      %v3978 = vadd.f32 %v3882, %v3946
      %v3979 = vadd.f32 %v3883, %v3947
      %v3980 = vadd.f32 %v3884, %v3948
      %v3981 = vadd.f32 %v3885, %v3949
      %v3982 = vadd.f32 %v3886, %v3950
      %v3983 = vadd.f32 %v3887, %v3951
      %v3984 = vadd.f32 %v3888, %v3952
      %v3985 = vadd.f32 %v3889, %v3953
      %v3986 = vadd.f32 %v3890, %v3954
      %v3987 = vadd.f32 %v3891, %v3955
      %v3988 = vadd.f32 %v3892, %v3956
      %v3989 = vadd.f32 %v3893, %v3957
      %v3990 = vadd.f32 %v3894, %v3958
      %v3991 = vadd.f32 %v3895, %v3959
      %v3992 = vadd.f32 %v3896, %v3960
      %v3993 = vadd.f32 %v3897, %v3961
      %v3994 = vadd.f32 %v3898, %v3962
      %v3995 = vadd.f32 %v3899, %v3963
      %v3996 = vadd.f32 %v3900, %v3964
      %v3997 = vadd.f32 %v3901, %v3965
      %v3998 = vadd.f32 %v3902, %v3966
      %v3999 = vadd.f32 %v3903, %v3967
      %v4000 = vadd.f32 %v3904, %v3968
      %v4001 = vadd.f32 %v3905, %v3969
      %v4002 = vadd.f32 %v3906, %v3970
      %v4003 = vld [vmem:[%s283 + $0x18] sm:$0xf]
      %v4004 = vld [vmem:[%s283 + $0x3c] sm:$0xf]
      %v4005 = vld [vmem:[%s283 + $0x60] sm:$0xf]
      %v4006 = vld [vmem:[%s283 + $0x84] sm:$0xf]
      %v4007 = vld [vmem:[%s283 + $0xa8] sm:$0xf]
      %v4008 = vld [vmem:[%s283 + $0xcc] sm:$0xf]
      %v4009 = vld [vmem:[%s283 + $0xf0] sm:$0xf]
      %v4010 = vld [vmem:[%s283 + $0x114] sm:$0xf]
      %v4011 = vld [vmem:[%s283 + $0x138] sm:$0xf]
      %v4012 = vld [vmem:[%s283 + $0x15c] sm:$0xf]
      %v4013 = vld [vmem:[%s283 + $0x180] sm:$0xf]
      %v4014 = vld [vmem:[%s283 + $0x1a4] sm:$0xf]
      %v4015 = vld [vmem:[%s283 + $0x1c8] sm:$0xf]
      %v4016 = vld [vmem:[%s283 + $0x1ec] sm:$0xf]
      %v4017 = vld [vmem:[%s283 + $0x210] sm:$0xf]
      %v4018 = vld [vmem:[%s283 + $0x234] sm:$0xf]
      %v4019 = vld [vmem:[%s283 + $0x258] sm:$0xf]
      %v4020 = vld [vmem:[%s283 + $0x27c] sm:$0xf]
      %v4021 = vld [vmem:[%s283 + $0x2a0] sm:$0xf]
      %v4022 = vld [vmem:[%s283 + $0x2c4] sm:$0xf]
      %v4023 = vld [vmem:[%s283 + $0x2e8] sm:$0xf]
      %v4024 = vld [vmem:[%s283 + $0x30c] sm:$0xf]
      %v4025 = vld [vmem:[%s283 + $0x330] sm:$0xf]
      %v4026 = vld [vmem:[%s283 + $0x354] sm:$0xf]
      %v4027 = vld [vmem:[%s283 + $0x378] sm:$0xf]
      %v4028 = vld [vmem:[%s283 + $0x39c] sm:$0xf]
      %v4029 = vld [vmem:[%s283 + $0x3c0] sm:$0xf]
      %v4030 = vld [vmem:[%s283 + $0x3e4] sm:$0xf]
      %v4031 = vld [vmem:[%s283 + $0x408] sm:$0xf]
      %v4032 = vld [vmem:[%s283 + $0x42c] sm:$0xf]
      %v4033 = vld [vmem:[%s283 + $0x450] sm:$0xf]
      %v4034 = vld [vmem:[%s283 + $0x474] sm:$0xf]
      %v4035 = vunpack.c.l.bf16 %v4003
      %v4036 = vunpack.c.l.bf16 %v4004
      %v4037 = vunpack.c.l.bf16 %v4005
      %v4038 = vunpack.c.l.bf16 %v4006
      %v4039 = vunpack.c.l.bf16 %v4007
      %v4040 = vunpack.c.l.bf16 %v4008
      %v4041 = vunpack.c.l.bf16 %v4009
      %v4042 = vunpack.c.l.bf16 %v4010
      %v4043 = vunpack.c.l.bf16 %v4011
      %v4044 = vunpack.c.l.bf16 %v4012
      %v4045 = vunpack.c.l.bf16 %v4013
      %v4046 = vunpack.c.l.bf16 %v4014
      %v4047 = vunpack.c.l.bf16 %v4015
      %v4048 = vunpack.c.l.bf16 %v4016
      %v4049 = vunpack.c.l.bf16 %v4017
      %v4050 = vunpack.c.l.bf16 %v4018
      %v4051 = vunpack.c.l.bf16 %v4019
      %v4052 = vunpack.c.l.bf16 %v4020
      %v4053 = vunpack.c.l.bf16 %v4021
      %v4054 = vunpack.c.l.bf16 %v4022
      %v4055 = vunpack.c.l.bf16 %v4023
      %v4056 = vunpack.c.l.bf16 %v4024
      %v4057 = vunpack.c.l.bf16 %v4025
      %v4058 = vunpack.c.l.bf16 %v4026
      %v4059 = vunpack.c.l.bf16 %v4027
      %v4060 = vunpack.c.l.bf16 %v4028
      %v4061 = vunpack.c.l.bf16 %v4029
      %v4062 = vunpack.c.l.bf16 %v4030
      %v4063 = vunpack.c.l.bf16 %v4031
      %v4064 = vunpack.c.l.bf16 %v4032
      %v4065 = vunpack.c.l.bf16 %v4033
      %v4066 = vunpack.c.l.bf16 %v4034
      %v4067 = vadd.f32 %v3971, %v4035
      %v4068 = vadd.f32 %v3972, %v4036
      %v4069 = vadd.f32 %v3973, %v4037
      %v4070 = vadd.f32 %v3974, %v4038
      %v4071 = vadd.f32 %v3975, %v4039
      %v4072 = vadd.f32 %v3976, %v4040
      %v4073 = vadd.f32 %v3977, %v4041
      %v4074 = vadd.f32 %v3978, %v4042
      %v4075 = vadd.f32 %v3979, %v4043
      %v4076 = vadd.f32 %v3980, %v4044
      %v4077 = vadd.f32 %v3981, %v4045
      %v4078 = vadd.f32 %v3982, %v4046
      %v4079 = vadd.f32 %v3983, %v4047
      %v4080 = vadd.f32 %v3984, %v4048
      %v4081 = vadd.f32 %v3985, %v4049
      %v4082 = vadd.f32 %v3986, %v4050
      %v4083 = vadd.f32 %v3987, %v4051
      %v4084 = vadd.f32 %v3988, %v4052
      %v4085 = vadd.f32 %v3989, %v4053
      %v4086 = vadd.f32 %v3990, %v4054
      %v4087 = vadd.f32 %v3991, %v4055
      %v4088 = vadd.f32 %v3992, %v4056
      %v4089 = vadd.f32 %v3993, %v4057
      %v4090 = vadd.f32 %v3994, %v4058
      %v4091 = vadd.f32 %v3995, %v4059
      %v4092 = vadd.f32 %v3996, %v4060
      %v4093 = vadd.f32 %v3997, %v4061
      %v4094 = vadd.f32 %v3998, %v4062
      %v4095 = vadd.f32 %v3999, %v4063
      %v4096 = vadd.f32 %v4000, %v4064
      %v4097 = vadd.f32 %v4001, %v4065
      %v4098 = vadd.f32 %v4002, %v4066
      %v4099 = vld [vmem:[%s283 + $0x1c] sm:$0xf]
      %v4100 = vld [vmem:[%s283 + $0x40] sm:$0xf]
      %v4101 = vld [vmem:[%s283 + $0x64] sm:$0xf]
      %v4102 = vld [vmem:[%s283 + $0x88] sm:$0xf]
      %v4103 = vld [vmem:[%s283 + $0xac] sm:$0xf]
      %v4104 = vld [vmem:[%s283 + $0xd0] sm:$0xf]
      %v4105 = vld [vmem:[%s283 + $0xf4] sm:$0xf]
      %v4106 = vld [vmem:[%s283 + $0x118] sm:$0xf]
      %v4107 = vld [vmem:[%s283 + $0x13c] sm:$0xf]
      %v4108 = vld [vmem:[%s283 + $0x160] sm:$0xf]
      %v4109 = vld [vmem:[%s283 + $0x184] sm:$0xf]
      %v4110 = vld [vmem:[%s283 + $0x1a8] sm:$0xf]
      %v4111 = vld [vmem:[%s283 + $0x1cc] sm:$0xf]
      %v4112 = vld [vmem:[%s283 + $0x1f0] sm:$0xf]
      %v4113 = vld [vmem:[%s283 + $0x214] sm:$0xf]
      %v4114 = vld [vmem:[%s283 + $0x238] sm:$0xf]
      %v4115 = vld [vmem:[%s283 + $0x25c] sm:$0xf]
      %v4116 = vld [vmem:[%s283 + $0x280] sm:$0xf]
      %v4117 = vld [vmem:[%s283 + $0x2a4] sm:$0xf]
      %v4118 = vld [vmem:[%s283 + $0x2c8] sm:$0xf]
      %v4119 = vld [vmem:[%s283 + $0x2ec] sm:$0xf]
      %v4120 = vld [vmem:[%s283 + $0x310] sm:$0xf]
      %v4121 = vld [vmem:[%s283 + $0x334] sm:$0xf]
      %v4122 = vld [vmem:[%s283 + $0x358] sm:$0xf]
      %v4123 = vld [vmem:[%s283 + $0x37c] sm:$0xf]
      %v4124 = vld [vmem:[%s283 + $0x3a0] sm:$0xf]
      %v4125 = vld [vmem:[%s283 + $0x3c4] sm:$0xf]
      %v4126 = vld [vmem:[%s283 + $0x3e8] sm:$0xf]
      %v4127 = vld [vmem:[%s283 + $0x40c] sm:$0xf]
      %v4128 = vld [vmem:[%s283 + $0x430] sm:$0xf]
      %v4129 = vld [vmem:[%s283 + $0x454] sm:$0xf]
      %v4130 = vld [vmem:[%s283 + $0x478] sm:$0xf]
      %v4131 = vunpack.c.l.bf16 %v4099
      %v4132 = vunpack.c.l.bf16 %v4100
      %v4133 = vunpack.c.l.bf16 %v4101
      %v4134 = vunpack.c.l.bf16 %v4102
      %v4135 = vunpack.c.l.bf16 %v4103
      %v4136 = vunpack.c.l.bf16 %v4104
      %v4137 = vunpack.c.l.bf16 %v4105
      %v4138 = vunpack.c.l.bf16 %v4106
      %v4139 = vunpack.c.l.bf16 %v4107
      %v4140 = vunpack.c.l.bf16 %v4108
      %v4141 = vunpack.c.l.bf16 %v4109
      %v4142 = vunpack.c.l.bf16 %v4110
      %v4143 = vunpack.c.l.bf16 %v4111
      %v4144 = vunpack.c.l.bf16 %v4112
      %v4145 = vunpack.c.l.bf16 %v4113
      %v4146 = vunpack.c.l.bf16 %v4114
      %v4147 = vunpack.c.l.bf16 %v4115
      %v4148 = vunpack.c.l.bf16 %v4116
      %v4149 = vunpack.c.l.bf16 %v4117
      %v4150 = vunpack.c.l.bf16 %v4118
      %v4151 = vunpack.c.l.bf16 %v4119
      %v4152 = vunpack.c.l.bf16 %v4120
      %v4153 = vunpack.c.l.bf16 %v4121
      %v4154 = vunpack.c.l.bf16 %v4122
      %v4155 = vunpack.c.l.bf16 %v4123
      %v4156 = vunpack.c.l.bf16 %v4124
      %v4157 = vunpack.c.l.bf16 %v4125
      %v4158 = vunpack.c.l.bf16 %v4126
      %v4159 = vunpack.c.l.bf16 %v4127
      %v4160 = vunpack.c.l.bf16 %v4128
      %v4161 = vunpack.c.l.bf16 %v4129
      %v4162 = vunpack.c.l.bf16 %v4130
      %v4163 = vadd.f32 %v4067, %v4131
      %v4164 = vadd.f32 %v4068, %v4132
      %v4165 = vadd.f32 %v4069, %v4133
      %v4166 = vadd.f32 %v4070, %v4134
      %v4167 = vadd.f32 %v4071, %v4135
      %v4168 = vadd.f32 %v4072, %v4136
      %v4169 = vadd.f32 %v4073, %v4137
      %v4170 = vadd.f32 %v4074, %v4138
      %v4171 = vadd.f32 %v4075, %v4139
      %v4172 = vadd.f32 %v4076, %v4140
      %v4173 = vadd.f32 %v4077, %v4141
      %v4174 = vadd.f32 %v4078, %v4142
      %v4175 = vadd.f32 %v4079, %v4143
      %v4176 = vadd.f32 %v4080, %v4144
      %v4177 = vadd.f32 %v4081, %v4145
      %v4178 = vadd.f32 %v4082, %v4146
      %v4179 = vadd.f32 %v4083, %v4147
      %v4180 = vadd.f32 %v4084, %v4148
      %v4181 = vadd.f32 %v4085, %v4149
      %v4182 = vadd.f32 %v4086, %v4150
      %v4183 = vadd.f32 %v4087, %v4151
      %v4184 = vadd.f32 %v4088, %v4152
      %v4185 = vadd.f32 %v4089, %v4153
      %v4186 = vadd.f32 %v4090, %v4154
      %v4187 = vadd.f32 %v4091, %v4155
      %v4188 = vadd.f32 %v4092, %v4156
      %v4189 = vadd.f32 %v4093, %v4157
      %v4190 = vadd.f32 %v4094, %v4158
      %v4191 = vadd.f32 %v4095, %v4159
      %v4192 = vadd.f32 %v4096, %v4160
      %v4193 = vadd.f32 %v4097, %v4161
      %v4194 = vadd.f32 %v4098, %v4162
      %v4195 = vld [vmem:[%s283 + $0x20] sm:$0xf]
      %v4196 = vld [vmem:[%s283 + $0x44] sm:$0xf]
      %v4197 = vld [vmem:[%s283 + $0x68] sm:$0xf]
      %v4198 = vld [vmem:[%s283 + $0x8c] sm:$0xf]
      %v4199 = vld [vmem:[%s283 + $0xb0] sm:$0xf]
      %v4200 = vld [vmem:[%s283 + $0xd4] sm:$0xf]
      %v4201 = vld [vmem:[%s283 + $0xf8] sm:$0xf]
      %v4202 = vld [vmem:[%s283 + $0x11c] sm:$0xf]
      %v4203 = vld [vmem:[%s283 + $0x140] sm:$0xf]
      %v4204 = vld [vmem:[%s283 + $0x164] sm:$0xf]
      %v4205 = vld [vmem:[%s283 + $0x188] sm:$0xf]
      %v4206 = vld [vmem:[%s283 + $0x1ac] sm:$0xf]
      %v4207 = vld [vmem:[%s283 + $0x1d0] sm:$0xf]
      %v4208 = vld [vmem:[%s283 + $0x1f4] sm:$0xf]
      %v4209 = vld [vmem:[%s283 + $0x218] sm:$0xf]
      %v4210 = vld [vmem:[%s283 + $0x23c] sm:$0xf]
      %v4211 = vld [vmem:[%s283 + $0x260] sm:$0xf]
      %v4212 = vld [vmem:[%s283 + $0x284] sm:$0xf]
      %v4213 = vld [vmem:[%s283 + $0x2a8] sm:$0xf]
      %v4214 = vld [vmem:[%s283 + $0x2cc] sm:$0xf]
      %v4215 = vld [vmem:[%s283 + $0x2f0] sm:$0xf]
      %v4216 = vld [vmem:[%s283 + $0x314] sm:$0xf]
      %v4217 = vld [vmem:[%s283 + $0x338] sm:$0xf]
      %v4218 = vld [vmem:[%s283 + $0x35c] sm:$0xf]
      %v4219 = vld [vmem:[%s283 + $0x380] sm:$0xf]
      %v4220 = vld [vmem:[%s283 + $0x3a4] sm:$0xf]
      %v4221 = vld [vmem:[%s283 + $0x3c8] sm:$0xf]
      %v4222 = vld [vmem:[%s283 + $0x3ec] sm:$0xf]
      %v4223 = vld [vmem:[%s283 + $0x410] sm:$0xf]
      %v4224 = vld [vmem:[%s283 + $0x434] sm:$0xf]
      %v4225 = vld [vmem:[%s283 + $0x458] sm:$0xf]
      %v4226 = vld [vmem:[%s283 + $0x47c] sm:$0xf]
      %v4227 = vunpack.c.l.bf16 %v4195
      %v4228 = vunpack.c.l.bf16 %v4196
      %v4229 = vunpack.c.l.bf16 %v4197
      %v4230 = vunpack.c.l.bf16 %v4198
      %v4231 = vunpack.c.l.bf16 %v4199
      %v4232 = vunpack.c.l.bf16 %v4200
      %v4233 = vunpack.c.l.bf16 %v4201
      %v4234 = vunpack.c.l.bf16 %v4202
      %v4235 = vunpack.c.l.bf16 %v4203
      %v4236 = vunpack.c.l.bf16 %v4204
      %v4237 = vunpack.c.l.bf16 %v4205
      %v4238 = vunpack.c.l.bf16 %v4206
      %v4239 = vunpack.c.l.bf16 %v4207
      %v4240 = vunpack.c.l.bf16 %v4208
      %v4241 = vunpack.c.l.bf16 %v4209
      %v4242 = vunpack.c.l.bf16 %v4210
      %v4243 = vunpack.c.l.bf16 %v4211
      %v4244 = vunpack.c.l.bf16 %v4212
      %v4245 = vunpack.c.l.bf16 %v4213
      %v4246 = vunpack.c.l.bf16 %v4214
      %v4247 = vunpack.c.l.bf16 %v4215
      %v4248 = vunpack.c.l.bf16 %v4216
      %v4249 = vunpack.c.l.bf16 %v4217
      %v4250 = vunpack.c.l.bf16 %v4218
      %v4251 = vunpack.c.l.bf16 %v4219
      %v4252 = vunpack.c.l.bf16 %v4220
      %v4253 = vunpack.c.l.bf16 %v4221
      %v4254 = vunpack.c.l.bf16 %v4222
      %v4255 = vunpack.c.l.bf16 %v4223
      %v4256 = vunpack.c.l.bf16 %v4224
      %v4257 = vunpack.c.l.bf16 %v4225
      %v4258 = vunpack.c.l.bf16 %v4226
      %v4259 = vadd.f32 %v4163, %v4227
      %v4260 = vadd.f32 %v4164, %v4228
      %v4261 = vadd.f32 %v4165, %v4229
      %v4262 = vadd.f32 %v4166, %v4230
      %v4263 = vadd.f32 %v4167, %v4231
      %v4264 = vadd.f32 %v4168, %v4232
      %v4265 = vadd.f32 %v4169, %v4233
      %v4266 = vadd.f32 %v4170, %v4234
      %v4267 = vadd.f32 %v4171, %v4235
      %v4268 = vadd.f32 %v4172, %v4236
      %v4269 = vadd.f32 %v4173, %v4237
      %v4270 = vadd.f32 %v4174, %v4238
      %v4271 = vadd.f32 %v4175, %v4239
      %v4272 = vadd.f32 %v4176, %v4240
      %v4273 = vadd.f32 %v4177, %v4241
      %v4274 = vadd.f32 %v4178, %v4242
      %v4275 = vadd.f32 %v4179, %v4243
      %v4276 = vadd.f32 %v4180, %v4244
      %v4277 = vadd.f32 %v4181, %v4245
      %v4278 = vadd.f32 %v4182, %v4246
      %v4279 = vadd.f32 %v4183, %v4247
      %v4280 = vadd.f32 %v4184, %v4248
      %v4281 = vadd.f32 %v4185, %v4249
      %v4282 = vadd.f32 %v4186, %v4250
      %v4283 = vadd.f32 %v4187, %v4251
      %v4284 = vadd.f32 %v4188, %v4252
      %v4285 = vadd.f32 %v4189, %v4253
      %v4286 = vadd.f32 %v4190, %v4254
      %v4287 = vadd.f32 %v4191, %v4255
      %v4288 = vadd.f32 %v4192, %v4256
      %v4289 = vadd.f32 %v4193, %v4257
      %v4290 = vadd.f32 %v4194, %v4258
      %v4291 = vmul.f32 %v4259, 0.11111111
      %v4292 = vmul.f32 %v4260, 0.11111111
      %v4293 = vmul.f32 %v4261, 0.11111111
      %v4294 = vmul.f32 %v4262, 0.11111111
      %v4295 = vmul.f32 %v4263, 0.11111111
      %v4296 = vmul.f32 %v4264, 0.11111111
      %v4297 = vmul.f32 %v4265, 0.11111111
      %v4298 = vmul.f32 %v4266, 0.11111111
      %v4299 = vmul.f32 %v4267, 0.11111111
      %v4300 = vmul.f32 %v4268, 0.11111111
      %v4301 = vmul.f32 %v4269, 0.11111111
      %v4302 = vmul.f32 %v4270, 0.11111111
      %v4303 = vmul.f32 %v4271, 0.11111111
      %v4304 = vmul.f32 %v4272, 0.11111111
      %v4305 = vmul.f32 %v4273, 0.11111111
      %v4306 = vmul.f32 %v4274, 0.11111111
      %v4307 = vmul.f32 %v4275, 0.11111111
      %v4308 = vmul.f32 %v4276, 0.11111111
      %v4309 = vmul.f32 %v4277, 0.11111111
      %v4310 = vmul.f32 %v4278, 0.11111111
      %v4311 = vmul.f32 %v4279, 0.11111111
      %v4312 = vmul.f32 %v4280, 0.11111111
      %v4313 = vmul.f32 %v4281, 0.11111111
      %v4314 = vmul.f32 %v4282, 0.11111111
      %v4315 = vmul.f32 %v4283, 0.11111111
      %v4316 = vmul.f32 %v4284, 0.11111111
      %v4317 = vmul.f32 %v4285, 0.11111111
      %v4318 = vmul.f32 %v4286, 0.11111111
      %v4319 = vmul.f32 %v4287, 0.11111111
      %v4320 = vmul.f32 %v4288, 0.11111111
      %v4321 = vmul.f32 %v4289, 0.11111111
      %v4322 = vmul.f32 %v4290, 0.11111111
      %4323 = vst [vmem:[%s290 + $0x8] sm:$0xff] %v4291
      %4324 = vst [vmem:[%s290 + $0x18] sm:$0xff] %v4292
      %4325 = vst [vmem:[%s290 + $0x28] sm:$0xff] %v4293
      %4326 = vst [vmem:[%s290 + $0x38] sm:$0xff] %v4294
      %4327 = vst [vmem:[%s290 + $0x48] sm:$0xff] %v4295
      %4328 = vst [vmem:[%s290 + $0x58] sm:$0xff] %v4296
      %4329 = vst [vmem:[%s290 + $0x68] sm:$0xff] %v4297
      %4330 = vst [vmem:[%s290 + $0x78] sm:$0xff] %v4298
      %4331 = vst [vmem:[%s290 + $0x88] sm:$0xff] %v4299
      %4332 = vst [vmem:[%s290 + $0x98] sm:$0xff] %v4300
      %4333 = vst [vmem:[%s290 + $0xa8] sm:$0xff] %v4301
      %4334 = vst [vmem:[%s290 + $0xb8] sm:$0xff] %v4302
      %4335 = vst [vmem:[%s290 + $0xc8] sm:$0xff] %v4303
      %4336 = vst [vmem:[%s290 + $0xd8] sm:$0xff] %v4304
      %4337 = vst [vmem:[%s290 + $0xe8] sm:$0xff] %v4305
      %4338 = vst [vmem:[%s290 + $0xf8] sm:$0xff] %v4306
      %4339 = vst [vmem:[%s290 + $0x108] sm:$0xff] %v4307
      %4340 = vst [vmem:[%s290 + $0x118] sm:$0xff] %v4308
      %4341 = vst [vmem:[%s290 + $0x128] sm:$0xff] %v4309
      %4342 = vst [vmem:[%s290 + $0x138] sm:$0xff] %v4310
      %4343 = vst [vmem:[%s290 + $0x148] sm:$0xff] %v4311
      %4344 = vst [vmem:[%s290 + $0x158] sm:$0xff] %v4312
      %4345 = vst [vmem:[%s290 + $0x168] sm:$0xff] %v4313
      %4346 = vst [vmem:[%s290 + $0x178] sm:$0xff] %v4314
      %4347 = vst [vmem:[%s290 + $0x188] sm:$0xff] %v4315
      %4348 = vst [vmem:[%s290 + $0x198] sm:$0xff] %v4316
      %4349 = vst [vmem:[%s290 + $0x1a8] sm:$0xff] %v4317
      %4350 = vst [vmem:[%s290 + $0x1b8] sm:$0xff] %v4318
      %4351 = vst [vmem:[%s290 + $0x1c8] sm:$0xff] %v4319
      %4352 = vst [vmem:[%s290 + $0x1d8] sm:$0xff] %v4320
      %4353 = vst [vmem:[%s290 + $0x1e8] sm:$0xff] %v4321
      %4354 = vst [vmem:[%s290 + $0x1f8] sm:$0xff] %v4322
      %v4355 = vadd.f32 %v3395, %v3396
      %v4356 = vadd.f32 %v4355, %v3397
      %v4357 = vadd.f32 %v4356, %v3398
      %v4358 = vadd.f32 %v4357, %v3399
      %v4359 = vadd.f32 %v4358, %v3400
      %v4360 = vadd.f32 %v4359, %v3401
      %v4361 = vadd.f32 %v4360, %v3402
      %v4362 = vadd.f32 %v4361, %v3403
      %v4363 = vadd.f32 %v4362, %v3404
      %v4364 = vadd.f32 %v4363, %v3405
      %v4365 = vadd.f32 %v4364, %v3406
      %v4366 = vadd.f32 %v4365, %v3407
      %v4367 = vadd.f32 %v4366, %v3408
      %v4368 = vadd.f32 %v4367, %v3409
      %v4369 = vadd.f32 %v4368, %v3410
      %v4370 = vadd.f32 %v4369, %v3411
      %v4371 = vadd.f32 %v4370, %v3412
      %v4372 = vadd.f32 %v4371, %v3413
      %v4373 = vadd.f32 %v4372, %v3414
      %v4374 = vadd.f32 %v4373, %v3415
      %v4375 = vadd.f32 %v4374, %v3416
      %v4376 = vadd.f32 %v4375, %v3417
      %v4377 = vadd.f32 %v4376, %v3418
      %v4378 = vadd.f32 %v4377, %v3419
      %v4379 = vadd.f32 %v4378, %v3420
      %v4380 = vadd.f32 %v4379, %v3421
      %v4381 = vadd.f32 %v4380, %v3422
      %v4382 = vadd.f32 %v4381, %v3423
      %v4383 = vadd.f32 %v4382, %v3424
      %v4384 = vadd.f32 %v4383, %v3425
      %v4385 = vadd.f32 %v4384, %v3426
      %v4386 = vrot.slane %v4385, 4
      %v4387 = vadd.f32 %v4385, %v4386
      %v4388 = vrot.slane %v4387, 2
      %v4389 = vadd.f32 %v4387, %v4388
      %v4390 = vrot.slane %v4389, 1
      %v4391 = vadd.f32 %v4389, %v4390
      %4392 = vst [vmem:[%s295] sm:$0x1] %v4391
      %v4393 = vmul.f32 %v3395, %v3395
      %v4394 = vmul.f32 %v3396, %v3396
      %v4395 = vmul.f32 %v3397, %v3397
      %v4396 = vmul.f32 %v3398, %v3398
      %v4397 = vmul.f32 %v3399, %v3399
      %v4398 = vmul.f32 %v3400, %v3400
      %v4399 = vmul.f32 %v3401, %v3401
      %v4400 = vmul.f32 %v3402, %v3402
      %v4401 = vmul.f32 %v3403, %v3403
      %v4402 = vmul.f32 %v3404, %v3404
      %v4403 = vmul.f32 %v3405, %v3405
      %v4404 = vmul.f32 %v3406, %v3406
      %v4405 = vmul.f32 %v3407, %v3407
      %v4406 = vmul.f32 %v3408, %v3408
      %v4407 = vmul.f32 %v3409, %v3409
      %v4408 = vmul.f32 %v3410, %v3410
      %v4409 = vmul.f32 %v3411, %v3411
      %v4410 = vmul.f32 %v3412, %v3412
      %v4411 = vmul.f32 %v3413, %v3413
      %v4412 = vmul.f32 %v3414, %v3414
      %v4413 = vmul.f32 %v3415, %v3415
      %v4414 = vmul.f32 %v3416, %v3416
      %v4415 = vmul.f32 %v3417, %v3417
      %v4416 = vmul.f32 %v3418, %v3418
      %v4417 = vmul.f32 %v3419, %v3419
      %v4418 = vmul.f32 %v3420, %v3420
      %v4419 = vmul.f32 %v3421, %v3421
      %v4420 = vmul.f32 %v3422, %v3422
      %v4421 = vmul.f32 %v3423, %v3423
      %v4422 = vmul.f32 %v3424, %v3424
      %v4423 = vmul.f32 %v3425, %v3425
      %v4424 = vmul.f32 %v3426, %v3426
      %v4425 = vadd.f32 %v4393, %v4394
      %v4426 = vadd.f32 %v4425, %v4395
      %v4427 = vadd.f32 %v4426, %v4396
      %v4428 = vadd.f32 %v4427, %v4397
      %v4429 = vadd.f32 %v4428, %v4398
      %v4430 = vadd.f32 %v4429, %v4399
      %v4431 = vadd.f32 %v4430, %v4400
      %v4432 = vadd.f32 %v4431, %v4401
      %v4433 = vadd.f32 %v4432, %v4402
      %v4434 = vadd.f32 %v4433, %v4403
      %v4435 = vadd.f32 %v4434, %v4404
      %v4436 = vadd.f32 %v4435, %v4405
      %v4437 = vadd.f32 %v4436, %v4406
      %v4438 = vadd.f32 %v4437, %v4407
      %v4439 = vadd.f32 %v4438, %v4408
      %v4440 = vadd.f32 %v4439, %v4409
      %v4441 = vadd.f32 %v4440, %v4410
      %v4442 = vadd.f32 %v4441, %v4411
      %v4443 = vadd.f32 %v4442, %v4412
      %v4444 = vadd.f32 %v4443, %v4413
      %v4445 = vadd.f32 %v4444, %v4414
      %v4446 = vadd.f32 %v4445, %v4415
      %v4447 = vadd.f32 %v4446, %v4416
      %v4448 = vadd.f32 %v4447, %v4417
      %v4449 = vadd.f32 %v4448, %v4418
      %v4450 = vadd.f32 %v4449, %v4419
      %v4451 = vadd.f32 %v4450, %v4420
      %v4452 = vadd.f32 %v4451, %v4421
      %v4453 = vadd.f32 %v4452, %v4422
      %v4454 = vadd.f32 %v4453, %v4423
      %v4455 = vadd.f32 %v4454, %v4424
      %v4456 = vrot.slane %v4455, 4
      %v4457 = vadd.f32 %v4455, %v4456
      %v4458 = vrot.slane %v4457, 2
      %v4459 = vadd.f32 %v4457, %v4458
      %v4460 = vrot.slane %v4459, 1
      %v4461 = vadd.f32 %v4459, %v4460
      %4462 = vst [vmem:[%s295 + $0x1] sm:$0x1] %v4461
      %4463 = vst [vmem:[%s295 + $0x2] sm:$0x3f] 0.0
      %s4464 = smul.u32 32, %s18
      %p4465 = scmp.lt.s32.totalorder %s4464, 63
      %s4466 = scalar_select %p4465, %s4464, 63
      %s4467 = smul.addr %s4466, 2
      %s4468 = smul.addr %s4467, 8
      %s4469 = scalar_lea.vmem %s5, %s4468
      %p4470 = scmp.lt.s32.totalorder %s18, 1
      %s4471 = scalar_select %p4470, %s18, 1
      %s4472 = smul.addr %s4471, 8
      %s4473 = scalar_lea.vmem %s6, %s4472
      // Predicated region
      $region41: #{residual_block_forward.4} parent=39 // pred_check
        %p4474 = pneg %p151
      $region42: #{residual_block_forward.4} parent=39 // pred_check_branch
        %4476 = sbr.rel (%p4474) target = $region44
      $region43: #{residual_block_forward.4} parent=39 // pred_region
        %s4477 = smul.u32 32, %s18
      $region44: #{residual_block_forward.4} parent=39 // pred_fallthru
        _
      // Predicated region
      $region45: #{residual_block_forward.4} parent=39 // pred_check
        %p4478 = pneg %p177
      $region46: #{residual_block_forward.4} parent=39 // pred_check_branch
        %4480 = sbr.rel (%p4478) target = $region48
      $region47: #{residual_block_forward.4} parent=39 // pred_region
        _
      $region48: #{residual_block_forward.4} parent=39 // pred_fallthru
        _
    $region40: #{residual_block_forward.4} parent=5 // pred_fallthru
      _
    %p4481 = scmp.le.s32.totalorder 2, %s13
    // Predicated region
    $region49: #{residual_block_forward.4} parent=5 // pred_check
      %p4482 = pneg %p4481
    $region50: #{residual_block_forward.4} parent=5 // pred_check_branch
      %4484 = sbr.rel (%p4482) target = $region52
    $region51: #{residual_block_forward.4} parent=5 // pred_region
      %s4485 = ssub.s32 %s13, 2
      // Predicated region
      $region53: #{residual_block_forward.4} parent=51 // pred_check
        %p4486 = pneg %p157
      $region54: #{residual_block_forward.4} parent=51 // pred_check_branch
        %4488 = sbr.rel (%p4486) target = $region56
      $region55: #{residual_block_forward.4} parent=51 // pred_region
        %s4489 = smul.u32 32, %s19
        %p4490 = scmp.lt.s32.totalorder %s4489, 63
        %s4491 = scalar_select %p4490, %s4489, 63
        %s4492 = smul.addr %s4491, 2
        %s4493 = smul.addr %s4492, 8
        %s4494 = scalar_lea.vmem %s5, %s4493
      $region56: #{residual_block_forward.4} parent=51 // pred_fallthru
        _
      // Predicated region
      $region57: #{residual_block_forward.4} parent=51 // pred_check
        %p4495 = pneg %p183
      $region58: #{residual_block_forward.4} parent=51 // pred_check_branch
        %4497 = sbr.rel (%p4495) target = $region60
      $region59: #{residual_block_forward.4} parent=51 // pred_region
        %p4498 = scmp.lt.s32.totalorder %s19, 1
        %s4499 = scalar_select %p4498, %s19, 1
        %s4500 = smul.addr %s4499, 8
        %s4501 = scalar_lea.vmem %s6, %s4500
      $region60: #{residual_block_forward.4} parent=51 // pred_fallthru
        _
    $region52: #{residual_block_forward.4} parent=5 // pred_fallthru
      _
  $region6: #{residual_block_forward.4} parent=0 // loop_footer
    %s17 = sadd.s32 1, %s13
  $region7: #{residual_block_forward.4} parent=0 // loop_footer_branch
    %12 = sbr.rel target = $region3
  $region8: #{residual_block_forward.4} parent=0 // loop_exit
    _

</llo_original>
